<compile_context>
chip_gen: v5e
topology: v5e:2x2
jax: 0.10.0
libtpu: 0.0.40
codegen_flags: <defaults>
</compile_context>

<pallas_src>
import functools

import numpy as np
import jax
import jax.numpy as jnp
from jax.experimental import pallas as pl
from jax.experimental.pallas import tpu as pltpu

EPS = 1e-5  # nn.BatchNorm2d default eps

# (kernel, stride, padding) of the 5 ConvTranspose2d layers (static config).
LAYER_DEFS = ((4, 1, 0), (4, 2, 1), (4, 2, 1), (4, 2, 1), (4, 2, 1))


# ----------------------------------------------------------------------------
# Pallas kernels
# ----------------------------------------------------------------------------
def _convt_bn_relu_kernel(a_ref, b_ref, g_ref, bt_ref, o_ref, *, inv_m):
    """Phase-batched matmul + fused training-mode BatchNorm + affine + ReLU.

    a: (P, K, M) bf16 patches, b: (P, C, K) bf16 weights,
    g/bt: (1, C, 1) f32 gamma/beta, o: (P, C, M) bf16.
    Single invocation: the whole layer lives in VMEM, so the per-channel
    statistics over all P*M positions are computed in the epilogue and only
    the bf16 result goes back to HBM.
    """
    y = jnp.einsum("pck,pkm->pcm", b_ref[...], a_ref[...],
                   preferred_element_type=jnp.float32)          # (P, C, M) f32
    # Two-pass (centered) mean/var in f32: lane reduce then phase reduce.
    mean = jnp.sum(jnp.sum(y, axis=2, keepdims=True),
                   axis=0, keepdims=True) * inv_m               # (1, C, 1)
    cen = y - mean
    var = jnp.sum(jnp.sum(cen * cen, axis=2, keepdims=True),
                  axis=0, keepdims=True) * inv_m
    scale = jax.lax.rsqrt(var + EPS) * g_ref[...]
    o_ref[...] = jnp.maximum(cen * scale + bt_ref[...], 0.0).astype(o_ref.dtype)


def _convt_tanh_kernel(a_ref, b_ref, o_ref):
    """Phase-batched matmul + tanh epilogue (final layer, no BN)."""
    y = jnp.einsum("pck,pkm->pcm", b_ref[...], a_ref[...],
                   preferred_element_type=jnp.float32)
    o_ref[...] = jnp.tanh(y)


# ----------------------------------------------------------------------------
# pallas_call wrappers
# ----------------------------------------------------------------------------
def fused_convt_bn_relu(a, b, gamma, beta):
    """a: (P, K, M) bf16, b: (P, C, K) bf16 -> (P, C, M) bf16."""
    p, k, m = a.shape
    c = b.shape[1]
    # Entire layer (operands + f32 intermediate + bf16 output) must fit VMEM.
    est_vmem = 2 * a.size + 2 * b.size + 6 * p * c * m + 8 * c
    if est_vmem > (24 << 20):
        # TODO(synk): add a two-pass (stats pass, then normalize pass)
        # M-tiled path for configs whose per-layer activations exceed VMEM.
        raise NotImplementedError(
            "fused ConvT+BN+ReLU layer does not fit VMEM; add M tiling")
    kern = functools.partial(_convt_bn_relu_kernel, inv_m=1.0 / (p * m))
    vmem = pl.BlockSpec(memory_space=pltpu.MemorySpace.VMEM)
    return pl.pallas_call(
        kern,
        out_shape=jax.ShapeDtypeStruct((p, c, m), jnp.bfloat16),
        in_specs=[vmem, vmem, vmem, vmem],
        out_specs=vmem,
        cost_estimate=pl.CostEstimate(
            flops=2 * p * c * k * m + 8 * p * c * m,
            transcendentals=c,
            bytes_accessed=2 * a.size + 2 * b.size + 2 * p * c * m + 8 * c),
    )(a, b,
      gamma.reshape(1, c, 1).astype(jnp.float32),
      beta.reshape(1, c, 1).astype(jnp.float32))


def fused_convt_tanh(a, b):
    """a: (P, K, M) bf16, b: (P, C, K) bf16 -> (P, C, M) f32 (tanh applied)."""
    p, k, m = a.shape
    c = b.shape[1]
    # Largest M tile (multiple of 128, dividing M) under a modest VMEM budget;
    # lane-dense output blocks, 1-D "parallel" grid (megacore-splittable).
    bytes_per_col = 2 * (p * k * 2) + 2 * (p * c * 4)   # double-buffered
    tm = m
    for cand in (4096, 2048, 1024, 512, 256, 128):
        if cand <= m and m % cand == 0 and cand * bytes_per_col <= (8 << 20):
            tm = cand
            break
    grid = (m // tm,)
    return pl.pallas_call(
        _convt_tanh_kernel,
        out_shape=jax.ShapeDtypeStruct((p, c, m), jnp.float32),
        grid=grid,
        in_specs=[
            pl.BlockSpec((p, k, tm), lambda i: (0, 0, i)),   # patch tiles
            pl.BlockSpec((p, c, k), lambda i: (0, 0, 0)),    # weights (resident)
        ],
        out_specs=pl.BlockSpec((p, c, tm), lambda i: (0, 0, i)),
        compiler_params=pltpu.CompilerParams(
            dimension_semantics=("parallel",)),
        cost_estimate=pl.CostEstimate(
            flops=2 * p * c * k * m,
            transcendentals=p * c * m,
            bytes_accessed=2 * a.size + 2 * b.size + 4 * p * c * m),
    )(a, b)


# ----------------------------------------------------------------------------
# Plain-JAX glue: layout / patch extraction (pure data movement).
# TODO(synk): the phase patch extraction is still materialized by XLA in HBM
# (4x expansion); an in-kernel gather via pl.ANY + manual DMA would cut that.
# ----------------------------------------------------------------------------
def _im2col_t(z, k):
    """z: (C, N, Hp, Wp) -> (C*k*k, N*OH*OW) with rows ordered (c, dy, dx)."""
    c, n, hp, wp = z.shape
    oh, ow = hp - k + 1, wp - k + 1
    cols = [z[:, :, dy:dy + oh, dx:dx + ow]
            for dy in range(k) for dx in range(k)]
    patches = jnp.stack(cols, axis=1)                    # (C, k*k, N, OH, OW)
    return patches.reshape(c * k * k, n * oh * ow), oh, ow


def _weight_to_matrix_t(w):
    """ConvTranspose2d weight (Cin, Cout, k, k) -> (Cout, Cin*k*k), spatially
    flipped, rows ordered (cin, dy, dx) to match _im2col_t."""
    cin, cout, k, _ = w.shape
    wf = w[:, :, ::-1, ::-1]
    return wf.transpose(1, 0, 2, 3).reshape(cout, cin * k * k)


def _phase_patches_s2(x):
    """x: (Cin, N, H, W) -> (4, Cin*4, N*H*W) sub-pixel phase patch matrices.

    For k=4, s=2, p=1, output phase (py, px) is a 2x2 conv over x with
    one-sided padding: py=0 pads top, py=1 pads bottom (same for px)."""
    c, n, h, w = x.shape
    phases = []
    for py in (0, 1):
        for px in (0, 1):
            xp = jnp.pad(x, ((0, 0), (0, 0), (1 - py, py), (1 - px, px)))
            taps = [xp[:, :, dy:dy + h, dx:dx + w]
                    for dy in range(2) for dx in range(2)]
            phases.append(jnp.stack(taps, axis=1).reshape(c * 4, n * h * w))
    return jnp.stack(phases, axis=0)


def _phase_weights_s2(w):
    """w: (Cin, Cout, 4, 4) -> (4, Cout, Cin*4) per-phase 2x2 weight matrices.

    Kernel row used at tap dy for phase py is (3 - py - 2*dy); same for cols."""
    cin, cout = w.shape[0], w.shape[1]
    mats = []
    for py in (0, 1):
        for px in (0, 1):
            wp = w[:, :, 3 - py::-2, 3 - px::-2]         # (Cin, Cout, 2, 2)
            mats.append(wp.transpose(1, 0, 2, 3).reshape(cout, cin * 4))
    return jnp.stack(mats, axis=0)


def _phases_to_cnhw(yp, cout, n, h, w):
    """yp: (4, Cout, N*H*W), phase p = py*2+px -> (Cout, N, 2H, 2W)."""
    y = yp.reshape(2, 2, cout, n, h, w)
    y = y.transpose(2, 3, 4, 0, 5, 1)                    # (C, N, H, py, W, px)
    return y.reshape(cout, n, 2 * h, 2 * w)


def convt_layer1(x, w, gamma, beta):
    """Layer 1: ConvTranspose2d(nz, ngf*8, 4, 1, 0) on a 1x1 input + BN + ReLU."""
    cin, n, h, wsp = x.shape
    cout, k = w.shape[1], w.shape[2]
    z = jnp.pad(x, ((0, 0), (0, 0), (k - 1, k - 1), (k - 1, k - 1)))
    a_t, oh, ow = _im2col_t(z, k)
    a = a_t.astype(jnp.bfloat16)[None]                      # (1, K, M)
    b = _weight_to_matrix_t(w).astype(jnp.bfloat16)[None]   # (1, Cout, K)
    y = fused_convt_bn_relu(a, b, gamma, beta)              # (1, Cout, M) bf16
    return y.reshape(cout, n, oh, ow)


def convt_layer_s2(x, w, gamma, beta, last):
    """k=4, s=2, p=1 ConvTranspose2d as 4 sub-pixel phase matmuls (+BN/ReLU or tanh)."""
    cin, n, h, wsp = x.shape
    cout = w.shape[1]
    a = _phase_patches_s2(x)                                # (4, Cin*4, M) bf16
    b = _phase_weights_s2(w).astype(jnp.bfloat16)           # (4, Cout, Cin*4)
    if last:
        yp = fused_convt_tanh(a, b)                         # (4, Cout, M) f32
    else:
        yp = fused_convt_bn_relu(a, b, gamma, beta)         # (4, Cout, M) bf16
    return _phases_to_cnhw(yp, cout, n, h, wsp)


# ----------------------------------------------------------------------------
# Generator
# ----------------------------------------------------------------------------
def init_params(key, nz, ngf, nc):
    channels = [(nz, ngf * 8), (ngf * 8, ngf * 4), (ngf * 4, ngf * 2),
                (ngf * 2, ngf), (ngf, nc)]
    params = []
    for i, (cin, cout) in enumerate(channels):
        key, sub = jax.random.split(key)
        k = LAYER_DEFS[i][0]
        w = jax.random.normal(sub, (cin, cout, k, k), jnp.float32) * 0.02
        if i < len(channels) - 1:
            gamma = jnp.ones((cout,), jnp.float32)   # BatchNorm2d default init
            beta = jnp.zeros((cout,), jnp.float32)
        else:
            gamma = beta = None
        params.append((w, gamma, beta))
    return params


def generator_forward(x, params):
    # x: (N, nz, 1, 1) NCHW -> channel-major CNHW bf16 matmul operands.
    h = jnp.transpose(x, (1, 0, 2, 3)).astype(jnp.bfloat16)
    w0, g0, b0 = params[0]
    h = convt_layer1(h, w0, g0, b0)
    n_layers = len(params)
    for i in range(1, n_layers):
        w, g, b = params[i]
        h = convt_layer_s2(h, w, g, b, last=(i == n_layers - 1))
    # h: (nc, N, 64, 64) f32 -> NCHW at the model boundary only.
    return jnp.transpose(h, (1, 0, 2, 3))


# ----------------------------------------------------------------------------
# Pure-JAX reference (lax.conv_general_dilated; bf16 conv inputs / f32 acc to
# mirror the kernel's numerics) for correctness checking.
# ----------------------------------------------------------------------------
def _ref_convt(x, w, stride, pad):
    k = w.shape[2]
    w_conv = jnp.flip(w, axis=(2, 3)).transpose(1, 0, 2, 3)   # (Cout,Cin,k,k)
    p = k - 1 - pad
    return jax.lax.conv_general_dilated(
        x.astype(jnp.bfloat16), w_conv.astype(jnp.bfloat16),
        window_strides=(1, 1), padding=[(p, p), (p, p)],
        lhs_dilation=(stride, stride),
        dimension_numbers=("NCHW", "OIHW", "NCHW"),
        preferred_element_type=jnp.float32)


def ref_forward(x, params):
    h = x
    n_layers = len(params)
    for i, ((w, gamma, beta), (_, stride, pad)) in enumerate(
            zip(params, LAYER_DEFS)):
        h = _ref_convt(h, w, stride, pad)
        if i < n_layers - 1:
            mean = jnp.mean(h, axis=(0, 2, 3), keepdims=True)
            var = jnp.mean((h - mean) ** 2, axis=(0, 2, 3), keepdims=True)
            h = (h - mean) * jax.lax.rsqrt(var + EPS)
            h = h * gamma.reshape(1, -1, 1, 1) + beta.reshape(1, -1, 1, 1)
            h = jnp.maximum(h, 0.0)
        else:
            h = jnp.tanh(h)
    return h


if __name__ == "__main__":
    # Small DCGAN config: nz=32, ngf=8, nc=3, batch=2. Input is (N, nz, 1, 1).
    nz, ngf, nc, batch = 32, 8, 3, 2
    key = jax.random.PRNGKey(0)
    key, xk = jax.random.split(key)
    x = jax.random.normal(xk, (batch, nz, 1, 1), jnp.float32)

    params = init_params(key, nz, ngf, nc)

    out = jax.block_until_ready(jax.jit(generator_forward)(x, params))
    assert out.shape == (batch, nc, 64, 64), out.shape

    ref = jax.block_until_ready(jax.jit(ref_forward)(x, params))
    # bf16 matmul operands (f32 accumulation) in both paths; tolerance covers
    # accumulation-order / rounding differences through 5 layers.
    np.testing.assert_allclose(np.asarray(out), np.asarray(ref),
                               atol=2e-2, rtol=2e-2)

    print("KERNEL_OK")
</pallas_src>

<mosaic_0001>
module attributes {stable_mosaic.version = 11 : i64} {
  func.func @_convt_bn_relu_kernel(%arg0: memref<1x512x32xbf16, #tpu.memory_space<vmem>>, %arg1: memref<1x64x512xbf16, #tpu.memory_space<vmem>>, %arg2: memref<1x64x1xf32, #tpu.memory_space<vmem>>, %arg3: memref<1x64x1xf32, #tpu.memory_space<vmem>>, %arg4: memref<1x64x32xbf16, #tpu.memory_space<vmem>>) attributes {dimension_semantics = [], scalar_prefetch = 0 : i64, scratch_operands = 0 : i64, tpu.core_type = #tpu.core_type<tc>} {
    %c0 = arith.constant 0 : index
    %c0_0 = arith.constant 0 : index
    %c0_1 = arith.constant 0 : index
    %0 = vector.load %arg1[%c0, %c0_0, %c0_1] : memref<1x64x512xbf16, #tpu.memory_space<vmem>>, vector<1x64x512xbf16>
    %c0_2 = arith.constant 0 : index
    %c0_3 = arith.constant 0 : index
    %c0_4 = arith.constant 0 : index
    %1 = vector.load %arg0[%c0_2, %c0_3, %c0_4] : memref<1x512x32xbf16, #tpu.memory_space<vmem>>, vector<1x512x32xbf16>
    "tpu.trace_start"() <{level = 10 : i32, message = "pck,pkm->pcm"}> : () -> ()
    %cst = arith.constant dense<0.000000e+00> : vector<1x64x32xf32>
    %2 = tpu.matmul %0, %1, %cst {dimension_numbers = #tpu.dot_dimension_numbers<[2], [1], [1], [2], [0, 0, 0, 1, 1, 2], [0], [0]>} : vector<1x64x512xbf16>, vector<1x512x32xbf16>, vector<1x64x32xf32> -> vector<1x64x32xf32>
    "tpu.trace_stop"() : () -> ()
    %cst_5 = arith.constant dense<0.000000e+00> : vector<1x64xf32>
    %3 = vector.multi_reduction <add>, %2, %cst_5 [2] : vector<1x64x32xf32> to vector<1x64xf32>
    %4 = vector.shape_cast %3 : vector<1x64xf32> to vector<1x64x1xf32>
    %cst_6 = arith.constant dense<0.000000e+00> : vector<64x1xf32>
    %5 = vector.multi_reduction <add>, %4, %cst_6 [0] : vector<1x64x1xf32> to vector<64x1xf32>
    %6 = vector.shape_cast %5 : vector<64x1xf32> to vector<1x64x1xf32>
    %cst_7 = arith.constant 3.125000e-02 : f32
    %7 = vector.broadcast %cst_7 : f32 to vector<1x64x1xf32>
    %8 = arith.mulf %6, %7 : vector<1x64x1xf32>
    %9 = vector.broadcast %8 : vector<1x64x1xf32> to vector<1x64x32xf32>
    %10 = arith.subf %2, %9 : vector<1x64x32xf32>
    %11 = arith.mulf %10, %10 : vector<1x64x32xf32>
    %cst_8 = arith.constant dense<0.000000e+00> : vector<1x64xf32>
    %12 = vector.multi_reduction <add>, %11, %cst_8 [2] : vector<1x64x32xf32> to vector<1x64xf32>
    %13 = vector.shape_cast %12 : vector<1x64xf32> to vector<1x64x1xf32>
    %cst_9 = arith.constant dense<0.000000e+00> : vector<64x1xf32>
    %14 = vector.multi_reduction <add>, %13, %cst_9 [0] : vector<1x64x1xf32> to vector<64x1xf32>
    %15 = vector.shape_cast %14 : vector<64x1xf32> to vector<1x64x1xf32>
    %cst_10 = arith.constant 3.125000e-02 : f32
    %16 = vector.broadcast %cst_10 : f32 to vector<1x64x1xf32>
    %17 = arith.mulf %15, %16 : vector<1x64x1xf32>
    %cst_11 = arith.constant 9.99999974E-6 : f32
    %18 = vector.broadcast %cst_11 : f32 to vector<1x64x1xf32>
    %19 = arith.addf %17, %18 : vector<1x64x1xf32>
    %20 = math.rsqrt %19 : vector<1x64x1xf32>
    %c0_12 = arith.constant 0 : index
    %c0_13 = arith.constant 0 : index
    %c0_14 = arith.constant 0 : index
    %21 = vector.load %arg2[%c0_12, %c0_13, %c0_14] : memref<1x64x1xf32, #tpu.memory_space<vmem>>, vector<1x64x1xf32>
    %22 = arith.mulf %20, %21 : vector<1x64x1xf32>
    %23 = vector.broadcast %22 : vector<1x64x1xf32> to vector<1x64x32xf32>
    %24 = arith.mulf %10, %23 : vector<1x64x32xf32>
    %c0_15 = arith.constant 0 : index
    %c0_16 = arith.constant 0 : index
    %c0_17 = arith.constant 0 : index
    %25 = vector.load %arg3[%c0_15, %c0_16, %c0_17] : memref<1x64x1xf32, #tpu.memory_space<vmem>>, vector<1x64x1xf32>
    %26 = vector.broadcast %25 : vector<1x64x1xf32> to vector<1x64x32xf32>
    %27 = arith.addf %24, %26 : vector<1x64x32xf32>
    %cst_18 = arith.constant 0.000000e+00 : f32
    %28 = vector.broadcast %cst_18 : f32 to vector<1x64x32xf32>
    %29 = arith.maximumf %27, %28 : vector<1x64x32xf32>
    %30 = arith.truncf %29 : vector<1x64x32xf32> to vector<1x64x32xbf16>
    %c0_19 = arith.constant 0 : index
    %c0_20 = arith.constant 0 : index
    %c0_21 = arith.constant 0 : index
    %31 = vector.load %arg4[%c0_19, %c0_20, %c0_21] : memref<1x64x32xbf16, #tpu.memory_space<vmem>>, vector<1x64x32xbf16>
    tpu.vector_store %arg4[%c0_19, %c0_20, %c0_21], %30 {strides = array<i32>} : memref<1x64x32xbf16, #tpu.memory_space<vmem>>, vector<1x64x32xbf16>,
    return
  }
}

module attributes {stable_mosaic.version = 11 : i64} {
  func.func @_convt_bn_relu_kernel(%arg0: memref<4x256x32xbf16, #tpu.memory_space<vmem>>, %arg1: memref<4x32x256xbf16, #tpu.memory_space<vmem>>, %arg2: memref<1x32x1xf32, #tpu.memory_space<vmem>>, %arg3: memref<1x32x1xf32, #tpu.memory_space<vmem>>, %arg4: memref<4x32x32xbf16, #tpu.memory_space<vmem>>) attributes {dimension_semantics = [], scalar_prefetch = 0 : i64, scratch_operands = 0 : i64, tpu.core_type = #tpu.core_type<tc>} {
    %c0 = arith.constant 0 : index
    %c0_0 = arith.constant 0 : index
    %c0_1 = arith.constant 0 : index
    %0 = vector.load %arg1[%c0, %c0_0, %c0_1] : memref<4x32x256xbf16, #tpu.memory_space<vmem>>, vector<4x32x256xbf16>
    %c0_2 = arith.constant 0 : index
    %c0_3 = arith.constant 0 : index
    %c0_4 = arith.constant 0 : index
    %1 = vector.load %arg0[%c0_2, %c0_3, %c0_4] : memref<4x256x32xbf16, #tpu.memory_space<vmem>>, vector<4x256x32xbf16>
    "tpu.trace_start"() <{level = 10 : i32, message = "pck,pkm->pcm"}> : () -> ()
    %cst = arith.constant dense<0.000000e+00> : vector<4x32x32xf32>
    %2 = tpu.matmul %0, %1, %cst {dimension_numbers = #tpu.dot_dimension_numbers<[2], [1], [1], [2], [0, 0, 0, 1, 1, 2], [0], [0]>} : vector<4x32x256xbf16>, vector<4x256x32xbf16>, vector<4x32x32xf32> -> vector<4x32x32xf32>
    "tpu.trace_stop"() : () -> ()
    %cst_5 = arith.constant dense<0.000000e+00> : vector<4x32xf32>
    %3 = vector.multi_reduction <add>, %2, %cst_5 [2] : vector<4x32x32xf32> to vector<4x32xf32>
    %4 = vector.shape_cast %3 : vector<4x32xf32> to vector<4x32x1xf32>
    %cst_6 = arith.constant dense<0.000000e+00> : vector<32x1xf32>
    %5 = vector.multi_reduction <add>, %4, %cst_6 [0] : vector<4x32x1xf32> to vector<32x1xf32>
    %6 = vector.shape_cast %5 : vector<32x1xf32> to vector<1x32x1xf32>
    %cst_7 = arith.constant 7.812500e-03 : f32
    %7 = vector.broadcast %cst_7 : f32 to vector<1x32x1xf32>
    %8 = arith.mulf %6, %7 : vector<1x32x1xf32>
    %9 = vector.broadcast %8 : vector<1x32x1xf32> to vector<4x32x32xf32>
    %10 = arith.subf %2, %9 : vector<4x32x32xf32>
    %11 = arith.mulf %10, %10 : vector<4x32x32xf32>
    %cst_8 = arith.constant dense<0.000000e+00> : vector<4x32xf32>
    %12 = vector.multi_reduction <add>, %11, %cst_8 [2] : vector<4x32x32xf32> to vector<4x32xf32>
    %13 = vector.shape_cast %12 : vector<4x32xf32> to vector<4x32x1xf32>
    %cst_9 = arith.constant dense<0.000000e+00> : vector<32x1xf32>
    %14 = vector.multi_reduction <add>, %13, %cst_9 [0] : vector<4x32x1xf32> to vector<32x1xf32>
    %15 = vector.shape_cast %14 : vector<32x1xf32> to vector<1x32x1xf32>
    %cst_10 = arith.constant 7.812500e-03 : f32
    %16 = vector.broadcast %cst_10 : f32 to vector<1x32x1xf32>
    %17 = arith.mulf %15, %16 : vector<1x32x1xf32>
    %cst_11 = arith.constant 9.99999974E-6 : f32
    %18 = vector.broadcast %cst_11 : f32 to vector<1x32x1xf32>
    %19 = arith.addf %17, %18 : vector<1x32x1xf32>
    %20 = math.rsqrt %19 : vector<1x32x1xf32>
    %c0_12 = arith.constant 0 : index
    %c0_13 = arith.constant 0 : index
    %c0_14 = arith.constant 0 : index
    %21 = vector.load %arg2[%c0_12, %c0_13, %c0_14] : memref<1x32x1xf32, #tpu.memory_space<vmem>>, vector<1x32x1xf32>
    %22 = arith.mulf %20, %21 : vector<1x32x1xf32>
    %23 = vector.broadcast %22 : vector<1x32x1xf32> to vector<4x32x32xf32>
    %24 = arith.mulf %10, %23 : vector<4x32x32xf32>
    %c0_15 = arith.constant 0 : index
    %c0_16 = arith.constant 0 : index
    %c0_17 = arith.constant 0 : index
    %25 = vector.load %arg3[%c0_15, %c0_16, %c0_17] : memref<1x32x1xf32, #tpu.memory_space<vmem>>, vector<1x32x1xf32>
    %26 = vector.broadcast %25 : vector<1x32x1xf32> to vector<4x32x32xf32>
    %27 = arith.addf %24, %26 : vector<4x32x32xf32>
    %cst_18 = arith.constant 0.000000e+00 : f32
    %28 = vector.broadcast %cst_18 : f32 to vector<4x32x32xf32>
    %29 = arith.maximumf %27, %28 : vector<4x32x32xf32>
    %30 = arith.truncf %29 : vector<4x32x32xf32> to vector<4x32x32xbf16>
    %c0_19 = arith.constant 0 : index
    %c0_20 = arith.constant 0 : index
    %c0_21 = arith.constant 0 : index
    %31 = vector.load %arg4[%c0_19, %c0_20, %c0_21] : memref<4x32x32xbf16, #tpu.memory_space<vmem>>, vector<4x32x32xbf16>
    tpu.vector_store %arg4[%c0_19, %c0_20, %c0_21], %30 {strides = array<i32>} : memref<4x32x32xbf16, #tpu.memory_space<vmem>>, vector<4x32x32xbf16>,
    return
  }
}

module attributes {stable_mosaic.version = 11 : i64} {
  func.func @_convt_bn_relu_kernel(%arg0: memref<4x128x128xbf16, #tpu.memory_space<vmem>>, %arg1: memref<4x16x128xbf16, #tpu.memory_space<vmem>>, %arg2: memref<1x16x1xf32, #tpu.memory_space<vmem>>, %arg3: memref<1x16x1xf32, #tpu.memory_space<vmem>>, %arg4: memref<4x16x128xbf16, #tpu.memory_space<vmem>>) attributes {dimension_semantics = [], scalar_prefetch = 0 : i64, scratch_operands = 0 : i64, tpu.core_type = #tpu.core_type<tc>} {
    %c0 = arith.constant 0 : index
    %c0_0 = arith.constant 0 : index
    %c0_1 = arith.constant 0 : index
    %0 = vector.load %arg1[%c0, %c0_0, %c0_1] : memref<4x16x128xbf16, #tpu.memory_space<vmem>>, vector<4x16x128xbf16>
    %c0_2 = arith.constant 0 : index
    %c0_3 = arith.constant 0 : index
    %c0_4 = arith.constant 0 : index
    %1 = vector.load %arg0[%c0_2, %c0_3, %c0_4] : memref<4x128x128xbf16, #tpu.memory_space<vmem>>, vector<4x128x128xbf16>
    "tpu.trace_start"() <{level = 10 : i32, message = "pck,pkm->pcm"}> : () -> ()
    %cst = arith.constant dense<0.000000e+00> : vector<4x16x128xf32>
    %2 = tpu.matmul %0, %1, %cst {dimension_numbers = #tpu.dot_dimension_numbers<[2], [1], [1], [2], [0, 0, 0, 1, 1, 2], [0], [0]>} : vector<4x16x128xbf16>, vector<4x128x128xbf16>, vector<4x16x128xf32> -> vector<4x16x128xf32>
    "tpu.trace_stop"() : () -> ()
    %cst_5 = arith.constant dense<0.000000e+00> : vector<4x16xf32>
    %3 = vector.multi_reduction <add>, %2, %cst_5 [2] : vector<4x16x128xf32> to vector<4x16xf32>
    %4 = vector.shape_cast %3 : vector<4x16xf32> to vector<4x16x1xf32>
    %cst_6 = arith.constant dense<0.000000e+00> : vector<16x1xf32>
    %5 = vector.multi_reduction <add>, %4, %cst_6 [0] : vector<4x16x1xf32> to vector<16x1xf32>
    %6 = vector.shape_cast %5 : vector<16x1xf32> to vector<1x16x1xf32>
    %cst_7 = arith.constant 0.001953125 : f32
    %7 = vector.broadcast %cst_7 : f32 to vector<1x16x1xf32>
    %8 = arith.mulf %6, %7 : vector<1x16x1xf32>
    %9 = vector.broadcast %8 : vector<1x16x1xf32> to vector<4x16x128xf32>
    %10 = arith.subf %2, %9 : vector<4x16x128xf32>
    %11 = arith.mulf %10, %10 : vector<4x16x128xf32>
    %cst_8 = arith.constant dense<0.000000e+00> : vector<4x16xf32>
    %12 = vector.multi_reduction <add>, %11, %cst_8 [2] : vector<4x16x128xf32> to vector<4x16xf32>
    %13 = vector.shape_cast %12 : vector<4x16xf32> to vector<4x16x1xf32>
    %cst_9 = arith.constant dense<0.000000e+00> : vector<16x1xf32>
    %14 = vector.multi_reduction <add>, %13, %cst_9 [0] : vector<4x16x1xf32> to vector<16x1xf32>
    %15 = vector.shape_cast %14 : vector<16x1xf32> to vector<1x16x1xf32>
    %cst_10 = arith.constant 0.001953125 : f32
    %16 = vector.broadcast %cst_10 : f32 to vector<1x16x1xf32>
    %17 = arith.mulf %15, %16 : vector<1x16x1xf32>
    %cst_11 = arith.constant 9.99999974E-6 : f32
    %18 = vector.broadcast %cst_11 : f32 to vector<1x16x1xf32>
    %19 = arith.addf %17, %18 : vector<1x16x1xf32>
    %20 = math.rsqrt %19 : vector<1x16x1xf32>
    %c0_12 = arith.constant 0 : index
    %c0_13 = arith.constant 0 : index
    %c0_14 = arith.constant 0 : index
    %21 = vector.load %arg2[%c0_12, %c0_13, %c0_14] : memref<1x16x1xf32, #tpu.memory_space<vmem>>, vector<1x16x1xf32>
    %22 = arith.mulf %20, %21 : vector<1x16x1xf32>
    %23 = vector.broadcast %22 : vector<1x16x1xf32> to vector<4x16x128xf32>
    %24 = arith.mulf %10, %23 : vector<4x16x128xf32>
    %c0_15 = arith.constant 0 : index
    %c0_16 = arith.constant 0 : index
    %c0_17 = arith.constant 0 : index
    %25 = vector.load %arg3[%c0_15, %c0_16, %c0_17] : memref<1x16x1xf32, #tpu.memory_space<vmem>>, vector<1x16x1xf32>
    %26 = vector.broadcast %25 : vector<1x16x1xf32> to vector<4x16x128xf32>
    %27 = arith.addf %24, %26 : vector<4x16x128xf32>
    %cst_18 = arith.constant 0.000000e+00 : f32
    %28 = vector.broadcast %cst_18 : f32 to vector<4x16x128xf32>
    %29 = arith.maximumf %27, %28 : vector<4x16x128xf32>
    %30 = arith.truncf %29 : vector<4x16x128xf32> to vector<4x16x128xbf16>
    %c0_19 = arith.constant 0 : index
    %c0_20 = arith.constant 0 : index
    %c0_21 = arith.constant 0 : index
    %31 = vector.load %arg4[%c0_19, %c0_20, %c0_21] : memref<4x16x128xbf16, #tpu.memory_space<vmem>>, vector<4x16x128xbf16>
    tpu.vector_store %arg4[%c0_19, %c0_20, %c0_21], %30 {strides = array<i32>} : memref<4x16x128xbf16, #tpu.memory_space<vmem>>, vector<4x16x128xbf16>,
    return
  }
}

module attributes {stable_mosaic.version = 11 : i64} {
  func.func @_convt_bn_relu_kernel(%arg0: memref<4x64x512xbf16, #tpu.memory_space<vmem>>, %arg1: memref<4x8x64xbf16, #tpu.memory_space<vmem>>, %arg2: memref<1x8x1xf32, #tpu.memory_space<vmem>>, %arg3: memref<1x8x1xf32, #tpu.memory_space<vmem>>, %arg4: memref<4x8x512xbf16, #tpu.memory_space<vmem>>) attributes {dimension_semantics = [], scalar_prefetch = 0 : i64, scratch_operands = 0 : i64, tpu.core_type = #tpu.core_type<tc>} {
    %c0 = arith.constant 0 : index
    %c0_0 = arith.constant 0 : index
    %c0_1 = arith.constant 0 : index
    %0 = vector.load %arg1[%c0, %c0_0, %c0_1] : memref<4x8x64xbf16, #tpu.memory_space<vmem>>, vector<4x8x64xbf16>
    %c0_2 = arith.constant 0 : index
    %c0_3 = arith.constant 0 : index
    %c0_4 = arith.constant 0 : index
    %1 = vector.load %arg0[%c0_2, %c0_3, %c0_4] : memref<4x64x512xbf16, #tpu.memory_space<vmem>>, vector<4x64x512xbf16>
    "tpu.trace_start"() <{level = 10 : i32, message = "pck,pkm->pcm"}> : () -> ()
    %cst = arith.constant dense<0.000000e+00> : vector<4x8x512xf32>
    %2 = tpu.matmul %0, %1, %cst {dimension_numbers = #tpu.dot_dimension_numbers<[2], [1], [1], [2], [0, 0, 0, 1, 1, 2], [0], [0]>} : vector<4x8x64xbf16>, vector<4x64x512xbf16>, vector<4x8x512xf32> -> vector<4x8x512xf32>
    "tpu.trace_stop"() : () -> ()
    %cst_5 = arith.constant dense<0.000000e+00> : vector<4x8xf32>
    %3 = vector.multi_reduction <add>, %2, %cst_5 [2] : vector<4x8x512xf32> to vector<4x8xf32>
    %4 = vector.shape_cast %3 : vector<4x8xf32> to vector<4x8x1xf32>
    %cst_6 = arith.constant dense<0.000000e+00> : vector<8x1xf32>
    %5 = vector.multi_reduction <add>, %4, %cst_6 [0] : vector<4x8x1xf32> to vector<8x1xf32>
    %6 = vector.shape_cast %5 : vector<8x1xf32> to vector<1x8x1xf32>
    %cst_7 = arith.constant 4.8828125E-4 : f32
    %7 = vector.broadcast %cst_7 : f32 to vector<1x8x1xf32>
    %8 = arith.mulf %6, %7 : vector<1x8x1xf32>
    %9 = vector.broadcast %8 : vector<1x8x1xf32> to vector<4x8x512xf32>
    %10 = arith.subf %2, %9 : vector<4x8x512xf32>
    %11 = arith.mulf %10, %10 : vector<4x8x512xf32>
    %cst_8 = arith.constant dense<0.000000e+00> : vector<4x8xf32>
    %12 = vector.multi_reduction <add>, %11, %cst_8 [2] : vector<4x8x512xf32> to vector<4x8xf32>
    %13 = vector.shape_cast %12 : vector<4x8xf32> to vector<4x8x1xf32>
    %cst_9 = arith.constant dense<0.000000e+00> : vector<8x1xf32>
    %14 = vector.multi_reduction <add>, %13, %cst_9 [0] : vector<4x8x1xf32> to vector<8x1xf32>
    %15 = vector.shape_cast %14 : vector<8x1xf32> to vector<1x8x1xf32>
    %cst_10 = arith.constant 4.8828125E-4 : f32
    %16 = vector.broadcast %cst_10 : f32 to vector<1x8x1xf32>
    %17 = arith.mulf %15, %16 : vector<1x8x1xf32>
    %cst_11 = arith.constant 9.99999974E-6 : f32
    %18 = vector.broadcast %cst_11 : f32 to vector<1x8x1xf32>
    %19 = arith.addf %17, %18 : vector<1x8x1xf32>
    %20 = math.rsqrt %19 : vector<1x8x1xf32>
    %c0_12 = arith.constant 0 : index
    %c0_13 = arith.constant 0 : index
    %c0_14 = arith.constant 0 : index
    %21 = vector.load %arg2[%c0_12, %c0_13, %c0_14] : memref<1x8x1xf32, #tpu.memory_space<vmem>>, vector<1x8x1xf32>
    %22 = arith.mulf %20, %21 : vector<1x8x1xf32>
    %23 = vector.broadcast %22 : vector<1x8x1xf32> to vector<4x8x512xf32>
    %24 = arith.mulf %10, %23 : vector<4x8x512xf32>
    %c0_15 = arith.constant 0 : index
    %c0_16 = arith.constant 0 : index
    %c0_17 = arith.constant 0 : index
    %25 = vector.load %arg3[%c0_15, %c0_16, %c0_17] : memref<1x8x1xf32, #tpu.memory_space<vmem>>, vector<1x8x1xf32>
    %26 = vector.broadcast %25 : vector<1x8x1xf32> to vector<4x8x512xf32>
    %27 = arith.addf %24, %26 : vector<4x8x512xf32>
    %cst_18 = arith.constant 0.000000e+00 : f32
    %28 = vector.broadcast %cst_18 : f32 to vector<4x8x512xf32>
    %29 = arith.maximumf %27, %28 : vector<4x8x512xf32>
    %30 = arith.truncf %29 : vector<4x8x512xf32> to vector<4x8x512xbf16>
    %c0_19 = arith.constant 0 : index
    %c0_20 = arith.constant 0 : index
    %c0_21 = arith.constant 0 : index
    %31 = vector.load %arg4[%c0_19, %c0_20, %c0_21] : memref<4x8x512xbf16, #tpu.memory_space<vmem>>, vector<4x8x512xbf16>
    tpu.vector_store %arg4[%c0_19, %c0_20, %c0_21], %30 {strides = array<i32>} : memref<4x8x512xbf16, #tpu.memory_space<vmem>>, vector<4x8x512xbf16>,
    return
  }
}

module attributes {stable_mosaic.version = 11 : i64} {
  func.func @_convt_tanh_kernel(%arg0: i32, %arg1: memref<4x32x2048xbf16, #tpu.memory_space<vmem>>, %arg2: memref<4x3x32xbf16, #tpu.memory_space<vmem>>, %arg3: memref<4x3x2048xf32, #tpu.memory_space<vmem>>) attributes {dimension_semantics = [#tpu.dimension_semantics<parallel>], iteration_bounds = array<i64: 1>, scalar_prefetch = 0 : i64, scratch_operands = 0 : i64, tpu.core_type = #tpu.core_type<tc>, window_params = [{transform_indices = @transform_0, window_bounds = array<i64: 4, 32, 2048>}, {pipeline_mode = #tpu.pipeline_mode<synchronous>, transform_indices = @transform_1, window_bounds = array<i64: 4, 3, 32>}, {transform_indices = @transform_2, window_bounds = array<i64: 4, 3, 2048>}]} {
    %c0 = arith.constant 0 : index
    %c0_0 = arith.constant 0 : index
    %c0_1 = arith.constant 0 : index
    %0 = vector.load %arg2[%c0, %c0_0, %c0_1] : memref<4x3x32xbf16, #tpu.memory_space<vmem>>, vector<4x3x32xbf16>
    %c0_2 = arith.constant 0 : index
    %c0_3 = arith.constant 0 : index
    %c0_4 = arith.constant 0 : index
    %1 = vector.load %arg1[%c0_2, %c0_3, %c0_4] : memref<4x32x2048xbf16, #tpu.memory_space<vmem>>, vector<4x32x2048xbf16>
    "tpu.trace_start"() <{level = 10 : i32, message = "pck,pkm->pcm"}> : () -> ()
    %cst = arith.constant dense<0.000000e+00> : vector<4x3x2048xf32>
    %2 = tpu.matmul %0, %1, %cst {dimension_numbers = #tpu.dot_dimension_numbers<[2], [1], [1], [2], [0, 0, 0, 1, 1, 2], [0], [0]>} : vector<4x3x32xbf16>, vector<4x32x2048xbf16>, vector<4x3x2048xf32> -> vector<4x3x2048xf32>
    "tpu.trace_stop"() : () -> ()
    %3 = math.tanh %2 : vector<4x3x2048xf32>
    %c0_5 = arith.constant 0 : index
    %c0_6 = arith.constant 0 : index
    %c0_7 = arith.constant 0 : index
    %4 = vector.load %arg3[%c0_5, %c0_6, %c0_7] : memref<4x3x2048xf32, #tpu.memory_space<vmem>>, vector<4x3x2048xf32>
    tpu.vector_store %arg3[%c0_5, %c0_6, %c0_7], %3 {strides = array<i32>} : memref<4x3x2048xf32, #tpu.memory_space<vmem>>, vector<4x3x2048xf32>,
    return
  }
  func.func @transform_0(%arg0: i32) -> (i32, i32, i32) {
    %c0_i32 = arith.constant 0 : i32
    %c0_i32_0 = arith.constant 0 : i32
    %c0_i32_1 = arith.constant 0 : i32
    return %c0_i32, %c0_i32_0, %arg0 : i32, i32, i32
  }
  func.func @transform_1(%arg0: i32) -> (i32, i32, i32) {
    %c0_i32 = arith.constant 0 : i32
    %c0_i32_0 = arith.constant 0 : i32
    %c0_i32_1 = arith.constant 0 : i32
    %c0_i32_2 = arith.constant 0 : i32
    return %c0_i32, %c0_i32_0, %c0_i32_1 : i32, i32, i32
  }
  func.func @transform_2(%arg0: i32) -> (i32, i32, i32) {
    %c0_i32 = arith.constant 0 : i32
    %c0_i32_0 = arith.constant 0 : i32
    %c0_i32_1 = arith.constant 0 : i32
    return %c0_i32, %c0_i32_0, %arg0 : i32, i32, i32
  }
}

</mosaic_0001>

<llo_original>
// kernel: generator_forward.5
$region0: #{generator_forward.5}
  #allocation0 [shape = 'u32[]', space=smem, size = 0x4, offset = 0x4, fixed_abs, tag = 'smem constant byte address 0x4 - core index']
  #allocation1 [shape = 'u32[72,128]{1,0:T(1,128)}', space=vmem, size = 0x9000, scoped, tag = 'internal scratch']
  %s0 = inlined_call_operand.vmem [shape: bf16[1,512,32], index: 0, kind: input, shape index: {}]
  %s1 = inlined_call_operand.vmem [shape: bf16[1,64,512], index: 1, kind: input, shape index: {}]
  %s2 = inlined_call_operand.vmem [shape: f32[1,64,1], index: 2, kind: input, shape index: {}]
  %s3 = inlined_call_operand.vmem [shape: f32[1,64,1], index: 3, kind: input, shape index: {}]
  %s4 = inlined_call_operand.vmem [shape: bf16[1,64,32], index: 4, kind: output, shape index: {}]
  %s5 = sld [smem:[#allocation0]]
  $region26: #{generator_forward.5} parent=0
    _
  %s7 = ssub.s32 1, %s5
  %s8 = scalar_select 0, %s7, %s5
  // Predicated region
  $region2: #{generator_forward.5} parent=0 // pred_check
    _
  $region3: #{generator_forward.5} parent=0 // pred_check_branch
    %10 = sbr.rel (0) target = $region5
  $region4: #{generator_forward.5} parent=0 // pred_region
    _
  $region5: #{generator_forward.5} parent=0 // pred_fallthru
    _
  // Predicated region
  $region6: #{generator_forward.5} parent=0 // pred_check
    _
  $region7: #{generator_forward.5} parent=0 // pred_check_branch
    %12 = sbr.rel (0) target = $region9
  $region8: #{generator_forward.5} parent=0 // pred_region
    _
  $region9: #{generator_forward.5} parent=0 // pred_fallthru
    _
  // Predicated region
  $region10: #{generator_forward.5} parent=0 // pred_check
    _
  $region11: #{generator_forward.5} parent=0 // pred_check_branch
    %14 = sbr.rel (0) target = $region13
  $region12: #{generator_forward.5} parent=0 // pred_region
    _
  $region13: #{generator_forward.5} parent=0 // pred_fallthru
    _
  // Predicated region
  $region14: #{generator_forward.5} parent=0 // pred_check
    _
  $region15: #{generator_forward.5} parent=0 // pred_check_branch
    %16 = sbr.rel (0) target = $region17
  $region16: #{generator_forward.5} parent=0 // pred_region
    _
  $region17: #{generator_forward.5} parent=0 // pred_fallthru
    _
  %v17 = vld [vmem:[%s1] sm:$0xff]
  %v18 = vld [vmem:[%s1 + $0x8] sm:$0xff]
  %v19 = vld [vmem:[%s1 + $0x10] sm:$0xff]
  %v20 = vld [vmem:[%s1 + $0x18] sm:$0xff]
  %v21 = vld [vmem:[%s1 + $0x20] sm:$0xff]
  %v22 = vld [vmem:[%s1 + $0x28] sm:$0xff]
  %v23 = vld [vmem:[%s1 + $0x30] sm:$0xff]
  %v24 = vld [vmem:[%s1 + $0x38] sm:$0xff]
  %v25 = vld [vmem:[%s1 + $0x40] sm:$0xff]
  %v26 = vld [vmem:[%s1 + $0x48] sm:$0xff]
  %v27 = vld [vmem:[%s1 + $0x50] sm:$0xff]
  %v28 = vld [vmem:[%s1 + $0x58] sm:$0xff]
  %v29 = vld [vmem:[%s1 + $0x60] sm:$0xff]
  %v30 = vld [vmem:[%s1 + $0x68] sm:$0xff]
  %v31 = vld [vmem:[%s1 + $0x70] sm:$0xff]
  %v32 = vld [vmem:[%s1 + $0x78] sm:$0xff]
  %v33 = vld [vmem:[%s0] sm:$0xf]
  %v34 = vld [vmem:[%s0 + $0x4] sm:$0xf]
  %v35 = vld [vmem:[%s0 + $0x8] sm:$0xf]
  %v36 = vld [vmem:[%s0 + $0xc] sm:$0xf]
  %v37 = vld [vmem:[%s0 + $0x10] sm:$0xf]
  %v38 = vld [vmem:[%s0 + $0x14] sm:$0xf]
  %v39 = vld [vmem:[%s0 + $0x18] sm:$0xf]
  %v40 = vld [vmem:[%s0 + $0x1c] sm:$0xf]
  %v41 = vld [vmem:[%s0 + $0x20] sm:$0xf]
  %v42 = vld [vmem:[%s0 + $0x24] sm:$0xf]
  %v43 = vld [vmem:[%s0 + $0x28] sm:$0xf]
  %v44 = vld [vmem:[%s0 + $0x2c] sm:$0xf]
  %v45 = vld [vmem:[%s0 + $0x30] sm:$0xf]
  %v46 = vld [vmem:[%s0 + $0x34] sm:$0xf]
  %v47 = vld [vmem:[%s0 + $0x38] sm:$0xf]
  %v48 = vld [vmem:[%s0 + $0x3c] sm:$0xf]
  %v49 = vld [vmem:[%s0 + $0x40] sm:$0xf]
  %v50 = vld [vmem:[%s0 + $0x44] sm:$0xf]
  %v51 = vld [vmem:[%s0 + $0x48] sm:$0xf]
  %v52 = vld [vmem:[%s0 + $0x4c] sm:$0xf]
  %v53 = vld [vmem:[%s0 + $0x50] sm:$0xf]
  %v54 = vld [vmem:[%s0 + $0x54] sm:$0xf]
  %v55 = vld [vmem:[%s0 + $0x58] sm:$0xf]
  %v56 = vld [vmem:[%s0 + $0x5c] sm:$0xf]
  %v57 = vld [vmem:[%s0 + $0x60] sm:$0xf]
  %v58 = vld [vmem:[%s0 + $0x64] sm:$0xf]
  %v59 = vld [vmem:[%s0 + $0x68] sm:$0xf]
  %v60 = vld [vmem:[%s0 + $0x6c] sm:$0xf]
  %v61 = vld [vmem:[%s0 + $0x70] sm:$0xf]
  %v62 = vld [vmem:[%s0 + $0x74] sm:$0xf]
  %v63 = vld [vmem:[%s0 + $0x78] sm:$0xf]
  %v64 = vld [vmem:[%s0 + $0x7c] sm:$0xf]
  %v65 = vld [vmem:[%s0 + $0x80] sm:$0xf]
  %v66 = vld [vmem:[%s0 + $0x84] sm:$0xf]
  %v67 = vld [vmem:[%s0 + $0x88] sm:$0xf]
  %v68 = vld [vmem:[%s0 + $0x8c] sm:$0xf]
  %v69 = vld [vmem:[%s0 + $0x90] sm:$0xf]
  %v70 = vld [vmem:[%s0 + $0x94] sm:$0xf]
  %v71 = vld [vmem:[%s0 + $0x98] sm:$0xf]
  %v72 = vld [vmem:[%s0 + $0x9c] sm:$0xf]
  %v73 = vld [vmem:[%s0 + $0xa0] sm:$0xf]
  %v74 = vld [vmem:[%s0 + $0xa4] sm:$0xf]
  %v75 = vld [vmem:[%s0 + $0xa8] sm:$0xf]
  %v76 = vld [vmem:[%s0 + $0xac] sm:$0xf]
  %v77 = vld [vmem:[%s0 + $0xb0] sm:$0xf]
  %v78 = vld [vmem:[%s0 + $0xb4] sm:$0xf]
  %v79 = vld [vmem:[%s0 + $0xb8] sm:$0xf]
  %v80 = vld [vmem:[%s0 + $0xbc] sm:$0xf]
  %v81 = vld [vmem:[%s0 + $0xc0] sm:$0xf]
  %v82 = vld [vmem:[%s0 + $0xc4] sm:$0xf]
  %v83 = vld [vmem:[%s0 + $0xc8] sm:$0xf]
  %v84 = vld [vmem:[%s0 + $0xcc] sm:$0xf]
  %v85 = vld [vmem:[%s0 + $0xd0] sm:$0xf]
  %v86 = vld [vmem:[%s0 + $0xd4] sm:$0xf]
  %v87 = vld [vmem:[%s0 + $0xd8] sm:$0xf]
  %v88 = vld [vmem:[%s0 + $0xdc] sm:$0xf]
  %v89 = vld [vmem:[%s0 + $0xe0] sm:$0xf]
  %v90 = vld [vmem:[%s0 + $0xe4] sm:$0xf]
  %v91 = vld [vmem:[%s0 + $0xe8] sm:$0xf]
  %v92 = vld [vmem:[%s0 + $0xec] sm:$0xf]
  %v93 = vld [vmem:[%s0 + $0xf0] sm:$0xf]
  %v94 = vld [vmem:[%s0 + $0xf4] sm:$0xf]
  %v95 = vld [vmem:[%s0 + $0xf8] sm:$0xf]
  %v96 = vld [vmem:[%s0 + $0xfc] sm:$0xf]
  %v113 = vunpack.c.l.b16 %v17
  %v114 = vunpack.c.h.b16 %v17
  %v115 = vunpack.c.l.b16 %v18
  %v116 = vunpack.c.h.b16 %v18
  %v117 = vunpack.c.l.b16 %v19
  %v118 = vunpack.c.h.b16 %v19
  %v119 = vunpack.c.l.b16 %v20
  %v120 = vunpack.c.h.b16 %v20
  %v121 = vunpack.c.l.b16 %v21
  %v122 = vunpack.c.h.b16 %v21
  %v123 = vunpack.c.l.b16 %v22
  %v124 = vunpack.c.h.b16 %v22
  %v125 = vunpack.c.l.b16 %v23
  %v126 = vunpack.c.h.b16 %v23
  %v127 = vunpack.c.l.b16 %v24
  %v128 = vunpack.c.h.b16 %v24
  %v129 = vunpack.c.l.b16 %v25
  %v130 = vunpack.c.h.b16 %v25
  %v131 = vunpack.c.l.b16 %v26
  %v132 = vunpack.c.h.b16 %v26
  %v133 = vunpack.c.l.b16 %v27
  %v134 = vunpack.c.h.b16 %v27
  %v135 = vunpack.c.l.b16 %v28
  %v136 = vunpack.c.h.b16 %v28
  %v137 = vunpack.c.l.b16 %v29
  %v138 = vunpack.c.h.b16 %v29
  %v139 = vunpack.c.l.b16 %v30
  %v140 = vunpack.c.h.b16 %v30
  %v141 = vunpack.c.l.b16 %v31
  %v142 = vunpack.c.h.b16 %v31
  %v143 = vunpack.c.l.b16 %v32
  %v144 = vunpack.c.h.b16 %v32
  %v145 = vpack.c.b16 %v117, %v113
  %v146 = vpack.c.b16 %v118, %v114
  %v147 = vpack.c.b16 %v119, %v115
  %v148 = vpack.c.b16 %v120, %v116
  %v149 = vpack.c.b16 %v125, %v121
  %v150 = vpack.c.b16 %v126, %v122
  %v151 = vpack.c.b16 %v127, %v123
  %v152 = vpack.c.b16 %v128, %v124
  %v153 = vpack.c.b16 %v133, %v129
  %v154 = vpack.c.b16 %v134, %v130
  %v155 = vpack.c.b16 %v135, %v131
  %v156 = vpack.c.b16 %v136, %v132
  %v157 = vpack.c.b16 %v141, %v137
  %v158 = vpack.c.b16 %v142, %v138
  %v159 = vpack.c.b16 %v143, %v139
  %v160 = vpack.c.b16 %v144, %v140
  %v241 = vunpack.c.l.b16 %v33
  %v242 = vunpack.c.l.b16 %v34
  %v243 = vunpack.c.l.b16 %v35
  %v244 = vunpack.c.l.b16 %v36
  %v245 = vunpack.c.l.b16 %v37
  %v246 = vunpack.c.l.b16 %v38
  %v247 = vunpack.c.l.b16 %v39
  %v248 = vunpack.c.l.b16 %v40
  %v249 = vunpack.c.l.b16 %v41
  %v250 = vunpack.c.l.b16 %v42
  %v251 = vunpack.c.l.b16 %v43
  %v252 = vunpack.c.l.b16 %v44
  %v253 = vunpack.c.l.b16 %v45
  %v254 = vunpack.c.l.b16 %v46
  %v255 = vunpack.c.l.b16 %v47
  %v256 = vunpack.c.l.b16 %v48
  %v257 = vunpack.c.l.b16 %v49
  %v258 = vunpack.c.l.b16 %v50
  %v259 = vunpack.c.l.b16 %v51
  %v260 = vunpack.c.l.b16 %v52
  %v261 = vunpack.c.l.b16 %v53
  %v262 = vunpack.c.l.b16 %v54
  %v263 = vunpack.c.l.b16 %v55
  %v264 = vunpack.c.l.b16 %v56
  %v265 = vunpack.c.l.b16 %v57
  %v266 = vunpack.c.l.b16 %v58
  %v267 = vunpack.c.l.b16 %v59
  %v268 = vunpack.c.l.b16 %v60
  %v269 = vunpack.c.l.b16 %v61
  %v270 = vunpack.c.l.b16 %v62
  %v271 = vunpack.c.l.b16 %v63
  %v272 = vunpack.c.l.b16 %v64
  %v273 = vunpack.c.l.b16 %v65
  %v274 = vunpack.c.l.b16 %v66
  %v275 = vunpack.c.l.b16 %v67
  %v276 = vunpack.c.l.b16 %v68
  %v277 = vunpack.c.l.b16 %v69
  %v278 = vunpack.c.l.b16 %v70
  %v279 = vunpack.c.l.b16 %v71
  %v280 = vunpack.c.l.b16 %v72
  %v281 = vunpack.c.l.b16 %v73
  %v282 = vunpack.c.l.b16 %v74
  %v283 = vunpack.c.l.b16 %v75
  %v284 = vunpack.c.l.b16 %v76
  %v285 = vunpack.c.l.b16 %v77
  %v286 = vunpack.c.l.b16 %v78
  %v287 = vunpack.c.l.b16 %v79
  %v288 = vunpack.c.l.b16 %v80
  %v289 = vunpack.c.l.b16 %v81
  %v290 = vunpack.c.l.b16 %v82
  %v291 = vunpack.c.l.b16 %v83
  %v292 = vunpack.c.l.b16 %v84
  %v293 = vunpack.c.l.b16 %v85
  %v294 = vunpack.c.l.b16 %v86
  %v295 = vunpack.c.l.b16 %v87
  %v296 = vunpack.c.l.b16 %v88
  %v297 = vunpack.c.l.b16 %v89
  %v298 = vunpack.c.l.b16 %v90
  %v299 = vunpack.c.l.b16 %v91
  %v300 = vunpack.c.l.b16 %v92
  %v301 = vunpack.c.l.b16 %v93
  %v302 = vunpack.c.l.b16 %v94
  %v303 = vunpack.c.l.b16 %v95
  %v304 = vunpack.c.l.b16 %v96
  %v305 = vpack.c.b16 %v242, %v241
  %v306 = vpack.c.b16 %v244, %v243
  %v307 = vpack.c.b16 %v246, %v245
  %v308 = vpack.c.b16 %v248, %v247
  %v309 = vpack.c.b16 %v250, %v249
  %v310 = vpack.c.b16 %v252, %v251
  %v311 = vpack.c.b16 %v254, %v253
  %v312 = vpack.c.b16 %v256, %v255
  %v313 = vpack.c.b16 %v258, %v257
  %v314 = vpack.c.b16 %v260, %v259
  %v315 = vpack.c.b16 %v262, %v261
  %v316 = vpack.c.b16 %v264, %v263
  %v317 = vpack.c.b16 %v266, %v265
  %v318 = vpack.c.b16 %v268, %v267
  %v319 = vpack.c.b16 %v270, %v269
  %v320 = vpack.c.b16 %v272, %v271
  %v321 = vpack.c.b16 %v274, %v273
  %v322 = vpack.c.b16 %v276, %v275
  %v323 = vpack.c.b16 %v278, %v277
  %v324 = vpack.c.b16 %v280, %v279
  %v325 = vpack.c.b16 %v282, %v281
  %v326 = vpack.c.b16 %v284, %v283
  %v327 = vpack.c.b16 %v286, %v285
  %v328 = vpack.c.b16 %v288, %v287
  %v329 = vpack.c.b16 %v290, %v289
  %v330 = vpack.c.b16 %v292, %v291
  %v331 = vpack.c.b16 %v294, %v293
  %v332 = vpack.c.b16 %v296, %v295
  %v333 = vpack.c.b16 %v298, %v297
  %v334 = vpack.c.b16 %v300, %v299
  %v335 = vpack.c.b16 %v302, %v301
  %v336 = vpack.c.b16 %v304, %v303
  %369 = vmatpush.bf16.msra.mxu0 %v312
  %370 = vmatpush.bf16.msra.mxu0 %v311
  %371 = vmatpush.bf16.msra.mxu0 %v310
  %372 = vmatpush.bf16.msra.mxu0 %v309
  %373 = vmatpush.bf16.msra.mxu0 %v308
  %374 = vmatpush.bf16.msra.mxu0 %v307
  %375 = vmatpush.bf16.msra.mxu0 %v306
  %376 = vmatpush.bf16.msra.mxu0 %v305
  %377 = vmatmul.bf16.gmra.mxu0 %v145
  %v378 = vpop.f32.mrf.mxu0
  %v379 = vadd.f32 0.0, %v378
  %v380 = vpop.f32.mrf.mxu0
  %v381 = vadd.f32 0.0, %v380
  %382 = vmatmul.bf16.gmra.mxu0 %v149
  %v383 = vpop.f32.mrf.mxu0
  %v384 = vadd.f32 0.0, %v383
  %v385 = vpop.f32.mrf.mxu0
  %v386 = vadd.f32 0.0, %v385
  %387 = vmatmul.bf16.gmra.mxu0 %v153
  %v388 = vpop.f32.mrf.mxu0
  %v389 = vadd.f32 0.0, %v388
  %v390 = vpop.f32.mrf.mxu0
  %v391 = vadd.f32 0.0, %v390
  %392 = vmatmul.bf16.gmra.mxu0 %v157
  %v393 = vpop.f32.mrf.mxu0
  %v394 = vadd.f32 0.0, %v393
  %v395 = vpop.f32.mrf.mxu0
  %v396 = vadd.f32 0.0, %v395
  %397 = vdwg.mxu0
  %398 = vmatpush.bf16.msra.mxu0 %v320
  %399 = vmatpush.bf16.msra.mxu0 %v319
  %400 = vmatpush.bf16.msra.mxu0 %v318
  %401 = vmatpush.bf16.msra.mxu0 %v317
  %402 = vmatpush.bf16.msra.mxu0 %v316
  %403 = vmatpush.bf16.msra.mxu0 %v315
  %404 = vmatpush.bf16.msra.mxu0 %v314
  %405 = vmatpush.bf16.msra.mxu0 %v313
  %406 = vmatmul.bf16.gmra.mxu0 %v146
  %v407 = vpop.f32.mrf.mxu0
  %v408 = vadd.f32 %v379, %v407
  %v409 = vpop.f32.mrf.mxu0
  %v410 = vadd.f32 %v381, %v409
  %411 = vmatmul.bf16.gmra.mxu0 %v150
  %v412 = vpop.f32.mrf.mxu0
  %v413 = vadd.f32 %v384, %v412
  %v414 = vpop.f32.mrf.mxu0
  %v415 = vadd.f32 %v386, %v414
  %416 = vmatmul.bf16.gmra.mxu0 %v154
  %v417 = vpop.f32.mrf.mxu0
  %v418 = vadd.f32 %v389, %v417
  %v419 = vpop.f32.mrf.mxu0
  %v420 = vadd.f32 %v391, %v419
  %421 = vmatmul.bf16.gmra.mxu0 %v158
  %v422 = vpop.f32.mrf.mxu0
  %v423 = vadd.f32 %v394, %v422
  %v424 = vpop.f32.mrf.mxu0
  %v425 = vadd.f32 %v396, %v424
  %426 = vdwg.mxu0
  %427 = vmatpush.bf16.msra.mxu0 %v328
  %428 = vmatpush.bf16.msra.mxu0 %v327
  %429 = vmatpush.bf16.msra.mxu0 %v326
  %430 = vmatpush.bf16.msra.mxu0 %v325
  %431 = vmatpush.bf16.msra.mxu0 %v324
  %432 = vmatpush.bf16.msra.mxu0 %v323
  %433 = vmatpush.bf16.msra.mxu0 %v322
  %434 = vmatpush.bf16.msra.mxu0 %v321
  %435 = vmatmul.bf16.gmra.mxu0 %v147
  %v436 = vpop.f32.mrf.mxu0
  %v437 = vadd.f32 %v408, %v436
  %v438 = vpop.f32.mrf.mxu0
  %v439 = vadd.f32 %v410, %v438
  %440 = vmatmul.bf16.gmra.mxu0 %v151
  %v441 = vpop.f32.mrf.mxu0
  %v442 = vadd.f32 %v413, %v441
  %v443 = vpop.f32.mrf.mxu0
  %v444 = vadd.f32 %v415, %v443
  %445 = vmatmul.bf16.gmra.mxu0 %v155
  %v446 = vpop.f32.mrf.mxu0
  %v447 = vadd.f32 %v418, %v446
  %v448 = vpop.f32.mrf.mxu0
  %v449 = vadd.f32 %v420, %v448
  %450 = vmatmul.bf16.gmra.mxu0 %v159
  %v451 = vpop.f32.mrf.mxu0
  %v452 = vadd.f32 %v423, %v451
  %v453 = vpop.f32.mrf.mxu0
  %v454 = vadd.f32 %v425, %v453
  %455 = vdwg.mxu0
  %456 = vmatpush.bf16.msra.mxu0 %v336
  %457 = vmatpush.bf16.msra.mxu0 %v335
  %458 = vmatpush.bf16.msra.mxu0 %v334
  %459 = vmatpush.bf16.msra.mxu0 %v333
  %460 = vmatpush.bf16.msra.mxu0 %v332
  %461 = vmatpush.bf16.msra.mxu0 %v331
  %462 = vmatpush.bf16.msra.mxu0 %v330
  %463 = vmatpush.bf16.msra.mxu0 %v329
  %464 = vmatmul.bf16.gmra.mxu0 %v148
  %v465 = vpop.f32.mrf.mxu0
  %v466 = vadd.f32 %v437, %v465
  %v467 = vpop.f32.mrf.mxu0
  %v468 = vadd.f32 %v439, %v467
  %469 = vmatmul.bf16.gmra.mxu0 %v152
  %v470 = vpop.f32.mrf.mxu0
  %v471 = vadd.f32 %v442, %v470
  %v472 = vpop.f32.mrf.mxu0
  %v473 = vadd.f32 %v444, %v472
  %474 = vmatmul.bf16.gmra.mxu0 %v156
  %v475 = vpop.f32.mrf.mxu0
  %v476 = vadd.f32 %v447, %v475
  %v477 = vpop.f32.mrf.mxu0
  %v478 = vadd.f32 %v449, %v477
  %479 = vmatmul.bf16.gmra.mxu0 %v160
  %v480 = vpop.f32.mrf.mxu0
  %v481 = vadd.f32 %v452, %v480
  %v482 = vpop.f32.mrf.mxu0
  %v483 = vadd.f32 %v454, %v482
  %484 = vdwg.mxu0
  %vm485 = vcmask 261120
  %v486 = vsel %vm485, %v466, 0.0
  %487 = vadd.xlane.f32.xlu0 %v486
  %v488 = vpop.xlane.xlu0 %487
  %v489 = vsel %vm485, %v468, 0.0
  %490 = vadd.xlane.f32.xlu0 %v489
  %v491 = vpop.xlane.xlu0 %490
  %v492 = vsel %vm485, %v471, 0.0
  %493 = vadd.xlane.f32.xlu0 %v492
  %v494 = vpop.xlane.xlu0 %493
  %v495 = vsel %vm485, %v473, 0.0
  %496 = vadd.xlane.f32.xlu0 %v495
  %v497 = vpop.xlane.xlu0 %496
  %v498 = vsel %vm485, %v476, 0.0
  %499 = vadd.xlane.f32.xlu0 %v498
  %v500 = vpop.xlane.xlu0 %499
  %v501 = vsel %vm485, %v478, 0.0
  %502 = vadd.xlane.f32.xlu0 %v501
  %v503 = vpop.xlane.xlu0 %502
  %v504 = vsel %vm485, %v481, 0.0
  %505 = vadd.xlane.f32.xlu0 %v504
  %v506 = vpop.xlane.xlu0 %505
  %v507 = vsel %vm485, %v483, 0.0
  %508 = vadd.xlane.f32.xlu0 %v507
  %v509 = vpop.xlane.xlu0 %508
  %v510 = vadd.f32 %v488, 0.0
  %v511 = vadd.f32 %v491, 0.0
  %v512 = vadd.f32 %v494, 0.0
  %v513 = vadd.f32 %v497, 0.0
  %v514 = vadd.f32 %v500, 0.0
  %v515 = vadd.f32 %v503, 0.0
  %v516 = vadd.f32 %v506, 0.0
  %v517 = vadd.f32 %v509, 0.0
  %v518 = vmul.f32 %v510, 0.03125
  %v519 = vmul.f32 %v511, 0.03125
  %v520 = vmul.f32 %v512, 0.03125
  %v521 = vmul.f32 %v513, 0.03125
  %v522 = vmul.f32 %v514, 0.03125
  %v523 = vmul.f32 %v515, 0.03125
  %v524 = vmul.f32 %v516, 0.03125
  %v525 = vmul.f32 %v517, 0.03125
  %v526 = vsub.f32 %v466, %v518
  %v527 = vsub.f32 %v468, %v519
  %v528 = vsub.f32 %v471, %v520
  %v529 = vsub.f32 %v473, %v521
  %v530 = vsub.f32 %v476, %v522
  %v531 = vsub.f32 %v478, %v523
  %v532 = vsub.f32 %v481, %v524
  %v533 = vsub.f32 %v483, %v525
  %v534 = vmul.f32 %v526, %v526
  %v535 = vmul.f32 %v527, %v527
  %v536 = vmul.f32 %v528, %v528
  %v537 = vmul.f32 %v529, %v529
  %v538 = vmul.f32 %v530, %v530
  %v539 = vmul.f32 %v531, %v531
  %v540 = vmul.f32 %v532, %v532
  %v541 = vmul.f32 %v533, %v533
  %v542 = vsel %vm485, %v534, 0.0
  %543 = vadd.xlane.f32.xlu0 %v542
  %v544 = vpop.xlane.xlu0 %543
  %v545 = vsel %vm485, %v535, 0.0
  %546 = vadd.xlane.f32.xlu0 %v545
  %v547 = vpop.xlane.xlu0 %546
  %v548 = vsel %vm485, %v536, 0.0
  %549 = vadd.xlane.f32.xlu0 %v548
  %v550 = vpop.xlane.xlu0 %549
  %v551 = vsel %vm485, %v537, 0.0
  %552 = vadd.xlane.f32.xlu0 %v551
  %v553 = vpop.xlane.xlu0 %552
  %v554 = vsel %vm485, %v538, 0.0
  %555 = vadd.xlane.f32.xlu0 %v554
  %v556 = vpop.xlane.xlu0 %555
  %v557 = vsel %vm485, %v539, 0.0
  %558 = vadd.xlane.f32.xlu0 %v557
  %v559 = vpop.xlane.xlu0 %558
  %v560 = vsel %vm485, %v540, 0.0
  %561 = vadd.xlane.f32.xlu0 %v560
  %v562 = vpop.xlane.xlu0 %561
  %v563 = vsel %vm485, %v541, 0.0
  %564 = vadd.xlane.f32.xlu0 %v563
  %v565 = vpop.xlane.xlu0 %564
  %v566 = vadd.f32 %v544, 0.0
  %v567 = vadd.f32 %v547, 0.0
  %v568 = vadd.f32 %v550, 0.0
  %v569 = vadd.f32 %v553, 0.0
  %v570 = vadd.f32 %v556, 0.0
  %v571 = vadd.f32 %v559, 0.0
  %v572 = vadd.f32 %v562, 0.0
  %v573 = vadd.f32 %v565, 0.0
  %v574 = vmul.f32 %v566, 0.03125
  %v575 = vmul.f32 %v567, 0.03125
  %v576 = vmul.f32 %v568, 0.03125
  %v577 = vmul.f32 %v569, 0.03125
  %v578 = vmul.f32 %v570, 0.03125
  %v579 = vmul.f32 %v571, 0.03125
  %v580 = vmul.f32 %v572, 0.03125
  %v581 = vmul.f32 %v573, 0.03125
  %v582 = vadd.f32 %v574, 1e-05
  %v583 = vadd.f32 %v575, 1e-05
  %v584 = vadd.f32 %v576, 1e-05
  %v585 = vadd.f32 %v577, 1e-05
  %v586 = vadd.f32 %v578, 1e-05
  %v587 = vadd.f32 %v579, 1e-05
  %v588 = vadd.f32 %v580, 1e-05
  %v589 = vadd.f32 %v581, 1e-05
  %v590 = vrsqrt.pop %v582
  %v591 = vmul.f32 %v590, %v582
  %v592 = vmul.f32 %v591, %v590
  %v593 = vmul.f32 0.5, %v592
  %v594 = vsub.f32 1.5, %v593
  %v595 = vmul.f32 %v590, %v594
  %vm596 = vweird.f32 %v582
  %vm597 = vweird.f32 %v590
  %vm598 = vmor %vm596, %vm597
  %v599 = vsel %vm598, %v590, %v595
  %v600 = vrsqrt.pop %v583
  %v601 = vmul.f32 %v600, %v583
  %v602 = vmul.f32 %v601, %v600
  %v603 = vmul.f32 0.5, %v602
  %v604 = vsub.f32 1.5, %v603
  %v605 = vmul.f32 %v600, %v604
  %vm606 = vweird.f32 %v583
  %vm607 = vweird.f32 %v600
  %vm608 = vmor %vm606, %vm607
  %v609 = vsel %vm608, %v600, %v605
  %v610 = vrsqrt.pop %v584
  %v611 = vmul.f32 %v610, %v584
  %v612 = vmul.f32 %v611, %v610
  %v613 = vmul.f32 0.5, %v612
  %v614 = vsub.f32 1.5, %v613
  %v615 = vmul.f32 %v610, %v614
  %vm616 = vweird.f32 %v584
  %vm617 = vweird.f32 %v610
  %vm618 = vmor %vm616, %vm617
  %v619 = vsel %vm618, %v610, %v615
  %v620 = vrsqrt.pop %v585
  %v621 = vmul.f32 %v620, %v585
  %v622 = vmul.f32 %v621, %v620
  %v623 = vmul.f32 0.5, %v622
  %v624 = vsub.f32 1.5, %v623
  %v625 = vmul.f32 %v620, %v624
  %vm626 = vweird.f32 %v585
  %vm627 = vweird.f32 %v620
  %vm628 = vmor %vm626, %vm627
  %v629 = vsel %vm628, %v620, %v625
  %v630 = vrsqrt.pop %v586
  %v631 = vmul.f32 %v630, %v586
  %v632 = vmul.f32 %v631, %v630
  %v633 = vmul.f32 0.5, %v632
  %v634 = vsub.f32 1.5, %v633
  %v635 = vmul.f32 %v630, %v634
  %vm636 = vweird.f32 %v586
  %vm637 = vweird.f32 %v630
  %vm638 = vmor %vm636, %vm637
  %v639 = vsel %vm638, %v630, %v635
  %v640 = vrsqrt.pop %v587
  %v641 = vmul.f32 %v640, %v587
  %v642 = vmul.f32 %v641, %v640
  %v643 = vmul.f32 0.5, %v642
  %v644 = vsub.f32 1.5, %v643
  %v645 = vmul.f32 %v640, %v644
  %vm646 = vweird.f32 %v587
  %vm647 = vweird.f32 %v640
  %vm648 = vmor %vm646, %vm647
  %v649 = vsel %vm648, %v640, %v645
  %v650 = vrsqrt.pop %v588
  %v651 = vmul.f32 %v650, %v588
  %v652 = vmul.f32 %v651, %v650
  %v653 = vmul.f32 0.5, %v652
  %v654 = vsub.f32 1.5, %v653
  %v655 = vmul.f32 %v650, %v654
  %vm656 = vweird.f32 %v588
  %vm657 = vweird.f32 %v650
  %vm658 = vmor %vm656, %vm657
  %v659 = vsel %vm658, %v650, %v655
  %v660 = vrsqrt.pop %v589
  %v661 = vmul.f32 %v660, %v589
  %v662 = vmul.f32 %v661, %v660
  %v663 = vmul.f32 0.5, %v662
  %v664 = vsub.f32 1.5, %v663
  %v665 = vmul.f32 %v660, %v664
  %vm666 = vweird.f32 %v589
  %vm667 = vweird.f32 %v660
  %vm668 = vmor %vm666, %vm667
  %v669 = vsel %vm668, %v660, %v665
  %v670 = vld [vmem:[%s2] sm:$0xff]
  %v671 = vld [vmem:[%s2 + $0x8] sm:$0xff]
  %v672 = vld [vmem:[%s2 + $0x10] sm:$0xff]
  %v673 = vld [vmem:[%s2 + $0x18] sm:$0xff]
  %v674 = vld [vmem:[%s2 + $0x20] sm:$0xff]
  %v675 = vld [vmem:[%s2 + $0x28] sm:$0xff]
  %v676 = vld [vmem:[%s2 + $0x30] sm:$0xff]
  %v677 = vld [vmem:[%s2 + $0x38] sm:$0xff]
  %v678 = vmul.f32 %v599, %v670
  %v679 = vmul.f32 %v609, %v671
  %v680 = vmul.f32 %v619, %v672
  %v681 = vmul.f32 %v629, %v673
  %v682 = vmul.f32 %v639, %v674
  %v683 = vmul.f32 %v649, %v675
  %v684 = vmul.f32 %v659, %v676
  %v685 = vmul.f32 %v669, %v677
  %687 = vset.pattern.permute.xlu0 0
  %688 = vperm.xlu0 %687, %v678
  %v689 = vpop.permute.xlu0 %688
  %692 = vset.pattern.permute.xlu0 0
  %693 = vperm.xlu0 %692, %v679
  %v694 = vpop.permute.xlu0 %693
  %697 = vset.pattern.permute.xlu0 0
  %698 = vperm.xlu0 %697, %v680
  %v699 = vpop.permute.xlu0 %698
  %702 = vset.pattern.permute.xlu0 0
  %703 = vperm.xlu0 %702, %v681
  %v704 = vpop.permute.xlu0 %703
  %707 = vset.pattern.permute.xlu0 0
  %708 = vperm.xlu0 %707, %v682
  %v709 = vpop.permute.xlu0 %708
  %712 = vset.pattern.permute.xlu0 0
  %713 = vperm.xlu0 %712, %v683
  %v714 = vpop.permute.xlu0 %713
  %717 = vset.pattern.permute.xlu0 0
  %718 = vperm.xlu0 %717, %v684
  %v719 = vpop.permute.xlu0 %718
  %722 = vset.pattern.permute.xlu0 0
  %723 = vperm.xlu0 %722, %v685
  %v724 = vpop.permute.xlu0 %723
  %v726 = vmul.f32 %v526, %v689
  %v727 = vmul.f32 %v527, %v694
  %v728 = vmul.f32 %v528, %v699
  %v729 = vmul.f32 %v529, %v704
  %v730 = vmul.f32 %v530, %v709
  %v731 = vmul.f32 %v531, %v714
  %v732 = vmul.f32 %v532, %v719
  %v733 = vmul.f32 %v533, %v724
  %v734 = vld [vmem:[%s3] sm:$0xff]
  %v735 = vld [vmem:[%s3 + $0x8] sm:$0xff]
  %v736 = vld [vmem:[%s3 + $0x10] sm:$0xff]
  %v737 = vld [vmem:[%s3 + $0x18] sm:$0xff]
  %v738 = vld [vmem:[%s3 + $0x20] sm:$0xff]
  %v739 = vld [vmem:[%s3 + $0x28] sm:$0xff]
  %v740 = vld [vmem:[%s3 + $0x30] sm:$0xff]
  %v741 = vld [vmem:[%s3 + $0x38] sm:$0xff]
  %743 = vset.pattern.permute.xlu0 0
  %744 = vperm.xlu0 %743, %v734
  %v745 = vpop.permute.xlu0 %744
  %748 = vset.pattern.permute.xlu0 0
  %749 = vperm.xlu0 %748, %v735
  %v750 = vpop.permute.xlu0 %749
  %753 = vset.pattern.permute.xlu0 0
  %754 = vperm.xlu0 %753, %v736
  %v755 = vpop.permute.xlu0 %754
  %758 = vset.pattern.permute.xlu0 0
  %759 = vperm.xlu0 %758, %v737
  %v760 = vpop.permute.xlu0 %759
  %763 = vset.pattern.permute.xlu0 0
  %764 = vperm.xlu0 %763, %v738
  %v765 = vpop.permute.xlu0 %764
  %768 = vset.pattern.permute.xlu0 0
  %769 = vperm.xlu0 %768, %v739
  %v770 = vpop.permute.xlu0 %769
  %773 = vset.pattern.permute.xlu0 0
  %774 = vperm.xlu0 %773, %v740
  %v775 = vpop.permute.xlu0 %774
  %778 = vset.pattern.permute.xlu0 0
  %779 = vperm.xlu0 %778, %v741
  %v780 = vpop.permute.xlu0 %779
  %v782 = vadd.f32 %v726, %v745
  %v783 = vadd.f32 %v727, %v750
  %v784 = vadd.f32 %v728, %v755
  %v785 = vadd.f32 %v729, %v760
  %v786 = vadd.f32 %v730, %v765
  %v787 = vadd.f32 %v731, %v770
  %v788 = vadd.f32 %v732, %v775
  %v789 = vadd.f32 %v733, %v780
  %v790 = vmax.f32 %v782, 0.0
  %v791 = vmax.f32 %v783, 0.0
  %v792 = vmax.f32 %v784, 0.0
  %v793 = vmax.f32 %v785, 0.0
  %v794 = vmax.f32 %v786, 0.0
  %v795 = vmax.f32 %v787, 0.0
  %v796 = vmax.f32 %v788, 0.0
  %v797 = vmax.f32 %v789, 0.0
  %v798 = vpack.c.bf16 %v790, %v790
  %v799 = vpack.c.bf16 %v791, %v791
  %v800 = vpack.c.bf16 %v792, %v792
  %v801 = vpack.c.bf16 %v793, %v793
  %v802 = vpack.c.bf16 %v794, %v794
  %v803 = vpack.c.bf16 %v795, %v795
  %v804 = vpack.c.bf16 %v796, %v796
  %v805 = vpack.c.bf16 %v797, %v797
  %vm806 = vcmask 257024
  %807 = vst.msk [vmem:[%s4] sm:$0xf] %vm806, %v798
  %808 = vst.msk [vmem:[%s4 + $0x4] sm:$0xf] %vm806, %v799
  %809 = vst.msk [vmem:[%s4 + $0x8] sm:$0xf] %vm806, %v800
  %810 = vst.msk [vmem:[%s4 + $0xc] sm:$0xf] %vm806, %v801
  %811 = vst.msk [vmem:[%s4 + $0x10] sm:$0xf] %vm806, %v802
  %812 = vst.msk [vmem:[%s4 + $0x14] sm:$0xf] %vm806, %v803
  %813 = vst.msk [vmem:[%s4 + $0x18] sm:$0xf] %vm806, %v804
  %814 = vst.msk [vmem:[%s4 + $0x1c] sm:$0xf] %vm806, %v805
  // Predicated region
  $region18: #{generator_forward.5} parent=0 // pred_check
    _
  $region19: #{generator_forward.5} parent=0 // pred_check_branch
    %816 = sbr.rel (0) target = $region21
  $region20: #{generator_forward.5} parent=0 // pred_region
    _
  $region21: #{generator_forward.5} parent=0 // pred_fallthru
    _
  // Predicated region
  $region22: #{generator_forward.5} parent=0 // pred_check
    _
  $region23: #{generator_forward.5} parent=0 // pred_check_branch
    %818 = sbr.rel (0) target = $region25
  $region24: #{generator_forward.5} parent=0 // pred_region
    _
  $region25: #{generator_forward.5} parent=0 // pred_fallthru
    _

// kernel: generator_forward.6
$region0: #{generator_forward.6}
  #allocation0 [shape = 'u32[]', space=smem, size = 0x4, offset = 0x4, fixed_abs, tag = 'smem constant byte address 0x4 - core index']
  #allocation1 [shape = 'u32[72,128]{1,0:T(1,128)}', space=vmem, size = 0x9000, scoped, tag = 'internal scratch']
  %s0 = inlined_call_operand.vmem [shape: bf16[4,256,32], index: 0, kind: input, shape index: {}]
  %s1 = inlined_call_operand.vmem [shape: bf16[4,32,256], index: 1, kind: input, shape index: {}]
  %s2 = inlined_call_operand.vmem [shape: f32[1,32,1], index: 2, kind: input, shape index: {}]
  %s3 = inlined_call_operand.vmem [shape: f32[1,32,1], index: 3, kind: input, shape index: {}]
  %s4 = inlined_call_operand.vmem [shape: bf16[4,32,32], index: 4, kind: output, shape index: {}]
  %s5 = sld [smem:[#allocation0]]
  $region26: #{generator_forward.6} parent=0
    _
  %s7 = ssub.s32 1, %s5
  %s8 = scalar_select 0, %s7, %s5
  // Predicated region
  $region2: #{generator_forward.6} parent=0 // pred_check
    _
  $region3: #{generator_forward.6} parent=0 // pred_check_branch
    %10 = sbr.rel (0) target = $region5
  $region4: #{generator_forward.6} parent=0 // pred_region
    _
  $region5: #{generator_forward.6} parent=0 // pred_fallthru
    _
  // Predicated region
  $region6: #{generator_forward.6} parent=0 // pred_check
    _
  $region7: #{generator_forward.6} parent=0 // pred_check_branch
    %12 = sbr.rel (0) target = $region9
  $region8: #{generator_forward.6} parent=0 // pred_region
    _
  $region9: #{generator_forward.6} parent=0 // pred_fallthru
    _
  // Predicated region
  $region10: #{generator_forward.6} parent=0 // pred_check
    _
  $region11: #{generator_forward.6} parent=0 // pred_check_branch
    %14 = sbr.rel (0) target = $region13
  $region12: #{generator_forward.6} parent=0 // pred_region
    _
  $region13: #{generator_forward.6} parent=0 // pred_fallthru
    _
  // Predicated region
  $region14: #{generator_forward.6} parent=0 // pred_check
    _
  $region15: #{generator_forward.6} parent=0 // pred_check_branch
    %16 = sbr.rel (0) target = $region17
  $region16: #{generator_forward.6} parent=0 // pred_region
    _
  $region17: #{generator_forward.6} parent=0 // pred_fallthru
    _
  %v17 = vld [vmem:[%s1] sm:$0xff]
  %v18 = vld [vmem:[%s1 + $0x8] sm:$0xff]
  %v19 = vld [vmem:[%s1 + $0x10] sm:$0xff]
  %v20 = vld [vmem:[%s1 + $0x18] sm:$0xff]
  %v21 = vld [vmem:[%s1 + $0x20] sm:$0xff]
  %v22 = vld [vmem:[%s1 + $0x28] sm:$0xff]
  %v23 = vld [vmem:[%s1 + $0x30] sm:$0xff]
  %v24 = vld [vmem:[%s1 + $0x38] sm:$0xff]
  %v25 = vld [vmem:[%s1 + $0x40] sm:$0xff]
  %v26 = vld [vmem:[%s1 + $0x48] sm:$0xff]
  %v27 = vld [vmem:[%s1 + $0x50] sm:$0xff]
  %v28 = vld [vmem:[%s1 + $0x58] sm:$0xff]
  %v29 = vld [vmem:[%s1 + $0x60] sm:$0xff]
  %v30 = vld [vmem:[%s1 + $0x68] sm:$0xff]
  %v31 = vld [vmem:[%s1 + $0x70] sm:$0xff]
  %v32 = vld [vmem:[%s1 + $0x78] sm:$0xff]
  %v33 = vld [vmem:[%s0] sm:$0xf]
  %v34 = vld [vmem:[%s0 + $0x4] sm:$0xf]
  %v35 = vld [vmem:[%s0 + $0x8] sm:$0xf]
  %v36 = vld [vmem:[%s0 + $0xc] sm:$0xf]
  %v37 = vld [vmem:[%s0 + $0x10] sm:$0xf]
  %v38 = vld [vmem:[%s0 + $0x14] sm:$0xf]
  %v39 = vld [vmem:[%s0 + $0x18] sm:$0xf]
  %v40 = vld [vmem:[%s0 + $0x1c] sm:$0xf]
  %v41 = vld [vmem:[%s0 + $0x20] sm:$0xf]
  %v42 = vld [vmem:[%s0 + $0x24] sm:$0xf]
  %v43 = vld [vmem:[%s0 + $0x28] sm:$0xf]
  %v44 = vld [vmem:[%s0 + $0x2c] sm:$0xf]
  %v45 = vld [vmem:[%s0 + $0x30] sm:$0xf]
  %v46 = vld [vmem:[%s0 + $0x34] sm:$0xf]
  %v47 = vld [vmem:[%s0 + $0x38] sm:$0xf]
  %v48 = vld [vmem:[%s0 + $0x3c] sm:$0xf]
  %v49 = vld [vmem:[%s0 + $0x40] sm:$0xf]
  %v50 = vld [vmem:[%s0 + $0x44] sm:$0xf]
  %v51 = vld [vmem:[%s0 + $0x48] sm:$0xf]
  %v52 = vld [vmem:[%s0 + $0x4c] sm:$0xf]
  %v53 = vld [vmem:[%s0 + $0x50] sm:$0xf]
  %v54 = vld [vmem:[%s0 + $0x54] sm:$0xf]
  %v55 = vld [vmem:[%s0 + $0x58] sm:$0xf]
  %v56 = vld [vmem:[%s0 + $0x5c] sm:$0xf]
  %v57 = vld [vmem:[%s0 + $0x60] sm:$0xf]
  %v58 = vld [vmem:[%s0 + $0x64] sm:$0xf]
  %v59 = vld [vmem:[%s0 + $0x68] sm:$0xf]
  %v60 = vld [vmem:[%s0 + $0x6c] sm:$0xf]
  %v61 = vld [vmem:[%s0 + $0x70] sm:$0xf]
  %v62 = vld [vmem:[%s0 + $0x74] sm:$0xf]
  %v63 = vld [vmem:[%s0 + $0x78] sm:$0xf]
  %v64 = vld [vmem:[%s0 + $0x7c] sm:$0xf]
  %v65 = vld [vmem:[%s0 + $0x80] sm:$0xf]
  %v66 = vld [vmem:[%s0 + $0x84] sm:$0xf]
  %v67 = vld [vmem:[%s0 + $0x88] sm:$0xf]
  %v68 = vld [vmem:[%s0 + $0x8c] sm:$0xf]
  %v69 = vld [vmem:[%s0 + $0x90] sm:$0xf]
  %v70 = vld [vmem:[%s0 + $0x94] sm:$0xf]
  %v71 = vld [vmem:[%s0 + $0x98] sm:$0xf]
  %v72 = vld [vmem:[%s0 + $0x9c] sm:$0xf]
  %v73 = vld [vmem:[%s0 + $0xa0] sm:$0xf]
  %v74 = vld [vmem:[%s0 + $0xa4] sm:$0xf]
  %v75 = vld [vmem:[%s0 + $0xa8] sm:$0xf]
  %v76 = vld [vmem:[%s0 + $0xac] sm:$0xf]
  %v77 = vld [vmem:[%s0 + $0xb0] sm:$0xf]
  %v78 = vld [vmem:[%s0 + $0xb4] sm:$0xf]
  %v79 = vld [vmem:[%s0 + $0xb8] sm:$0xf]
  %v80 = vld [vmem:[%s0 + $0xbc] sm:$0xf]
  %v81 = vld [vmem:[%s0 + $0xc0] sm:$0xf]
  %v82 = vld [vmem:[%s0 + $0xc4] sm:$0xf]
  %v83 = vld [vmem:[%s0 + $0xc8] sm:$0xf]
  %v84 = vld [vmem:[%s0 + $0xcc] sm:$0xf]
  %v85 = vld [vmem:[%s0 + $0xd0] sm:$0xf]
  %v86 = vld [vmem:[%s0 + $0xd4] sm:$0xf]
  %v87 = vld [vmem:[%s0 + $0xd8] sm:$0xf]
  %v88 = vld [vmem:[%s0 + $0xdc] sm:$0xf]
  %v89 = vld [vmem:[%s0 + $0xe0] sm:$0xf]
  %v90 = vld [vmem:[%s0 + $0xe4] sm:$0xf]
  %v91 = vld [vmem:[%s0 + $0xe8] sm:$0xf]
  %v92 = vld [vmem:[%s0 + $0xec] sm:$0xf]
  %v93 = vld [vmem:[%s0 + $0xf0] sm:$0xf]
  %v94 = vld [vmem:[%s0 + $0xf4] sm:$0xf]
  %v95 = vld [vmem:[%s0 + $0xf8] sm:$0xf]
  %v96 = vld [vmem:[%s0 + $0xfc] sm:$0xf]
  %v97 = vld [vmem:[%s0 + $0x100] sm:$0xf]
  %v98 = vld [vmem:[%s0 + $0x104] sm:$0xf]
  %v99 = vld [vmem:[%s0 + $0x108] sm:$0xf]
  %v100 = vld [vmem:[%s0 + $0x10c] sm:$0xf]
  %v101 = vld [vmem:[%s0 + $0x110] sm:$0xf]
  %v102 = vld [vmem:[%s0 + $0x114] sm:$0xf]
  %v103 = vld [vmem:[%s0 + $0x118] sm:$0xf]
  %v104 = vld [vmem:[%s0 + $0x11c] sm:$0xf]
  %v105 = vld [vmem:[%s0 + $0x120] sm:$0xf]
  %v106 = vld [vmem:[%s0 + $0x124] sm:$0xf]
  %v107 = vld [vmem:[%s0 + $0x128] sm:$0xf]
  %v108 = vld [vmem:[%s0 + $0x12c] sm:$0xf]
  %v109 = vld [vmem:[%s0 + $0x130] sm:$0xf]
  %v110 = vld [vmem:[%s0 + $0x134] sm:$0xf]
  %v111 = vld [vmem:[%s0 + $0x138] sm:$0xf]
  %v112 = vld [vmem:[%s0 + $0x13c] sm:$0xf]
  %v113 = vld [vmem:[%s0 + $0x140] sm:$0xf]
  %v114 = vld [vmem:[%s0 + $0x144] sm:$0xf]
  %v115 = vld [vmem:[%s0 + $0x148] sm:$0xf]
  %v116 = vld [vmem:[%s0 + $0x14c] sm:$0xf]
  %v117 = vld [vmem:[%s0 + $0x150] sm:$0xf]
  %v118 = vld [vmem:[%s0 + $0x154] sm:$0xf]
  %v119 = vld [vmem:[%s0 + $0x158] sm:$0xf]
  %v120 = vld [vmem:[%s0 + $0x15c] sm:$0xf]
  %v121 = vld [vmem:[%s0 + $0x160] sm:$0xf]
  %v122 = vld [vmem:[%s0 + $0x164] sm:$0xf]
  %v123 = vld [vmem:[%s0 + $0x168] sm:$0xf]
  %v124 = vld [vmem:[%s0 + $0x16c] sm:$0xf]
  %v125 = vld [vmem:[%s0 + $0x170] sm:$0xf]
  %v126 = vld [vmem:[%s0 + $0x174] sm:$0xf]
  %v127 = vld [vmem:[%s0 + $0x178] sm:$0xf]
  %v128 = vld [vmem:[%s0 + $0x17c] sm:$0xf]
  %v129 = vld [vmem:[%s0 + $0x180] sm:$0xf]
  %v130 = vld [vmem:[%s0 + $0x184] sm:$0xf]
  %v131 = vld [vmem:[%s0 + $0x188] sm:$0xf]
  %v132 = vld [vmem:[%s0 + $0x18c] sm:$0xf]
  %v133 = vld [vmem:[%s0 + $0x190] sm:$0xf]
  %v134 = vld [vmem:[%s0 + $0x194] sm:$0xf]
  %v135 = vld [vmem:[%s0 + $0x198] sm:$0xf]
  %v136 = vld [vmem:[%s0 + $0x19c] sm:$0xf]
  %v137 = vld [vmem:[%s0 + $0x1a0] sm:$0xf]
  %v138 = vld [vmem:[%s0 + $0x1a4] sm:$0xf]
  %v139 = vld [vmem:[%s0 + $0x1a8] sm:$0xf]
  %v140 = vld [vmem:[%s0 + $0x1ac] sm:$0xf]
  %v141 = vld [vmem:[%s0 + $0x1b0] sm:$0xf]
  %v142 = vld [vmem:[%s0 + $0x1b4] sm:$0xf]
  %v143 = vld [vmem:[%s0 + $0x1b8] sm:$0xf]
  %v144 = vld [vmem:[%s0 + $0x1bc] sm:$0xf]
  %v145 = vld [vmem:[%s0 + $0x1c0] sm:$0xf]
  %v146 = vld [vmem:[%s0 + $0x1c4] sm:$0xf]
  %v147 = vld [vmem:[%s0 + $0x1c8] sm:$0xf]
  %v148 = vld [vmem:[%s0 + $0x1cc] sm:$0xf]
  %v149 = vld [vmem:[%s0 + $0x1d0] sm:$0xf]
  %v150 = vld [vmem:[%s0 + $0x1d4] sm:$0xf]
  %v151 = vld [vmem:[%s0 + $0x1d8] sm:$0xf]
  %v152 = vld [vmem:[%s0 + $0x1dc] sm:$0xf]
  %v153 = vld [vmem:[%s0 + $0x1e0] sm:$0xf]
  %v154 = vld [vmem:[%s0 + $0x1e4] sm:$0xf]
  %v155 = vld [vmem:[%s0 + $0x1e8] sm:$0xf]
  %v156 = vld [vmem:[%s0 + $0x1ec] sm:$0xf]
  %v157 = vld [vmem:[%s0 + $0x1f0] sm:$0xf]
  %v158 = vld [vmem:[%s0 + $0x1f4] sm:$0xf]
  %v159 = vld [vmem:[%s0 + $0x1f8] sm:$0xf]
  %v160 = vld [vmem:[%s0 + $0x1fc] sm:$0xf]
  %v165 = vunpack.c.l.b16 %v17
  %v166 = vunpack.c.h.b16 %v17
  %v167 = vunpack.c.l.b16 %v18
  %v168 = vunpack.c.h.b16 %v18
  %v169 = vunpack.c.l.b16 %v19
  %v170 = vunpack.c.h.b16 %v19
  %v171 = vunpack.c.l.b16 %v20
  %v172 = vunpack.c.h.b16 %v20
  %v173 = vpack.c.b16 %v167, %v165
  %v174 = vpack.c.b16 %v168, %v166
  %v175 = vpack.c.b16 %v171, %v169
  %v176 = vpack.c.b16 %v172, %v170
  %v213 = vunpack.c.l.b16 %v33
  %v214 = vunpack.c.l.b16 %v34
  %v215 = vunpack.c.l.b16 %v35
  %v216 = vunpack.c.l.b16 %v36
  %v217 = vunpack.c.l.b16 %v37
  %v218 = vunpack.c.l.b16 %v38
  %v219 = vunpack.c.l.b16 %v39
  %v220 = vunpack.c.l.b16 %v40
  %v221 = vunpack.c.l.b16 %v41
  %v222 = vunpack.c.l.b16 %v42
  %v223 = vunpack.c.l.b16 %v43
  %v224 = vunpack.c.l.b16 %v44
  %v225 = vunpack.c.l.b16 %v45
  %v226 = vunpack.c.l.b16 %v46
  %v227 = vunpack.c.l.b16 %v47
  %v228 = vunpack.c.l.b16 %v48
  %v229 = vunpack.c.l.b16 %v49
  %v230 = vunpack.c.l.b16 %v50
  %v231 = vunpack.c.l.b16 %v51
  %v232 = vunpack.c.l.b16 %v52
  %v233 = vunpack.c.l.b16 %v53
  %v234 = vunpack.c.l.b16 %v54
  %v235 = vunpack.c.l.b16 %v55
  %v236 = vunpack.c.l.b16 %v56
  %v237 = vunpack.c.l.b16 %v57
  %v238 = vunpack.c.l.b16 %v58
  %v239 = vunpack.c.l.b16 %v59
  %v240 = vunpack.c.l.b16 %v60
  %v241 = vunpack.c.l.b16 %v61
  %v242 = vunpack.c.l.b16 %v62
  %v243 = vunpack.c.l.b16 %v63
  %v244 = vunpack.c.l.b16 %v64
  %v245 = vpack.c.b16 %v214, %v213
  %v246 = vpack.c.b16 %v216, %v215
  %v247 = vpack.c.b16 %v218, %v217
  %v248 = vpack.c.b16 %v220, %v219
  %v249 = vpack.c.b16 %v222, %v221
  %v250 = vpack.c.b16 %v224, %v223
  %v251 = vpack.c.b16 %v226, %v225
  %v252 = vpack.c.b16 %v228, %v227
  %v253 = vpack.c.b16 %v230, %v229
  %v254 = vpack.c.b16 %v232, %v231
  %v255 = vpack.c.b16 %v234, %v233
  %v256 = vpack.c.b16 %v236, %v235
  %v257 = vpack.c.b16 %v238, %v237
  %v258 = vpack.c.b16 %v240, %v239
  %v259 = vpack.c.b16 %v242, %v241
  %v260 = vpack.c.b16 %v244, %v243
  %277 = vmatpush.bf16.msra.mxu0 %v252
  %278 = vmatpush.bf16.msra.mxu0 %v251
  %279 = vmatpush.bf16.msra.mxu0 %v250
  %280 = vmatpush.bf16.msra.mxu0 %v249
  %281 = vmatpush.bf16.msra.mxu0 %v248
  %282 = vmatpush.bf16.msra.mxu0 %v247
  %283 = vmatpush.bf16.msra.mxu0 %v246
  %284 = vmatpush.bf16.msra.mxu0 %v245
  %285 = vmatmul.bf16.gmra.mxu0 %v173
  %v286 = vpop.f32.mrf.mxu0
  %v287 = vadd.f32 0.0, %v286
  %v288 = vpop.f32.mrf.mxu0
  %v289 = vadd.f32 0.0, %v288
  %290 = vmatmul.bf16.gmra.mxu0 %v175
  %v291 = vpop.f32.mrf.mxu0
  %v292 = vadd.f32 0.0, %v291
  %v293 = vpop.f32.mrf.mxu0
  %v294 = vadd.f32 0.0, %v293
  %295 = vdwg.mxu0
  %296 = vmatpush.bf16.msra.mxu0 %v260
  %297 = vmatpush.bf16.msra.mxu0 %v259
  %298 = vmatpush.bf16.msra.mxu0 %v258
  %299 = vmatpush.bf16.msra.mxu0 %v257
  %300 = vmatpush.bf16.msra.mxu0 %v256
  %301 = vmatpush.bf16.msra.mxu0 %v255
  %302 = vmatpush.bf16.msra.mxu0 %v254
  %303 = vmatpush.bf16.msra.mxu0 %v253
  %304 = vmatmul.bf16.gmra.mxu0 %v174
  %v305 = vpop.f32.mrf.mxu0
  %v306 = vadd.f32 %v287, %v305
  %v307 = vpop.f32.mrf.mxu0
  %v308 = vadd.f32 %v289, %v307
  %309 = vmatmul.bf16.gmra.mxu0 %v176
  %v310 = vpop.f32.mrf.mxu0
  %v311 = vadd.f32 %v292, %v310
  %v312 = vpop.f32.mrf.mxu0
  %v313 = vadd.f32 %v294, %v312
  %314 = vdwg.mxu0
  %v319 = vunpack.c.l.b16 %v21
  %v320 = vunpack.c.h.b16 %v21
  %v321 = vunpack.c.l.b16 %v22
  %v322 = vunpack.c.h.b16 %v22
  %v323 = vunpack.c.l.b16 %v23
  %v324 = vunpack.c.h.b16 %v23
  %v325 = vunpack.c.l.b16 %v24
  %v326 = vunpack.c.h.b16 %v24
  %v327 = vpack.c.b16 %v321, %v319
  %v328 = vpack.c.b16 %v322, %v320
  %v329 = vpack.c.b16 %v325, %v323
  %v330 = vpack.c.b16 %v326, %v324
  %v367 = vunpack.c.l.b16 %v65
  %v368 = vunpack.c.l.b16 %v66
  %v369 = vunpack.c.l.b16 %v67
  %v370 = vunpack.c.l.b16 %v68
  %v371 = vunpack.c.l.b16 %v69
  %v372 = vunpack.c.l.b16 %v70
  %v373 = vunpack.c.l.b16 %v71
  %v374 = vunpack.c.l.b16 %v72
  %v375 = vunpack.c.l.b16 %v73
  %v376 = vunpack.c.l.b16 %v74
  %v377 = vunpack.c.l.b16 %v75
  %v378 = vunpack.c.l.b16 %v76
  %v379 = vunpack.c.l.b16 %v77
  %v380 = vunpack.c.l.b16 %v78
  %v381 = vunpack.c.l.b16 %v79
  %v382 = vunpack.c.l.b16 %v80
  %v383 = vunpack.c.l.b16 %v81
  %v384 = vunpack.c.l.b16 %v82
  %v385 = vunpack.c.l.b16 %v83
  %v386 = vunpack.c.l.b16 %v84
  %v387 = vunpack.c.l.b16 %v85
  %v388 = vunpack.c.l.b16 %v86
  %v389 = vunpack.c.l.b16 %v87
  %v390 = vunpack.c.l.b16 %v88
  %v391 = vunpack.c.l.b16 %v89
  %v392 = vunpack.c.l.b16 %v90
  %v393 = vunpack.c.l.b16 %v91
  %v394 = vunpack.c.l.b16 %v92
  %v395 = vunpack.c.l.b16 %v93
  %v396 = vunpack.c.l.b16 %v94
  %v397 = vunpack.c.l.b16 %v95
  %v398 = vunpack.c.l.b16 %v96
  %v399 = vpack.c.b16 %v368, %v367
  %v400 = vpack.c.b16 %v370, %v369
  %v401 = vpack.c.b16 %v372, %v371
  %v402 = vpack.c.b16 %v374, %v373
  %v403 = vpack.c.b16 %v376, %v375
  %v404 = vpack.c.b16 %v378, %v377
  %v405 = vpack.c.b16 %v380, %v379
  %v406 = vpack.c.b16 %v382, %v381
  %v407 = vpack.c.b16 %v384, %v383
  %v408 = vpack.c.b16 %v386, %v385
  %v409 = vpack.c.b16 %v388, %v387
  %v410 = vpack.c.b16 %v390, %v389
  %v411 = vpack.c.b16 %v392, %v391
  %v412 = vpack.c.b16 %v394, %v393
  %v413 = vpack.c.b16 %v396, %v395
  %v414 = vpack.c.b16 %v398, %v397
  %431 = vmatpush.bf16.msra.mxu0 %v406
  %432 = vmatpush.bf16.msra.mxu0 %v405
  %433 = vmatpush.bf16.msra.mxu0 %v404
  %434 = vmatpush.bf16.msra.mxu0 %v403
  %435 = vmatpush.bf16.msra.mxu0 %v402
  %436 = vmatpush.bf16.msra.mxu0 %v401
  %437 = vmatpush.bf16.msra.mxu0 %v400
  %438 = vmatpush.bf16.msra.mxu0 %v399
  %439 = vmatmul.bf16.gmra.mxu0 %v327
  %v440 = vpop.f32.mrf.mxu0
  %v441 = vadd.f32 0.0, %v440
  %v442 = vpop.f32.mrf.mxu0
  %v443 = vadd.f32 0.0, %v442
  %444 = vmatmul.bf16.gmra.mxu0 %v329
  %v445 = vpop.f32.mrf.mxu0
  %v446 = vadd.f32 0.0, %v445
  %v447 = vpop.f32.mrf.mxu0
  %v448 = vadd.f32 0.0, %v447
  %449 = vdwg.mxu0
  %450 = vmatpush.bf16.msra.mxu0 %v414
  %451 = vmatpush.bf16.msra.mxu0 %v413
  %452 = vmatpush.bf16.msra.mxu0 %v412
  %453 = vmatpush.bf16.msra.mxu0 %v411
  %454 = vmatpush.bf16.msra.mxu0 %v410
  %455 = vmatpush.bf16.msra.mxu0 %v409
  %456 = vmatpush.bf16.msra.mxu0 %v408
  %457 = vmatpush.bf16.msra.mxu0 %v407
  %458 = vmatmul.bf16.gmra.mxu0 %v328
  %v459 = vpop.f32.mrf.mxu0
  %v460 = vadd.f32 %v441, %v459
  %v461 = vpop.f32.mrf.mxu0
  %v462 = vadd.f32 %v443, %v461
  %463 = vmatmul.bf16.gmra.mxu0 %v330
  %v464 = vpop.f32.mrf.mxu0
  %v465 = vadd.f32 %v446, %v464
  %v466 = vpop.f32.mrf.mxu0
  %v467 = vadd.f32 %v448, %v466
  %468 = vdwg.mxu0
  %v473 = vunpack.c.l.b16 %v25
  %v474 = vunpack.c.h.b16 %v25
  %v475 = vunpack.c.l.b16 %v26
  %v476 = vunpack.c.h.b16 %v26
  %v477 = vunpack.c.l.b16 %v27
  %v478 = vunpack.c.h.b16 %v27
  %v479 = vunpack.c.l.b16 %v28
  %v480 = vunpack.c.h.b16 %v28
  %v481 = vpack.c.b16 %v475, %v473
  %v482 = vpack.c.b16 %v476, %v474
  %v483 = vpack.c.b16 %v479, %v477
  %v484 = vpack.c.b16 %v480, %v478
  %v521 = vunpack.c.l.b16 %v97
  %v522 = vunpack.c.l.b16 %v98
  %v523 = vunpack.c.l.b16 %v99
  %v524 = vunpack.c.l.b16 %v100
  %v525 = vunpack.c.l.b16 %v101
  %v526 = vunpack.c.l.b16 %v102
  %v527 = vunpack.c.l.b16 %v103
  %v528 = vunpack.c.l.b16 %v104
  %v529 = vunpack.c.l.b16 %v105
  %v530 = vunpack.c.l.b16 %v106
  %v531 = vunpack.c.l.b16 %v107
  %v532 = vunpack.c.l.b16 %v108
  %v533 = vunpack.c.l.b16 %v109
  %v534 = vunpack.c.l.b16 %v110
  %v535 = vunpack.c.l.b16 %v111
  %v536 = vunpack.c.l.b16 %v112
  %v537 = vunpack.c.l.b16 %v113
  %v538 = vunpack.c.l.b16 %v114
  %v539 = vunpack.c.l.b16 %v115
  %v540 = vunpack.c.l.b16 %v116
  %v541 = vunpack.c.l.b16 %v117
  %v542 = vunpack.c.l.b16 %v118
  %v543 = vunpack.c.l.b16 %v119
  %v544 = vunpack.c.l.b16 %v120
  %v545 = vunpack.c.l.b16 %v121
  %v546 = vunpack.c.l.b16 %v122
  %v547 = vunpack.c.l.b16 %v123
  %v548 = vunpack.c.l.b16 %v124
  %v549 = vunpack.c.l.b16 %v125
  %v550 = vunpack.c.l.b16 %v126
  %v551 = vunpack.c.l.b16 %v127
  %v552 = vunpack.c.l.b16 %v128
  %v553 = vpack.c.b16 %v522, %v521
  %v554 = vpack.c.b16 %v524, %v523
  %v555 = vpack.c.b16 %v526, %v525
  %v556 = vpack.c.b16 %v528, %v527
  %v557 = vpack.c.b16 %v530, %v529
  %v558 = vpack.c.b16 %v532, %v531
  %v559 = vpack.c.b16 %v534, %v533
  %v560 = vpack.c.b16 %v536, %v535
  %v561 = vpack.c.b16 %v538, %v537
  %v562 = vpack.c.b16 %v540, %v539
  %v563 = vpack.c.b16 %v542, %v541
  %v564 = vpack.c.b16 %v544, %v543
  %v565 = vpack.c.b16 %v546, %v545
  %v566 = vpack.c.b16 %v548, %v547
  %v567 = vpack.c.b16 %v550, %v549
  %v568 = vpack.c.b16 %v552, %v551
  %585 = vmatpush.bf16.msra.mxu0 %v560
  %586 = vmatpush.bf16.msra.mxu0 %v559
  %587 = vmatpush.bf16.msra.mxu0 %v558
  %588 = vmatpush.bf16.msra.mxu0 %v557
  %589 = vmatpush.bf16.msra.mxu0 %v556
  %590 = vmatpush.bf16.msra.mxu0 %v555
  %591 = vmatpush.bf16.msra.mxu0 %v554
  %592 = vmatpush.bf16.msra.mxu0 %v553
  %593 = vmatmul.bf16.gmra.mxu0 %v481
  %v594 = vpop.f32.mrf.mxu0
  %v595 = vadd.f32 0.0, %v594
  %v596 = vpop.f32.mrf.mxu0
  %v597 = vadd.f32 0.0, %v596
  %598 = vmatmul.bf16.gmra.mxu0 %v483
  %v599 = vpop.f32.mrf.mxu0
  %v600 = vadd.f32 0.0, %v599
  %v601 = vpop.f32.mrf.mxu0
  %v602 = vadd.f32 0.0, %v601
  %603 = vdwg.mxu0
  %604 = vmatpush.bf16.msra.mxu0 %v568
  %605 = vmatpush.bf16.msra.mxu0 %v567
  %606 = vmatpush.bf16.msra.mxu0 %v566
  %607 = vmatpush.bf16.msra.mxu0 %v565
  %608 = vmatpush.bf16.msra.mxu0 %v564
  %609 = vmatpush.bf16.msra.mxu0 %v563
  %610 = vmatpush.bf16.msra.mxu0 %v562
  %611 = vmatpush.bf16.msra.mxu0 %v561
  %612 = vmatmul.bf16.gmra.mxu0 %v482
  %v613 = vpop.f32.mrf.mxu0
  %v614 = vadd.f32 %v595, %v613
  %v615 = vpop.f32.mrf.mxu0
  %v616 = vadd.f32 %v597, %v615
  %617 = vmatmul.bf16.gmra.mxu0 %v484
  %v618 = vpop.f32.mrf.mxu0
  %v619 = vadd.f32 %v600, %v618
  %v620 = vpop.f32.mrf.mxu0
  %v621 = vadd.f32 %v602, %v620
  %622 = vdwg.mxu0
  %v627 = vunpack.c.l.b16 %v29
  %v628 = vunpack.c.h.b16 %v29
  %v629 = vunpack.c.l.b16 %v30
  %v630 = vunpack.c.h.b16 %v30
  %v631 = vunpack.c.l.b16 %v31
  %v632 = vunpack.c.h.b16 %v31
  %v633 = vunpack.c.l.b16 %v32
  %v634 = vunpack.c.h.b16 %v32
  %v635 = vpack.c.b16 %v629, %v627
  %v636 = vpack.c.b16 %v630, %v628
  %v637 = vpack.c.b16 %v633, %v631
  %v638 = vpack.c.b16 %v634, %v632
  %v675 = vunpack.c.l.b16 %v129
  %v676 = vunpack.c.l.b16 %v130
  %v677 = vunpack.c.l.b16 %v131
  %v678 = vunpack.c.l.b16 %v132
  %v679 = vunpack.c.l.b16 %v133
  %v680 = vunpack.c.l.b16 %v134
  %v681 = vunpack.c.l.b16 %v135
  %v682 = vunpack.c.l.b16 %v136
  %v683 = vunpack.c.l.b16 %v137
  %v684 = vunpack.c.l.b16 %v138
  %v685 = vunpack.c.l.b16 %v139
  %v686 = vunpack.c.l.b16 %v140
  %v687 = vunpack.c.l.b16 %v141
  %v688 = vunpack.c.l.b16 %v142
  %v689 = vunpack.c.l.b16 %v143
  %v690 = vunpack.c.l.b16 %v144
  %v691 = vunpack.c.l.b16 %v145
  %v692 = vunpack.c.l.b16 %v146
  %v693 = vunpack.c.l.b16 %v147
  %v694 = vunpack.c.l.b16 %v148
  %v695 = vunpack.c.l.b16 %v149
  %v696 = vunpack.c.l.b16 %v150
  %v697 = vunpack.c.l.b16 %v151
  %v698 = vunpack.c.l.b16 %v152
  %v699 = vunpack.c.l.b16 %v153
  %v700 = vunpack.c.l.b16 %v154
  %v701 = vunpack.c.l.b16 %v155
  %v702 = vunpack.c.l.b16 %v156
  %v703 = vunpack.c.l.b16 %v157
  %v704 = vunpack.c.l.b16 %v158
  %v705 = vunpack.c.l.b16 %v159
  %v706 = vunpack.c.l.b16 %v160
  %v707 = vpack.c.b16 %v676, %v675
  %v708 = vpack.c.b16 %v678, %v677
  %v709 = vpack.c.b16 %v680, %v679
  %v710 = vpack.c.b16 %v682, %v681
  %v711 = vpack.c.b16 %v684, %v683
  %v712 = vpack.c.b16 %v686, %v685
  %v713 = vpack.c.b16 %v688, %v687
  %v714 = vpack.c.b16 %v690, %v689
  %v715 = vpack.c.b16 %v692, %v691
  %v716 = vpack.c.b16 %v694, %v693
  %v717 = vpack.c.b16 %v696, %v695
  %v718 = vpack.c.b16 %v698, %v697
  %v719 = vpack.c.b16 %v700, %v699
  %v720 = vpack.c.b16 %v702, %v701
  %v721 = vpack.c.b16 %v704, %v703
  %v722 = vpack.c.b16 %v706, %v705
  %739 = vmatpush.bf16.msra.mxu0 %v714
  %740 = vmatpush.bf16.msra.mxu0 %v713
  %741 = vmatpush.bf16.msra.mxu0 %v712
  %742 = vmatpush.bf16.msra.mxu0 %v711
  %743 = vmatpush.bf16.msra.mxu0 %v710
  %744 = vmatpush.bf16.msra.mxu0 %v709
  %745 = vmatpush.bf16.msra.mxu0 %v708
  %746 = vmatpush.bf16.msra.mxu0 %v707
  %747 = vmatmul.bf16.gmra.mxu0 %v635
  %v748 = vpop.f32.mrf.mxu0
  %v749 = vadd.f32 0.0, %v748
  %v750 = vpop.f32.mrf.mxu0
  %v751 = vadd.f32 0.0, %v750
  %752 = vmatmul.bf16.gmra.mxu0 %v637
  %v753 = vpop.f32.mrf.mxu0
  %v754 = vadd.f32 0.0, %v753
  %v755 = vpop.f32.mrf.mxu0
  %v756 = vadd.f32 0.0, %v755
  %757 = vdwg.mxu0
  %758 = vmatpush.bf16.msra.mxu0 %v722
  %759 = vmatpush.bf16.msra.mxu0 %v721
  %760 = vmatpush.bf16.msra.mxu0 %v720
  %761 = vmatpush.bf16.msra.mxu0 %v719
  %762 = vmatpush.bf16.msra.mxu0 %v718
  %763 = vmatpush.bf16.msra.mxu0 %v717
  %764 = vmatpush.bf16.msra.mxu0 %v716
  %765 = vmatpush.bf16.msra.mxu0 %v715
  %766 = vmatmul.bf16.gmra.mxu0 %v636
  %v767 = vpop.f32.mrf.mxu0
  %v768 = vadd.f32 %v749, %v767
  %v769 = vpop.f32.mrf.mxu0
  %v770 = vadd.f32 %v751, %v769
  %771 = vmatmul.bf16.gmra.mxu0 %v638
  %v772 = vpop.f32.mrf.mxu0
  %v773 = vadd.f32 %v754, %v772
  %v774 = vpop.f32.mrf.mxu0
  %v775 = vadd.f32 %v756, %v774
  %776 = vdwg.mxu0
  %vm777 = vcmask 261120
  %v778 = vsel %vm777, %v306, 0.0
  %779 = vadd.xlane.f32.xlu0 %v778
  %v780 = vpop.xlane.xlu0 %779
  %v781 = vsel %vm777, %v308, 0.0
  %782 = vadd.xlane.f32.xlu0 %v781
  %v783 = vpop.xlane.xlu0 %782
  %v784 = vsel %vm777, %v311, 0.0
  %785 = vadd.xlane.f32.xlu0 %v784
  %v786 = vpop.xlane.xlu0 %785
  %v787 = vsel %vm777, %v313, 0.0
  %788 = vadd.xlane.f32.xlu0 %v787
  %v789 = vpop.xlane.xlu0 %788
  %v790 = vsel %vm777, %v460, 0.0
  %791 = vadd.xlane.f32.xlu0 %v790
  %v792 = vpop.xlane.xlu0 %791
  %v793 = vsel %vm777, %v462, 0.0
  %794 = vadd.xlane.f32.xlu0 %v793
  %v795 = vpop.xlane.xlu0 %794
  %v796 = vsel %vm777, %v465, 0.0
  %797 = vadd.xlane.f32.xlu0 %v796
  %v798 = vpop.xlane.xlu0 %797
  %v799 = vsel %vm777, %v467, 0.0
  %800 = vadd.xlane.f32.xlu0 %v799
  %v801 = vpop.xlane.xlu0 %800
  %v802 = vsel %vm777, %v614, 0.0
  %803 = vadd.xlane.f32.xlu0 %v802
  %v804 = vpop.xlane.xlu0 %803
  %v805 = vsel %vm777, %v616, 0.0
  %806 = vadd.xlane.f32.xlu0 %v805
  %v807 = vpop.xlane.xlu0 %806
  %v808 = vsel %vm777, %v619, 0.0
  %809 = vadd.xlane.f32.xlu0 %v808
  %v810 = vpop.xlane.xlu0 %809
  %v811 = vsel %vm777, %v621, 0.0
  %812 = vadd.xlane.f32.xlu0 %v811
  %v813 = vpop.xlane.xlu0 %812
  %v814 = vsel %vm777, %v768, 0.0
  %815 = vadd.xlane.f32.xlu0 %v814
  %v816 = vpop.xlane.xlu0 %815
  %v817 = vsel %vm777, %v770, 0.0
  %818 = vadd.xlane.f32.xlu0 %v817
  %v819 = vpop.xlane.xlu0 %818
  %v820 = vsel %vm777, %v773, 0.0
  %821 = vadd.xlane.f32.xlu0 %v820
  %v822 = vpop.xlane.xlu0 %821
  %v823 = vsel %vm777, %v775, 0.0
  %824 = vadd.xlane.f32.xlu0 %v823
  %v825 = vpop.xlane.xlu0 %824
  %v826 = vadd.f32 %v780, %v792
  %v827 = vadd.f32 %v826, %v804
  %v828 = vadd.f32 %v827, %v816
  %v829 = vadd.f32 %v783, %v795
  %v830 = vadd.f32 %v829, %v807
  %v831 = vadd.f32 %v830, %v819
  %v832 = vadd.f32 %v786, %v798
  %v833 = vadd.f32 %v832, %v810
  %v834 = vadd.f32 %v833, %v822
  %v835 = vadd.f32 %v789, %v801
  %v836 = vadd.f32 %v835, %v813
  %v837 = vadd.f32 %v836, %v825
  %v838 = vmul.f32 %v828, 0.0078125
  %v839 = vmul.f32 %v831, 0.0078125
  %v840 = vmul.f32 %v834, 0.0078125
  %v841 = vmul.f32 %v837, 0.0078125
  %v842 = vsub.f32 %v306, %v838
  %v843 = vsub.f32 %v308, %v839
  %v844 = vsub.f32 %v311, %v840
  %v845 = vsub.f32 %v313, %v841
  %v846 = vsub.f32 %v460, %v838
  %v847 = vsub.f32 %v462, %v839
  %v848 = vsub.f32 %v465, %v840
  %v849 = vsub.f32 %v467, %v841
  %v850 = vsub.f32 %v614, %v838
  %v851 = vsub.f32 %v616, %v839
  %v852 = vsub.f32 %v619, %v840
  %v853 = vsub.f32 %v621, %v841
  %v854 = vsub.f32 %v768, %v838
  %v855 = vsub.f32 %v770, %v839
  %v856 = vsub.f32 %v773, %v840
  %v857 = vsub.f32 %v775, %v841
  %v858 = vmul.f32 %v842, %v842
  %v859 = vmul.f32 %v843, %v843
  %v860 = vmul.f32 %v844, %v844
  %v861 = vmul.f32 %v845, %v845
  %v862 = vmul.f32 %v846, %v846
  %v863 = vmul.f32 %v847, %v847
  %v864 = vmul.f32 %v848, %v848
  %v865 = vmul.f32 %v849, %v849
  %v866 = vmul.f32 %v850, %v850
  %v867 = vmul.f32 %v851, %v851
  %v868 = vmul.f32 %v852, %v852
  %v869 = vmul.f32 %v853, %v853
  %v870 = vmul.f32 %v854, %v854
  %v871 = vmul.f32 %v855, %v855
  %v872 = vmul.f32 %v856, %v856
  %v873 = vmul.f32 %v857, %v857
  %v874 = vsel %vm777, %v858, 0.0
  %875 = vadd.xlane.f32.xlu0 %v874
  %v876 = vpop.xlane.xlu0 %875
  %v877 = vsel %vm777, %v859, 0.0
  %878 = vadd.xlane.f32.xlu0 %v877
  %v879 = vpop.xlane.xlu0 %878
  %v880 = vsel %vm777, %v860, 0.0
  %881 = vadd.xlane.f32.xlu0 %v880
  %v882 = vpop.xlane.xlu0 %881
  %v883 = vsel %vm777, %v861, 0.0
  %884 = vadd.xlane.f32.xlu0 %v883
  %v885 = vpop.xlane.xlu0 %884
  %v886 = vsel %vm777, %v862, 0.0
  %887 = vadd.xlane.f32.xlu0 %v886
  %v888 = vpop.xlane.xlu0 %887
  %v889 = vsel %vm777, %v863, 0.0
  %890 = vadd.xlane.f32.xlu0 %v889
  %v891 = vpop.xlane.xlu0 %890
  %v892 = vsel %vm777, %v864, 0.0
  %893 = vadd.xlane.f32.xlu0 %v892
  %v894 = vpop.xlane.xlu0 %893
  %v895 = vsel %vm777, %v865, 0.0
  %896 = vadd.xlane.f32.xlu0 %v895
  %v897 = vpop.xlane.xlu0 %896
  %v898 = vsel %vm777, %v866, 0.0
  %899 = vadd.xlane.f32.xlu0 %v898
  %v900 = vpop.xlane.xlu0 %899
  %v901 = vsel %vm777, %v867, 0.0
  %902 = vadd.xlane.f32.xlu0 %v901
  %v903 = vpop.xlane.xlu0 %902
  %v904 = vsel %vm777, %v868, 0.0
  %905 = vadd.xlane.f32.xlu0 %v904
  %v906 = vpop.xlane.xlu0 %905
  %v907 = vsel %vm777, %v869, 0.0
  %908 = vadd.xlane.f32.xlu0 %v907
  %v909 = vpop.xlane.xlu0 %908
  %v910 = vsel %vm777, %v870, 0.0
  %911 = vadd.xlane.f32.xlu0 %v910
  %v912 = vpop.xlane.xlu0 %911
  %v913 = vsel %vm777, %v871, 0.0
  %914 = vadd.xlane.f32.xlu0 %v913
  %v915 = vpop.xlane.xlu0 %914
  %v916 = vsel %vm777, %v872, 0.0
  %917 = vadd.xlane.f32.xlu0 %v916
  %v918 = vpop.xlane.xlu0 %917
  %v919 = vsel %vm777, %v873, 0.0
  %920 = vadd.xlane.f32.xlu0 %v919
  %v921 = vpop.xlane.xlu0 %920
  %v922 = vadd.f32 %v876, %v888
  %v923 = vadd.f32 %v922, %v900
  %v924 = vadd.f32 %v923, %v912
  %v925 = vadd.f32 %v879, %v891
  %v926 = vadd.f32 %v925, %v903
  %v927 = vadd.f32 %v926, %v915
  %v928 = vadd.f32 %v882, %v894
  %v929 = vadd.f32 %v928, %v906
  %v930 = vadd.f32 %v929, %v918
  %v931 = vadd.f32 %v885, %v897
  %v932 = vadd.f32 %v931, %v909
  %v933 = vadd.f32 %v932, %v921
  %v934 = vmul.f32 %v924, 0.0078125
  %v935 = vmul.f32 %v927, 0.0078125
  %v936 = vmul.f32 %v930, 0.0078125
  %v937 = vmul.f32 %v933, 0.0078125
  %v938 = vadd.f32 %v934, 1e-05
  %v939 = vadd.f32 %v935, 1e-05
  %v940 = vadd.f32 %v936, 1e-05
  %v941 = vadd.f32 %v937, 1e-05
  %v942 = vrsqrt.pop %v938
  %v943 = vmul.f32 %v942, %v938
  %v944 = vmul.f32 %v943, %v942
  %v945 = vmul.f32 0.5, %v944
  %v946 = vsub.f32 1.5, %v945
  %v947 = vmul.f32 %v942, %v946
  %vm948 = vweird.f32 %v938
  %vm949 = vweird.f32 %v942
  %vm950 = vmor %vm948, %vm949
  %v951 = vsel %vm950, %v942, %v947
  %v952 = vrsqrt.pop %v939
  %v953 = vmul.f32 %v952, %v939
  %v954 = vmul.f32 %v953, %v952
  %v955 = vmul.f32 0.5, %v954
  %v956 = vsub.f32 1.5, %v955
  %v957 = vmul.f32 %v952, %v956
  %vm958 = vweird.f32 %v939
  %vm959 = vweird.f32 %v952
  %vm960 = vmor %vm958, %vm959
  %v961 = vsel %vm960, %v952, %v957
  %v962 = vrsqrt.pop %v940
  %v963 = vmul.f32 %v962, %v940
  %v964 = vmul.f32 %v963, %v962
  %v965 = vmul.f32 0.5, %v964
  %v966 = vsub.f32 1.5, %v965
  %v967 = vmul.f32 %v962, %v966
  %vm968 = vweird.f32 %v940
  %vm969 = vweird.f32 %v962
  %vm970 = vmor %vm968, %vm969
  %v971 = vsel %vm970, %v962, %v967
  %v972 = vrsqrt.pop %v941
  %v973 = vmul.f32 %v972, %v941
  %v974 = vmul.f32 %v973, %v972
  %v975 = vmul.f32 0.5, %v974
  %v976 = vsub.f32 1.5, %v975
  %v977 = vmul.f32 %v972, %v976
  %vm978 = vweird.f32 %v941
  %vm979 = vweird.f32 %v972
  %vm980 = vmor %vm978, %vm979
  %v981 = vsel %vm980, %v972, %v977
  %v982 = vld [vmem:[%s2] sm:$0xff]
  %v983 = vld [vmem:[%s2 + $0x8] sm:$0xff]
  %v984 = vld [vmem:[%s2 + $0x10] sm:$0xff]
  %v985 = vld [vmem:[%s2 + $0x18] sm:$0xff]
  %v986 = vmul.f32 %v951, %v982
  %v987 = vmul.f32 %v961, %v983
  %v988 = vmul.f32 %v971, %v984
  %v989 = vmul.f32 %v981, %v985
  %991 = vset.pattern.permute.xlu0 0
  %992 = vperm.xlu0 %991, %v986
  %v993 = vpop.permute.xlu0 %992
  %996 = vset.pattern.permute.xlu0 0
  %997 = vperm.xlu0 %996, %v987
  %v998 = vpop.permute.xlu0 %997
  %1001 = vset.pattern.permute.xlu0 0
  %1002 = vperm.xlu0 %1001, %v988
  %v1003 = vpop.permute.xlu0 %1002
  %1006 = vset.pattern.permute.xlu0 0
  %1007 = vperm.xlu0 %1006, %v989
  %v1008 = vpop.permute.xlu0 %1007
  %v1010 = vmul.f32 %v842, %v993
  %v1011 = vmul.f32 %v843, %v998
  %v1012 = vmul.f32 %v844, %v1003
  %v1013 = vmul.f32 %v845, %v1008
  %v1014 = vmul.f32 %v846, %v993
  %v1015 = vmul.f32 %v847, %v998
  %v1016 = vmul.f32 %v848, %v1003
  %v1017 = vmul.f32 %v849, %v1008
  %v1018 = vmul.f32 %v850, %v993
  %v1019 = vmul.f32 %v851, %v998
  %v1020 = vmul.f32 %v852, %v1003
  %v1021 = vmul.f32 %v853, %v1008
  %v1022 = vmul.f32 %v854, %v993
  %v1023 = vmul.f32 %v855, %v998
  %v1024 = vmul.f32 %v856, %v1003
  %v1025 = vmul.f32 %v857, %v1008
  %v1026 = vld [vmem:[%s3] sm:$0xff]
  %v1027 = vld [vmem:[%s3 + $0x8] sm:$0xff]
  %v1028 = vld [vmem:[%s3 + $0x10] sm:$0xff]
  %v1029 = vld [vmem:[%s3 + $0x18] sm:$0xff]
  %1031 = vset.pattern.permute.xlu0 0
  %1032 = vperm.xlu0 %1031, %v1026
  %v1033 = vpop.permute.xlu0 %1032
  %1036 = vset.pattern.permute.xlu0 0
  %1037 = vperm.xlu0 %1036, %v1027
  %v1038 = vpop.permute.xlu0 %1037
  %1041 = vset.pattern.permute.xlu0 0
  %1042 = vperm.xlu0 %1041, %v1028
  %v1043 = vpop.permute.xlu0 %1042
  %1046 = vset.pattern.permute.xlu0 0
  %1047 = vperm.xlu0 %1046, %v1029
  %v1048 = vpop.permute.xlu0 %1047
  %v1050 = vadd.f32 %v1010, %v1033
  %v1051 = vadd.f32 %v1011, %v1038
  %v1052 = vadd.f32 %v1012, %v1043
  %v1053 = vadd.f32 %v1013, %v1048
  %v1054 = vadd.f32 %v1014, %v1033
  %v1055 = vadd.f32 %v1015, %v1038
  %v1056 = vadd.f32 %v1016, %v1043
  %v1057 = vadd.f32 %v1017, %v1048
  %v1058 = vadd.f32 %v1018, %v1033
  %v1059 = vadd.f32 %v1019, %v1038
  %v1060 = vadd.f32 %v1020, %v1043
  %v1061 = vadd.f32 %v1021, %v1048
  %v1062 = vadd.f32 %v1022, %v1033
  %v1063 = vadd.f32 %v1023, %v1038
  %v1064 = vadd.f32 %v1024, %v1043
  %v1065 = vadd.f32 %v1025, %v1048
  %v1066 = vmax.f32 %v1050, 0.0
  %v1067 = vmax.f32 %v1051, 0.0
  %v1068 = vmax.f32 %v1052, 0.0
  %v1069 = vmax.f32 %v1053, 0.0
  %v1070 = vmax.f32 %v1054, 0.0
  %v1071 = vmax.f32 %v1055, 0.0
  %v1072 = vmax.f32 %v1056, 0.0
  %v1073 = vmax.f32 %v1057, 0.0
  %v1074 = vmax.f32 %v1058, 0.0
  %v1075 = vmax.f32 %v1059, 0.0
  %v1076 = vmax.f32 %v1060, 0.0
  %v1077 = vmax.f32 %v1061, 0.0
  %v1078 = vmax.f32 %v1062, 0.0
  %v1079 = vmax.f32 %v1063, 0.0
  %v1080 = vmax.f32 %v1064, 0.0
  %v1081 = vmax.f32 %v1065, 0.0
  %v1082 = vpack.c.bf16 %v1066, %v1066
  %v1083 = vpack.c.bf16 %v1067, %v1067
  %v1084 = vpack.c.bf16 %v1068, %v1068
  %v1085 = vpack.c.bf16 %v1069, %v1069
  %v1086 = vpack.c.bf16 %v1070, %v1070
  %v1087 = vpack.c.bf16 %v1071, %v1071
  %v1088 = vpack.c.bf16 %v1072, %v1072
  %v1089 = vpack.c.bf16 %v1073, %v1073
  %v1090 = vpack.c.bf16 %v1074, %v1074
  %v1091 = vpack.c.bf16 %v1075, %v1075
  %v1092 = vpack.c.bf16 %v1076, %v1076
  %v1093 = vpack.c.bf16 %v1077, %v1077
  %v1094 = vpack.c.bf16 %v1078, %v1078
  %v1095 = vpack.c.bf16 %v1079, %v1079
  %v1096 = vpack.c.bf16 %v1080, %v1080
  %v1097 = vpack.c.bf16 %v1081, %v1081
  %vm1098 = vcmask 257024
  %1099 = vst.msk [vmem:[%s4] sm:$0xf] %vm1098, %v1082
  %1100 = vst.msk [vmem:[%s4 + $0x4] sm:$0xf] %vm1098, %v1083
  %1101 = vst.msk [vmem:[%s4 + $0x8] sm:$0xf] %vm1098, %v1084
  %1102 = vst.msk [vmem:[%s4 + $0xc] sm:$0xf] %vm1098, %v1085
  %1103 = vst.msk [vmem:[%s4 + $0x10] sm:$0xf] %vm1098, %v1086
  %1104 = vst.msk [vmem:[%s4 + $0x14] sm:$0xf] %vm1098, %v1087
  %1105 = vst.msk [vmem:[%s4 + $0x18] sm:$0xf] %vm1098, %v1088
  %1106 = vst.msk [vmem:[%s4 + $0x1c] sm:$0xf] %vm1098, %v1089
  %1107 = vst.msk [vmem:[%s4 + $0x20] sm:$0xf] %vm1098, %v1090
  %1108 = vst.msk [vmem:[%s4 + $0x24] sm:$0xf] %vm1098, %v1091
  %1109 = vst.msk [vmem:[%s4 + $0x28] sm:$0xf] %vm1098, %v1092
  %1110 = vst.msk [vmem:[%s4 + $0x2c] sm:$0xf] %vm1098, %v1093
  %1111 = vst.msk [vmem:[%s4 + $0x30] sm:$0xf] %vm1098, %v1094
  %1112 = vst.msk [vmem:[%s4 + $0x34] sm:$0xf] %vm1098, %v1095
  %1113 = vst.msk [vmem:[%s4 + $0x38] sm:$0xf] %vm1098, %v1096
  %1114 = vst.msk [vmem:[%s4 + $0x3c] sm:$0xf] %vm1098, %v1097
  // Predicated region
  $region18: #{generator_forward.6} parent=0 // pred_check
    _
  $region19: #{generator_forward.6} parent=0 // pred_check_branch
    %1116 = sbr.rel (0) target = $region21
  $region20: #{generator_forward.6} parent=0 // pred_region
    _
  $region21: #{generator_forward.6} parent=0 // pred_fallthru
    _
  // Predicated region
  $region22: #{generator_forward.6} parent=0 // pred_check
    _
  $region23: #{generator_forward.6} parent=0 // pred_check_branch
    %1118 = sbr.rel (0) target = $region25
  $region24: #{generator_forward.6} parent=0 // pred_region
    _
  $region25: #{generator_forward.6} parent=0 // pred_fallthru
    _

// kernel: generator_forward.7
$region0: #{generator_forward.7}
  #allocation0 [shape = 'u32[]', space=smem, size = 0x4, offset = 0x4, fixed_abs, tag = 'smem constant byte address 0x4 - core index']
  #allocation1 [shape = 'u32[72,128]{1,0:T(1,128)}', space=vmem, size = 0x9000, scoped, tag = 'internal scratch']
  %s0 = inlined_call_operand.vmem [shape: bf16[4,128,128], index: 0, kind: input, shape index: {}]
  %s1 = inlined_call_operand.vmem [shape: bf16[4,16,128], index: 1, kind: input, shape index: {}]
  %s2 = inlined_call_operand.vmem [shape: f32[1,16,1], index: 2, kind: input, shape index: {}]
  %s3 = inlined_call_operand.vmem [shape: f32[1,16,1], index: 3, kind: input, shape index: {}]
  %s4 = inlined_call_operand.vmem [shape: bf16[4,16,128], index: 4, kind: output, shape index: {}]
  %s5 = sld [smem:[#allocation0]]
  $region26: #{generator_forward.7} parent=0
    _
  %s7 = ssub.s32 1, %s5
  %s8 = scalar_select 0, %s7, %s5
  // Predicated region
  $region2: #{generator_forward.7} parent=0 // pred_check
    _
  $region3: #{generator_forward.7} parent=0 // pred_check_branch
    %10 = sbr.rel (0) target = $region5
  $region4: #{generator_forward.7} parent=0 // pred_region
    _
  $region5: #{generator_forward.7} parent=0 // pred_fallthru
    _
  // Predicated region
  $region6: #{generator_forward.7} parent=0 // pred_check
    _
  $region7: #{generator_forward.7} parent=0 // pred_check_branch
    %12 = sbr.rel (0) target = $region9
  $region8: #{generator_forward.7} parent=0 // pred_region
    _
  $region9: #{generator_forward.7} parent=0 // pred_fallthru
    _
  // Predicated region
  $region10: #{generator_forward.7} parent=0 // pred_check
    _
  $region11: #{generator_forward.7} parent=0 // pred_check_branch
    %14 = sbr.rel (0) target = $region13
  $region12: #{generator_forward.7} parent=0 // pred_region
    _
  $region13: #{generator_forward.7} parent=0 // pred_fallthru
    _
  // Predicated region
  $region14: #{generator_forward.7} parent=0 // pred_check
    _
  $region15: #{generator_forward.7} parent=0 // pred_check_branch
    %16 = sbr.rel (0) target = $region17
  $region16: #{generator_forward.7} parent=0 // pred_region
    _
  $region17: #{generator_forward.7} parent=0 // pred_fallthru
    _
  %v17 = vld [vmem:[%s1] sm:$0xf]
  %v18 = vld [vmem:[%s1 + $0x4] sm:$0xf]
  %v19 = vld [vmem:[%s1 + $0x8] sm:$0xf]
  %v20 = vld [vmem:[%s1 + $0xc] sm:$0xf]
  %v21 = vld [vmem:[%s1 + $0x10] sm:$0xf]
  %v22 = vld [vmem:[%s1 + $0x14] sm:$0xf]
  %v23 = vld [vmem:[%s1 + $0x18] sm:$0xf]
  %v24 = vld [vmem:[%s1 + $0x1c] sm:$0xf]
  %v25 = vld [vmem:[%s0] sm:$0xf]
  %v26 = vld [vmem:[%s0 + $0x4] sm:$0xf]
  %v27 = vld [vmem:[%s0 + $0x8] sm:$0xf]
  %v28 = vld [vmem:[%s0 + $0xc] sm:$0xf]
  %v29 = vld [vmem:[%s0 + $0x10] sm:$0xf]
  %v30 = vld [vmem:[%s0 + $0x14] sm:$0xf]
  %v31 = vld [vmem:[%s0 + $0x18] sm:$0xf]
  %v32 = vld [vmem:[%s0 + $0x1c] sm:$0xf]
  %v33 = vld [vmem:[%s0 + $0x20] sm:$0xf]
  %v34 = vld [vmem:[%s0 + $0x24] sm:$0xf]
  %v35 = vld [vmem:[%s0 + $0x28] sm:$0xf]
  %v36 = vld [vmem:[%s0 + $0x2c] sm:$0xf]
  %v37 = vld [vmem:[%s0 + $0x30] sm:$0xf]
  %v38 = vld [vmem:[%s0 + $0x34] sm:$0xf]
  %v39 = vld [vmem:[%s0 + $0x38] sm:$0xf]
  %v40 = vld [vmem:[%s0 + $0x3c] sm:$0xf]
  %v41 = vld [vmem:[%s0 + $0x40] sm:$0xf]
  %v42 = vld [vmem:[%s0 + $0x44] sm:$0xf]
  %v43 = vld [vmem:[%s0 + $0x48] sm:$0xf]
  %v44 = vld [vmem:[%s0 + $0x4c] sm:$0xf]
  %v45 = vld [vmem:[%s0 + $0x50] sm:$0xf]
  %v46 = vld [vmem:[%s0 + $0x54] sm:$0xf]
  %v47 = vld [vmem:[%s0 + $0x58] sm:$0xf]
  %v48 = vld [vmem:[%s0 + $0x5c] sm:$0xf]
  %v49 = vld [vmem:[%s0 + $0x60] sm:$0xf]
  %v50 = vld [vmem:[%s0 + $0x64] sm:$0xf]
  %v51 = vld [vmem:[%s0 + $0x68] sm:$0xf]
  %v52 = vld [vmem:[%s0 + $0x6c] sm:$0xf]
  %v53 = vld [vmem:[%s0 + $0x70] sm:$0xf]
  %v54 = vld [vmem:[%s0 + $0x74] sm:$0xf]
  %v55 = vld [vmem:[%s0 + $0x78] sm:$0xf]
  %v56 = vld [vmem:[%s0 + $0x7c] sm:$0xf]
  %v57 = vld [vmem:[%s0 + $0x80] sm:$0xf]
  %v58 = vld [vmem:[%s0 + $0x84] sm:$0xf]
  %v59 = vld [vmem:[%s0 + $0x88] sm:$0xf]
  %v60 = vld [vmem:[%s0 + $0x8c] sm:$0xf]
  %v61 = vld [vmem:[%s0 + $0x90] sm:$0xf]
  %v62 = vld [vmem:[%s0 + $0x94] sm:$0xf]
  %v63 = vld [vmem:[%s0 + $0x98] sm:$0xf]
  %v64 = vld [vmem:[%s0 + $0x9c] sm:$0xf]
  %v65 = vld [vmem:[%s0 + $0xa0] sm:$0xf]
  %v66 = vld [vmem:[%s0 + $0xa4] sm:$0xf]
  %v67 = vld [vmem:[%s0 + $0xa8] sm:$0xf]
  %v68 = vld [vmem:[%s0 + $0xac] sm:$0xf]
  %v69 = vld [vmem:[%s0 + $0xb0] sm:$0xf]
  %v70 = vld [vmem:[%s0 + $0xb4] sm:$0xf]
  %v71 = vld [vmem:[%s0 + $0xb8] sm:$0xf]
  %v72 = vld [vmem:[%s0 + $0xbc] sm:$0xf]
  %v73 = vld [vmem:[%s0 + $0xc0] sm:$0xf]
  %v74 = vld [vmem:[%s0 + $0xc4] sm:$0xf]
  %v75 = vld [vmem:[%s0 + $0xc8] sm:$0xf]
  %v76 = vld [vmem:[%s0 + $0xcc] sm:$0xf]
  %v77 = vld [vmem:[%s0 + $0xd0] sm:$0xf]
  %v78 = vld [vmem:[%s0 + $0xd4] sm:$0xf]
  %v79 = vld [vmem:[%s0 + $0xd8] sm:$0xf]
  %v80 = vld [vmem:[%s0 + $0xdc] sm:$0xf]
  %v81 = vld [vmem:[%s0 + $0xe0] sm:$0xf]
  %v82 = vld [vmem:[%s0 + $0xe4] sm:$0xf]
  %v83 = vld [vmem:[%s0 + $0xe8] sm:$0xf]
  %v84 = vld [vmem:[%s0 + $0xec] sm:$0xf]
  %v85 = vld [vmem:[%s0 + $0xf0] sm:$0xf]
  %v86 = vld [vmem:[%s0 + $0xf4] sm:$0xf]
  %v87 = vld [vmem:[%s0 + $0xf8] sm:$0xf]
  %v88 = vld [vmem:[%s0 + $0xfc] sm:$0xf]
  %v91 = vunpack.c.l.b16 %v17
  %v92 = vunpack.c.l.b16 %v18
  %v93 = vpack.c.b16 %v92, %v91
  %v111 = vunpack.c.l.b16 %v25
  %v112 = vunpack.c.l.b16 %v26
  %v113 = vunpack.c.l.b16 %v27
  %v114 = vunpack.c.l.b16 %v28
  %v115 = vunpack.c.l.b16 %v29
  %v116 = vunpack.c.l.b16 %v30
  %v117 = vunpack.c.l.b16 %v31
  %v118 = vunpack.c.l.b16 %v32
  %v119 = vunpack.c.l.b16 %v33
  %v120 = vunpack.c.l.b16 %v34
  %v121 = vunpack.c.l.b16 %v35
  %v122 = vunpack.c.l.b16 %v36
  %v123 = vunpack.c.l.b16 %v37
  %v124 = vunpack.c.l.b16 %v38
  %v125 = vunpack.c.l.b16 %v39
  %v126 = vunpack.c.l.b16 %v40
  %v127 = vpack.c.b16 %v112, %v111
  %v128 = vpack.c.b16 %v114, %v113
  %v129 = vpack.c.b16 %v116, %v115
  %v130 = vpack.c.b16 %v118, %v117
  %v131 = vpack.c.b16 %v120, %v119
  %v132 = vpack.c.b16 %v122, %v121
  %v133 = vpack.c.b16 %v124, %v123
  %v134 = vpack.c.b16 %v126, %v125
  %143 = vmatpush.bf16.msra.mxu0 %v134
  %144 = vmatpush.bf16.msra.mxu0 %v133
  %145 = vmatpush.bf16.msra.mxu0 %v132
  %146 = vmatpush.bf16.msra.mxu0 %v131
  %147 = vmatpush.bf16.msra.mxu0 %v130
  %148 = vmatpush.bf16.msra.mxu0 %v129
  %149 = vmatpush.bf16.msra.mxu0 %v128
  %150 = vmatpush.bf16.msra.mxu0 %v127
  %151 = vmatmul.bf16.gmra.mxu0 %v93
  %v152 = vpop.f32.mrf.mxu0
  %v153 = vadd.f32 0.0, %v152
  %v154 = vpop.f32.mrf.mxu0
  %v155 = vadd.f32 0.0, %v154
  %156 = vdwg.mxu0
  %v159 = vunpack.c.l.b16 %v19
  %v160 = vunpack.c.l.b16 %v20
  %v161 = vpack.c.b16 %v160, %v159
  %v179 = vunpack.c.l.b16 %v41
  %v180 = vunpack.c.l.b16 %v42
  %v181 = vunpack.c.l.b16 %v43
  %v182 = vunpack.c.l.b16 %v44
  %v183 = vunpack.c.l.b16 %v45
  %v184 = vunpack.c.l.b16 %v46
  %v185 = vunpack.c.l.b16 %v47
  %v186 = vunpack.c.l.b16 %v48
  %v187 = vunpack.c.l.b16 %v49
  %v188 = vunpack.c.l.b16 %v50
  %v189 = vunpack.c.l.b16 %v51
  %v190 = vunpack.c.l.b16 %v52
  %v191 = vunpack.c.l.b16 %v53
  %v192 = vunpack.c.l.b16 %v54
  %v193 = vunpack.c.l.b16 %v55
  %v194 = vunpack.c.l.b16 %v56
  %v195 = vpack.c.b16 %v180, %v179
  %v196 = vpack.c.b16 %v182, %v181
  %v197 = vpack.c.b16 %v184, %v183
  %v198 = vpack.c.b16 %v186, %v185
  %v199 = vpack.c.b16 %v188, %v187
  %v200 = vpack.c.b16 %v190, %v189
  %v201 = vpack.c.b16 %v192, %v191
  %v202 = vpack.c.b16 %v194, %v193
  %211 = vmatpush.bf16.msra.mxu0 %v202
  %212 = vmatpush.bf16.msra.mxu0 %v201
  %213 = vmatpush.bf16.msra.mxu0 %v200
  %214 = vmatpush.bf16.msra.mxu0 %v199
  %215 = vmatpush.bf16.msra.mxu0 %v198
  %216 = vmatpush.bf16.msra.mxu0 %v197
  %217 = vmatpush.bf16.msra.mxu0 %v196
  %218 = vmatpush.bf16.msra.mxu0 %v195
  %219 = vmatmul.bf16.gmra.mxu0 %v161
  %v220 = vpop.f32.mrf.mxu0
  %v221 = vadd.f32 0.0, %v220
  %v222 = vpop.f32.mrf.mxu0
  %v223 = vadd.f32 0.0, %v222
  %224 = vdwg.mxu0
  %v227 = vunpack.c.l.b16 %v21
  %v228 = vunpack.c.l.b16 %v22
  %v229 = vpack.c.b16 %v228, %v227
  %v247 = vunpack.c.l.b16 %v57
  %v248 = vunpack.c.l.b16 %v58
  %v249 = vunpack.c.l.b16 %v59
  %v250 = vunpack.c.l.b16 %v60
  %v251 = vunpack.c.l.b16 %v61
  %v252 = vunpack.c.l.b16 %v62
  %v253 = vunpack.c.l.b16 %v63
  %v254 = vunpack.c.l.b16 %v64
  %v255 = vunpack.c.l.b16 %v65
  %v256 = vunpack.c.l.b16 %v66
  %v257 = vunpack.c.l.b16 %v67
  %v258 = vunpack.c.l.b16 %v68
  %v259 = vunpack.c.l.b16 %v69
  %v260 = vunpack.c.l.b16 %v70
  %v261 = vunpack.c.l.b16 %v71
  %v262 = vunpack.c.l.b16 %v72
  %v263 = vpack.c.b16 %v248, %v247
  %v264 = vpack.c.b16 %v250, %v249
  %v265 = vpack.c.b16 %v252, %v251
  %v266 = vpack.c.b16 %v254, %v253
  %v267 = vpack.c.b16 %v256, %v255
  %v268 = vpack.c.b16 %v258, %v257
  %v269 = vpack.c.b16 %v260, %v259
  %v270 = vpack.c.b16 %v262, %v261
  %279 = vmatpush.bf16.msra.mxu0 %v270
  %280 = vmatpush.bf16.msra.mxu0 %v269
  %281 = vmatpush.bf16.msra.mxu0 %v268
  %282 = vmatpush.bf16.msra.mxu0 %v267
  %283 = vmatpush.bf16.msra.mxu0 %v266
  %284 = vmatpush.bf16.msra.mxu0 %v265
  %285 = vmatpush.bf16.msra.mxu0 %v264
  %286 = vmatpush.bf16.msra.mxu0 %v263
  %287 = vmatmul.bf16.gmra.mxu0 %v229
  %v288 = vpop.f32.mrf.mxu0
  %v289 = vadd.f32 0.0, %v288
  %v290 = vpop.f32.mrf.mxu0
  %v291 = vadd.f32 0.0, %v290
  %292 = vdwg.mxu0
  %v295 = vunpack.c.l.b16 %v23
  %v296 = vunpack.c.l.b16 %v24
  %v297 = vpack.c.b16 %v296, %v295
  %v315 = vunpack.c.l.b16 %v73
  %v316 = vunpack.c.l.b16 %v74
  %v317 = vunpack.c.l.b16 %v75
  %v318 = vunpack.c.l.b16 %v76
  %v319 = vunpack.c.l.b16 %v77
  %v320 = vunpack.c.l.b16 %v78
  %v321 = vunpack.c.l.b16 %v79
  %v322 = vunpack.c.l.b16 %v80
  %v323 = vunpack.c.l.b16 %v81
  %v324 = vunpack.c.l.b16 %v82
  %v325 = vunpack.c.l.b16 %v83
  %v326 = vunpack.c.l.b16 %v84
  %v327 = vunpack.c.l.b16 %v85
  %v328 = vunpack.c.l.b16 %v86
  %v329 = vunpack.c.l.b16 %v87
  %v330 = vunpack.c.l.b16 %v88
  %v331 = vpack.c.b16 %v316, %v315
  %v332 = vpack.c.b16 %v318, %v317
  %v333 = vpack.c.b16 %v320, %v319
  %v334 = vpack.c.b16 %v322, %v321
  %v335 = vpack.c.b16 %v324, %v323
  %v336 = vpack.c.b16 %v326, %v325
  %v337 = vpack.c.b16 %v328, %v327
  %v338 = vpack.c.b16 %v330, %v329
  %347 = vmatpush.bf16.msra.mxu0 %v338
  %348 = vmatpush.bf16.msra.mxu0 %v337
  %349 = vmatpush.bf16.msra.mxu0 %v336
  %350 = vmatpush.bf16.msra.mxu0 %v335
  %351 = vmatpush.bf16.msra.mxu0 %v334
  %352 = vmatpush.bf16.msra.mxu0 %v333
  %353 = vmatpush.bf16.msra.mxu0 %v332
  %354 = vmatpush.bf16.msra.mxu0 %v331
  %355 = vmatmul.bf16.gmra.mxu0 %v297
  %v356 = vpop.f32.mrf.mxu0
  %v357 = vadd.f32 0.0, %v356
  %v358 = vpop.f32.mrf.mxu0
  %v359 = vadd.f32 0.0, %v358
  %360 = vdwg.mxu0
  %361 = vadd.xlane.f32.xlu0 %v153
  %v362 = vpop.xlane.xlu0 %361
  %363 = vadd.xlane.f32.xlu0 %v155
  %v364 = vpop.xlane.xlu0 %363
  %365 = vadd.xlane.f32.xlu0 %v221
  %v366 = vpop.xlane.xlu0 %365
  %367 = vadd.xlane.f32.xlu0 %v223
  %v368 = vpop.xlane.xlu0 %367
  %369 = vadd.xlane.f32.xlu0 %v289
  %v370 = vpop.xlane.xlu0 %369
  %371 = vadd.xlane.f32.xlu0 %v291
  %v372 = vpop.xlane.xlu0 %371
  %373 = vadd.xlane.f32.xlu0 %v357
  %v374 = vpop.xlane.xlu0 %373
  %375 = vadd.xlane.f32.xlu0 %v359
  %v376 = vpop.xlane.xlu0 %375
  %v377 = vadd.f32 %v362, %v366
  %v378 = vadd.f32 %v377, %v370
  %v379 = vadd.f32 %v378, %v374
  %v380 = vadd.f32 %v364, %v368
  %v381 = vadd.f32 %v380, %v372
  %v382 = vadd.f32 %v381, %v376
  %v383 = vmul.f32 %v379, 0.001953125
  %v384 = vmul.f32 %v382, 0.001953125
  %v385 = vsub.f32 %v153, %v383
  %v386 = vsub.f32 %v155, %v384
  %v387 = vsub.f32 %v221, %v383
  %v388 = vsub.f32 %v223, %v384
  %v389 = vsub.f32 %v289, %v383
  %v390 = vsub.f32 %v291, %v384
  %v391 = vsub.f32 %v357, %v383
  %v392 = vsub.f32 %v359, %v384
  %v393 = vmul.f32 %v385, %v385
  %v394 = vmul.f32 %v386, %v386
  %v395 = vmul.f32 %v387, %v387
  %v396 = vmul.f32 %v388, %v388
  %v397 = vmul.f32 %v389, %v389
  %v398 = vmul.f32 %v390, %v390
  %v399 = vmul.f32 %v391, %v391
  %v400 = vmul.f32 %v392, %v392
  %401 = vadd.xlane.f32.xlu0 %v393
  %v402 = vpop.xlane.xlu0 %401
  %403 = vadd.xlane.f32.xlu0 %v394
  %v404 = vpop.xlane.xlu0 %403
  %405 = vadd.xlane.f32.xlu0 %v395
  %v406 = vpop.xlane.xlu0 %405
  %407 = vadd.xlane.f32.xlu0 %v396
  %v408 = vpop.xlane.xlu0 %407
  %409 = vadd.xlane.f32.xlu0 %v397
  %v410 = vpop.xlane.xlu0 %409
  %411 = vadd.xlane.f32.xlu0 %v398
  %v412 = vpop.xlane.xlu0 %411
  %413 = vadd.xlane.f32.xlu0 %v399
  %v414 = vpop.xlane.xlu0 %413
  %415 = vadd.xlane.f32.xlu0 %v400
  %v416 = vpop.xlane.xlu0 %415
  %v417 = vadd.f32 %v402, %v406
  %v418 = vadd.f32 %v417, %v410
  %v419 = vadd.f32 %v418, %v414
  %v420 = vadd.f32 %v404, %v408
  %v421 = vadd.f32 %v420, %v412
  %v422 = vadd.f32 %v421, %v416
  %v423 = vmul.f32 %v419, 0.001953125
  %v424 = vmul.f32 %v422, 0.001953125
  %v425 = vadd.f32 %v423, 1e-05
  %v426 = vadd.f32 %v424, 1e-05
  %v427 = vrsqrt.pop %v425
  %v428 = vmul.f32 %v427, %v425
  %v429 = vmul.f32 %v428, %v427
  %v430 = vmul.f32 0.5, %v429
  %v431 = vsub.f32 1.5, %v430
  %v432 = vmul.f32 %v427, %v431
  %vm433 = vweird.f32 %v425
  %vm434 = vweird.f32 %v427
  %vm435 = vmor %vm433, %vm434
  %v436 = vsel %vm435, %v427, %v432
  %v437 = vrsqrt.pop %v426
  %v438 = vmul.f32 %v437, %v426
  %v439 = vmul.f32 %v438, %v437
  %v440 = vmul.f32 0.5, %v439
  %v441 = vsub.f32 1.5, %v440
  %v442 = vmul.f32 %v437, %v441
  %vm443 = vweird.f32 %v426
  %vm444 = vweird.f32 %v437
  %vm445 = vmor %vm443, %vm444
  %v446 = vsel %vm445, %v437, %v442
  %v447 = vld [vmem:[%s2] sm:$0xff]
  %v448 = vld [vmem:[%s2 + $0x8] sm:$0xff]
  %v449 = vmul.f32 %v436, %v447
  %v450 = vmul.f32 %v446, %v448
  %452 = vset.pattern.permute.xlu0 0
  %453 = vperm.xlu0 %452, %v449
  %v454 = vpop.permute.xlu0 %453
  %457 = vset.pattern.permute.xlu0 0
  %458 = vperm.xlu0 %457, %v450
  %v459 = vpop.permute.xlu0 %458
  %v461 = vmul.f32 %v385, %v454
  %v462 = vmul.f32 %v386, %v459
  %v463 = vmul.f32 %v387, %v454
  %v464 = vmul.f32 %v388, %v459
  %v465 = vmul.f32 %v389, %v454
  %v466 = vmul.f32 %v390, %v459
  %v467 = vmul.f32 %v391, %v454
  %v468 = vmul.f32 %v392, %v459
  %v469 = vld [vmem:[%s3] sm:$0xff]
  %v470 = vld [vmem:[%s3 + $0x8] sm:$0xff]
  %472 = vset.pattern.permute.xlu0 0
  %473 = vperm.xlu0 %472, %v469
  %v474 = vpop.permute.xlu0 %473
  %477 = vset.pattern.permute.xlu0 0
  %478 = vperm.xlu0 %477, %v470
  %v479 = vpop.permute.xlu0 %478
  %v481 = vadd.f32 %v461, %v474
  %v482 = vadd.f32 %v462, %v479
  %v483 = vadd.f32 %v463, %v474
  %v484 = vadd.f32 %v464, %v479
  %v485 = vadd.f32 %v465, %v474
  %v486 = vadd.f32 %v466, %v479
  %v487 = vadd.f32 %v467, %v474
  %v488 = vadd.f32 %v468, %v479
  %v489 = vmax.f32 %v481, 0.0
  %v490 = vmax.f32 %v482, 0.0
  %v491 = vmax.f32 %v483, 0.0
  %v492 = vmax.f32 %v484, 0.0
  %v493 = vmax.f32 %v485, 0.0
  %v494 = vmax.f32 %v486, 0.0
  %v495 = vmax.f32 %v487, 0.0
  %v496 = vmax.f32 %v488, 0.0
  %v497 = vpack.c.bf16 %v489, %v489
  %v498 = vpack.c.bf16 %v490, %v490
  %v499 = vpack.c.bf16 %v491, %v491
  %v500 = vpack.c.bf16 %v492, %v492
  %v501 = vpack.c.bf16 %v493, %v493
  %v502 = vpack.c.bf16 %v494, %v494
  %v503 = vpack.c.bf16 %v495, %v495
  %v504 = vpack.c.bf16 %v496, %v496
  %505 = vst [vmem:[%s4] sm:$0xf] %v497
  %506 = vst [vmem:[%s4 + $0x4] sm:$0xf] %v498
  %507 = vst [vmem:[%s4 + $0x8] sm:$0xf] %v499
  %508 = vst [vmem:[%s4 + $0xc] sm:$0xf] %v500
  %509 = vst [vmem:[%s4 + $0x10] sm:$0xf] %v501
  %510 = vst [vmem:[%s4 + $0x14] sm:$0xf] %v502
  %511 = vst [vmem:[%s4 + $0x18] sm:$0xf] %v503
  %512 = vst [vmem:[%s4 + $0x1c] sm:$0xf] %v504
  // Predicated region
  $region18: #{generator_forward.7} parent=0 // pred_check
    _
  $region19: #{generator_forward.7} parent=0 // pred_check_branch
    %514 = sbr.rel (0) target = $region21
  $region20: #{generator_forward.7} parent=0 // pred_region
    _
  $region21: #{generator_forward.7} parent=0 // pred_fallthru
    _
  // Predicated region
  $region22: #{generator_forward.7} parent=0 // pred_check
    _
  $region23: #{generator_forward.7} parent=0 // pred_check_branch
    %516 = sbr.rel (0) target = $region25
  $region24: #{generator_forward.7} parent=0 // pred_region
    _
  $region25: #{generator_forward.7} parent=0 // pred_fallthru
    _

// kernel: generator_forward.8
$region0: #{generator_forward.8}
  #allocation0 [shape = 'u32[]', space=smem, size = 0x4, offset = 0x4, fixed_abs, tag = 'smem constant byte address 0x4 - core index']
  #allocation1 [shape = 'u32[72,128]{1,0:T(1,128)}', space=vmem, size = 0x9000, scoped, tag = 'internal scratch']
  %s0 = inlined_call_operand.vmem [shape: bf16[4,64,512], index: 0, kind: input, shape index: {}]
  %s1 = inlined_call_operand.vmem [shape: bf16[4,8,64], index: 1, kind: input, shape index: {}]
  %s2 = inlined_call_operand.vmem [shape: f32[1,8,1], index: 2, kind: input, shape index: {}]
  %s3 = inlined_call_operand.vmem [shape: f32[1,8,1], index: 3, kind: input, shape index: {}]
  %s4 = inlined_call_operand.vmem [shape: bf16[4,8,512], index: 4, kind: output, shape index: {}]
  %s5 = sld [smem:[#allocation0]]
  $region26: #{generator_forward.8} parent=0
    _
  %s7 = ssub.s32 1, %s5
  %s8 = scalar_select 0, %s7, %s5
  // Predicated region
  $region2: #{generator_forward.8} parent=0 // pred_check
    _
  $region3: #{generator_forward.8} parent=0 // pred_check_branch
    %10 = sbr.rel (0) target = $region5
  $region4: #{generator_forward.8} parent=0 // pred_region
    _
  $region5: #{generator_forward.8} parent=0 // pred_fallthru
    _
  // Predicated region
  $region6: #{generator_forward.8} parent=0 // pred_check
    _
  $region7: #{generator_forward.8} parent=0 // pred_check_branch
    %12 = sbr.rel (0) target = $region9
  $region8: #{generator_forward.8} parent=0 // pred_region
    _
  $region9: #{generator_forward.8} parent=0 // pred_fallthru
    _
  // Predicated region
  $region10: #{generator_forward.8} parent=0 // pred_check
    _
  $region11: #{generator_forward.8} parent=0 // pred_check_branch
    %14 = sbr.rel (0) target = $region13
  $region12: #{generator_forward.8} parent=0 // pred_region
    _
  $region13: #{generator_forward.8} parent=0 // pred_fallthru
    _
  // Predicated region
  $region14: #{generator_forward.8} parent=0 // pred_check
    _
  $region15: #{generator_forward.8} parent=0 // pred_check_branch
    %16 = sbr.rel (0) target = $region17
  $region16: #{generator_forward.8} parent=0 // pred_region
    _
  $region17: #{generator_forward.8} parent=0 // pred_fallthru
    _
  %v18 = vld [vmem:[%s1] sm:$0xf]
  %v19 = vld [vmem:[%s1 + $0x4] sm:$0xf]
  %v20 = vld [vmem:[%s1 + $0x8] sm:$0xf]
  %v21 = vld [vmem:[%s1 + $0xc] sm:$0xf]
  %v22 = vld [vmem:[%s0] sm:$0xff]
  %v23 = vld [vmem:[%s0 + $0x8] sm:$0xff]
  %v24 = vld [vmem:[%s0 + $0x10] sm:$0xff]
  %v25 = vld [vmem:[%s0 + $0x18] sm:$0xff]
  %v26 = vld [vmem:[%s0 + $0x20] sm:$0xff]
  %v27 = vld [vmem:[%s0 + $0x28] sm:$0xff]
  %v28 = vld [vmem:[%s0 + $0x30] sm:$0xff]
  %v29 = vld [vmem:[%s0 + $0x38] sm:$0xff]
  %v30 = vld [vmem:[%s0 + $0x40] sm:$0xff]
  %v31 = vld [vmem:[%s0 + $0x48] sm:$0xff]
  %v32 = vld [vmem:[%s0 + $0x50] sm:$0xff]
  %v33 = vld [vmem:[%s0 + $0x58] sm:$0xff]
  %v34 = vld [vmem:[%s0 + $0x60] sm:$0xff]
  %v35 = vld [vmem:[%s0 + $0x68] sm:$0xff]
  %v36 = vld [vmem:[%s0 + $0x70] sm:$0xff]
  %v37 = vld [vmem:[%s0 + $0x78] sm:$0xff]
  %v38 = vld [vmem:[%s0 + $0x80] sm:$0xff]
  %v39 = vld [vmem:[%s0 + $0x88] sm:$0xff]
  %v40 = vld [vmem:[%s0 + $0x90] sm:$0xff]
  %v41 = vld [vmem:[%s0 + $0x98] sm:$0xff]
  %v42 = vld [vmem:[%s0 + $0xa0] sm:$0xff]
  %v43 = vld [vmem:[%s0 + $0xa8] sm:$0xff]
  %v44 = vld [vmem:[%s0 + $0xb0] sm:$0xff]
  %v45 = vld [vmem:[%s0 + $0xb8] sm:$0xff]
  %v46 = vld [vmem:[%s0 + $0xc0] sm:$0xff]
  %v47 = vld [vmem:[%s0 + $0xc8] sm:$0xff]
  %v48 = vld [vmem:[%s0 + $0xd0] sm:$0xff]
  %v49 = vld [vmem:[%s0 + $0xd8] sm:$0xff]
  %v50 = vld [vmem:[%s0 + $0xe0] sm:$0xff]
  %v51 = vld [vmem:[%s0 + $0xe8] sm:$0xff]
  %v52 = vld [vmem:[%s0 + $0xf0] sm:$0xff]
  %v53 = vld [vmem:[%s0 + $0xf8] sm:$0xff]
  %v54 = vld [vmem:[%s0 + $0x100] sm:$0xff]
  %v55 = vld [vmem:[%s0 + $0x108] sm:$0xff]
  %v56 = vld [vmem:[%s0 + $0x110] sm:$0xff]
  %v57 = vld [vmem:[%s0 + $0x118] sm:$0xff]
  %v58 = vld [vmem:[%s0 + $0x120] sm:$0xff]
  %v59 = vld [vmem:[%s0 + $0x128] sm:$0xff]
  %v60 = vld [vmem:[%s0 + $0x130] sm:$0xff]
  %v61 = vld [vmem:[%s0 + $0x138] sm:$0xff]
  %v62 = vld [vmem:[%s0 + $0x140] sm:$0xff]
  %v63 = vld [vmem:[%s0 + $0x148] sm:$0xff]
  %v64 = vld [vmem:[%s0 + $0x150] sm:$0xff]
  %v65 = vld [vmem:[%s0 + $0x158] sm:$0xff]
  %v66 = vld [vmem:[%s0 + $0x160] sm:$0xff]
  %v67 = vld [vmem:[%s0 + $0x168] sm:$0xff]
  %v68 = vld [vmem:[%s0 + $0x170] sm:$0xff]
  %v69 = vld [vmem:[%s0 + $0x178] sm:$0xff]
  %v70 = vld [vmem:[%s0 + $0x180] sm:$0xff]
  %v71 = vld [vmem:[%s0 + $0x188] sm:$0xff]
  %v72 = vld [vmem:[%s0 + $0x190] sm:$0xff]
  %v73 = vld [vmem:[%s0 + $0x198] sm:$0xff]
  %v74 = vld [vmem:[%s0 + $0x1a0] sm:$0xff]
  %v75 = vld [vmem:[%s0 + $0x1a8] sm:$0xff]
  %v76 = vld [vmem:[%s0 + $0x1b0] sm:$0xff]
  %v77 = vld [vmem:[%s0 + $0x1b8] sm:$0xff]
  %v78 = vld [vmem:[%s0 + $0x1c0] sm:$0xff]
  %v79 = vld [vmem:[%s0 + $0x1c8] sm:$0xff]
  %v80 = vld [vmem:[%s0 + $0x1d0] sm:$0xff]
  %v81 = vld [vmem:[%s0 + $0x1d8] sm:$0xff]
  %v82 = vld [vmem:[%s0 + $0x1e0] sm:$0xff]
  %v83 = vld [vmem:[%s0 + $0x1e8] sm:$0xff]
  %v84 = vld [vmem:[%s0 + $0x1f0] sm:$0xff]
  %v85 = vld [vmem:[%s0 + $0x1f8] sm:$0xff]
  %v102 = vunpack.c.l.b16 %v22
  %v103 = vunpack.c.h.b16 %v22
  %v104 = vunpack.c.l.b16 %v23
  %v105 = vunpack.c.h.b16 %v23
  %v106 = vunpack.c.l.b16 %v24
  %v107 = vunpack.c.h.b16 %v24
  %v108 = vunpack.c.l.b16 %v25
  %v109 = vunpack.c.h.b16 %v25
  %v110 = vunpack.c.l.b16 %v26
  %v111 = vunpack.c.h.b16 %v26
  %v112 = vunpack.c.l.b16 %v27
  %v113 = vunpack.c.h.b16 %v27
  %v114 = vunpack.c.l.b16 %v28
  %v115 = vunpack.c.h.b16 %v28
  %v116 = vunpack.c.l.b16 %v29
  %v117 = vunpack.c.h.b16 %v29
  %v118 = vunpack.c.l.b16 %v30
  %v119 = vunpack.c.h.b16 %v30
  %v120 = vunpack.c.l.b16 %v31
  %v121 = vunpack.c.h.b16 %v31
  %v122 = vunpack.c.l.b16 %v32
  %v123 = vunpack.c.h.b16 %v32
  %v124 = vunpack.c.l.b16 %v33
  %v125 = vunpack.c.h.b16 %v33
  %v126 = vunpack.c.l.b16 %v34
  %v127 = vunpack.c.h.b16 %v34
  %v128 = vunpack.c.l.b16 %v35
  %v129 = vunpack.c.h.b16 %v35
  %v130 = vunpack.c.l.b16 %v36
  %v131 = vunpack.c.h.b16 %v36
  %v132 = vunpack.c.l.b16 %v37
  %v133 = vunpack.c.h.b16 %v37
  %v134 = vpack.c.b16 %v106, %v102
  %v135 = vpack.c.b16 %v107, %v103
  %v136 = vpack.c.b16 %v108, %v104
  %v137 = vpack.c.b16 %v109, %v105
  %v138 = vpack.c.b16 %v114, %v110
  %v139 = vpack.c.b16 %v115, %v111
  %v140 = vpack.c.b16 %v116, %v112
  %v141 = vpack.c.b16 %v117, %v113
  %v142 = vpack.c.b16 %v122, %v118
  %v143 = vpack.c.b16 %v123, %v119
  %v144 = vpack.c.b16 %v124, %v120
  %v145 = vpack.c.b16 %v125, %v121
  %v146 = vpack.c.b16 %v130, %v126
  %v147 = vpack.c.b16 %v131, %v127
  %v148 = vpack.c.b16 %v132, %v128
  %v149 = vpack.c.b16 %v133, %v129
  %vm166 = vcmask 523264
  %v168 = vsel %vm166, %v18, 0
  %170 = vmatpush.bf16.msra.mxu0 0
  %171 = vmatpush.bf16.msra.mxu0 0
  %172 = vmatpush.bf16.msra.mxu0 0
  %173 = vmatpush.bf16.msra.mxu0 0
  %174 = vmatpush.bf16.msra.mxu0 %v146
  %175 = vmatpush.bf16.msra.mxu0 %v142
  %176 = vmatpush.bf16.msra.mxu0 %v138
  %177 = vmatpush.bf16.msra.mxu0 %v134
  %178 = vmatmul.bf16.gmra.mxu0 %v168
  %v179 = vpop.f32.mrf.mxu0
  %v180 = vadd.f32 0.0, %v179
  %v181 = vpop.f32.mrf.mxu0
  %182 = vdwg.mxu0
  %183 = vmatpush.bf16.msra.mxu0 0
  %184 = vmatpush.bf16.msra.mxu0 0
  %185 = vmatpush.bf16.msra.mxu0 0
  %186 = vmatpush.bf16.msra.mxu0 0
  %187 = vmatpush.bf16.msra.mxu0 %v147
  %188 = vmatpush.bf16.msra.mxu0 %v143
  %189 = vmatpush.bf16.msra.mxu0 %v139
  %190 = vmatpush.bf16.msra.mxu0 %v135
  %191 = vmatmul.bf16.gmra.mxu0 %v168
  %v192 = vpop.f32.mrf.mxu0
  %v193 = vadd.f32 0.0, %v192
  %v194 = vpop.f32.mrf.mxu0
  %195 = vdwg.mxu0
  %196 = vmatpush.bf16.msra.mxu0 0
  %197 = vmatpush.bf16.msra.mxu0 0
  %198 = vmatpush.bf16.msra.mxu0 0
  %199 = vmatpush.bf16.msra.mxu0 0
  %200 = vmatpush.bf16.msra.mxu0 %v148
  %201 = vmatpush.bf16.msra.mxu0 %v144
  %202 = vmatpush.bf16.msra.mxu0 %v140
  %203 = vmatpush.bf16.msra.mxu0 %v136
  %204 = vmatmul.bf16.gmra.mxu0 %v168
  %v205 = vpop.f32.mrf.mxu0
  %v206 = vadd.f32 0.0, %v205
  %v207 = vpop.f32.mrf.mxu0
  %208 = vdwg.mxu0
  %209 = vmatpush.bf16.msra.mxu0 0
  %210 = vmatpush.bf16.msra.mxu0 0
  %211 = vmatpush.bf16.msra.mxu0 0
  %212 = vmatpush.bf16.msra.mxu0 0
  %213 = vmatpush.bf16.msra.mxu0 %v149
  %214 = vmatpush.bf16.msra.mxu0 %v145
  %215 = vmatpush.bf16.msra.mxu0 %v141
  %216 = vmatpush.bf16.msra.mxu0 %v137
  %217 = vmatmul.bf16.gmra.mxu0 %v168
  %v218 = vpop.f32.mrf.mxu0
  %v219 = vadd.f32 0.0, %v218
  %v220 = vpop.f32.mrf.mxu0
  %221 = vdwg.mxu0
  %v238 = vunpack.c.l.b16 %v38
  %v239 = vunpack.c.h.b16 %v38
  %v240 = vunpack.c.l.b16 %v39
  %v241 = vunpack.c.h.b16 %v39
  %v242 = vunpack.c.l.b16 %v40
  %v243 = vunpack.c.h.b16 %v40
  %v244 = vunpack.c.l.b16 %v41
  %v245 = vunpack.c.h.b16 %v41
  %v246 = vunpack.c.l.b16 %v42
  %v247 = vunpack.c.h.b16 %v42
  %v248 = vunpack.c.l.b16 %v43
  %v249 = vunpack.c.h.b16 %v43
  %v250 = vunpack.c.l.b16 %v44
  %v251 = vunpack.c.h.b16 %v44
  %v252 = vunpack.c.l.b16 %v45
  %v253 = vunpack.c.h.b16 %v45
  %v254 = vunpack.c.l.b16 %v46
  %v255 = vunpack.c.h.b16 %v46
  %v256 = vunpack.c.l.b16 %v47
  %v257 = vunpack.c.h.b16 %v47
  %v258 = vunpack.c.l.b16 %v48
  %v259 = vunpack.c.h.b16 %v48
  %v260 = vunpack.c.l.b16 %v49
  %v261 = vunpack.c.h.b16 %v49
  %v262 = vunpack.c.l.b16 %v50
  %v263 = vunpack.c.h.b16 %v50
  %v264 = vunpack.c.l.b16 %v51
  %v265 = vunpack.c.h.b16 %v51
  %v266 = vunpack.c.l.b16 %v52
  %v267 = vunpack.c.h.b16 %v52
  %v268 = vunpack.c.l.b16 %v53
  %v269 = vunpack.c.h.b16 %v53
  %v270 = vpack.c.b16 %v242, %v238
  %v271 = vpack.c.b16 %v243, %v239
  %v272 = vpack.c.b16 %v244, %v240
  %v273 = vpack.c.b16 %v245, %v241
  %v274 = vpack.c.b16 %v250, %v246
  %v275 = vpack.c.b16 %v251, %v247
  %v276 = vpack.c.b16 %v252, %v248
  %v277 = vpack.c.b16 %v253, %v249
  %v278 = vpack.c.b16 %v258, %v254
  %v279 = vpack.c.b16 %v259, %v255
  %v280 = vpack.c.b16 %v260, %v256
  %v281 = vpack.c.b16 %v261, %v257
  %v282 = vpack.c.b16 %v266, %v262
  %v283 = vpack.c.b16 %v267, %v263
  %v284 = vpack.c.b16 %v268, %v264
  %v285 = vpack.c.b16 %v269, %v265
  %v303 = vsel %vm166, %v19, 0
  %305 = vmatpush.bf16.msra.mxu0 0
  %306 = vmatpush.bf16.msra.mxu0 0
  %307 = vmatpush.bf16.msra.mxu0 0
  %308 = vmatpush.bf16.msra.mxu0 0
  %309 = vmatpush.bf16.msra.mxu0 %v282
  %310 = vmatpush.bf16.msra.mxu0 %v278
  %311 = vmatpush.bf16.msra.mxu0 %v274
  %312 = vmatpush.bf16.msra.mxu0 %v270
  %313 = vmatmul.bf16.gmra.mxu0 %v303
  %v314 = vpop.f32.mrf.mxu0
  %v315 = vadd.f32 0.0, %v314
  %v316 = vpop.f32.mrf.mxu0
  %317 = vdwg.mxu0
  %318 = vmatpush.bf16.msra.mxu0 0
  %319 = vmatpush.bf16.msra.mxu0 0
  %320 = vmatpush.bf16.msra.mxu0 0
  %321 = vmatpush.bf16.msra.mxu0 0
  %322 = vmatpush.bf16.msra.mxu0 %v283
  %323 = vmatpush.bf16.msra.mxu0 %v279
  %324 = vmatpush.bf16.msra.mxu0 %v275
  %325 = vmatpush.bf16.msra.mxu0 %v271
  %326 = vmatmul.bf16.gmra.mxu0 %v303
  %v327 = vpop.f32.mrf.mxu0
  %v328 = vadd.f32 0.0, %v327
  %v329 = vpop.f32.mrf.mxu0
  %330 = vdwg.mxu0
  %331 = vmatpush.bf16.msra.mxu0 0
  %332 = vmatpush.bf16.msra.mxu0 0
  %333 = vmatpush.bf16.msra.mxu0 0
  %334 = vmatpush.bf16.msra.mxu0 0
  %335 = vmatpush.bf16.msra.mxu0 %v284
  %336 = vmatpush.bf16.msra.mxu0 %v280
  %337 = vmatpush.bf16.msra.mxu0 %v276
  %338 = vmatpush.bf16.msra.mxu0 %v272
  %339 = vmatmul.bf16.gmra.mxu0 %v303
  %v340 = vpop.f32.mrf.mxu0
  %v341 = vadd.f32 0.0, %v340
  %v342 = vpop.f32.mrf.mxu0
  %343 = vdwg.mxu0
  %344 = vmatpush.bf16.msra.mxu0 0
  %345 = vmatpush.bf16.msra.mxu0 0
  %346 = vmatpush.bf16.msra.mxu0 0
  %347 = vmatpush.bf16.msra.mxu0 0
  %348 = vmatpush.bf16.msra.mxu0 %v285
  %349 = vmatpush.bf16.msra.mxu0 %v281
  %350 = vmatpush.bf16.msra.mxu0 %v277
  %351 = vmatpush.bf16.msra.mxu0 %v273
  %352 = vmatmul.bf16.gmra.mxu0 %v303
  %v353 = vpop.f32.mrf.mxu0
  %v354 = vadd.f32 0.0, %v353
  %v355 = vpop.f32.mrf.mxu0
  %356 = vdwg.mxu0
  %v373 = vunpack.c.l.b16 %v54
  %v374 = vunpack.c.h.b16 %v54
  %v375 = vunpack.c.l.b16 %v55
  %v376 = vunpack.c.h.b16 %v55
  %v377 = vunpack.c.l.b16 %v56
  %v378 = vunpack.c.h.b16 %v56
  %v379 = vunpack.c.l.b16 %v57
  %v380 = vunpack.c.h.b16 %v57
  %v381 = vunpack.c.l.b16 %v58
  %v382 = vunpack.c.h.b16 %v58
  %v383 = vunpack.c.l.b16 %v59
  %v384 = vunpack.c.h.b16 %v59
  %v385 = vunpack.c.l.b16 %v60
  %v386 = vunpack.c.h.b16 %v60
  %v387 = vunpack.c.l.b16 %v61
  %v388 = vunpack.c.h.b16 %v61
  %v389 = vunpack.c.l.b16 %v62
  %v390 = vunpack.c.h.b16 %v62
  %v391 = vunpack.c.l.b16 %v63
  %v392 = vunpack.c.h.b16 %v63
  %v393 = vunpack.c.l.b16 %v64
  %v394 = vunpack.c.h.b16 %v64
  %v395 = vunpack.c.l.b16 %v65
  %v396 = vunpack.c.h.b16 %v65
  %v397 = vunpack.c.l.b16 %v66
  %v398 = vunpack.c.h.b16 %v66
  %v399 = vunpack.c.l.b16 %v67
  %v400 = vunpack.c.h.b16 %v67
  %v401 = vunpack.c.l.b16 %v68
  %v402 = vunpack.c.h.b16 %v68
  %v403 = vunpack.c.l.b16 %v69
  %v404 = vunpack.c.h.b16 %v69
  %v405 = vpack.c.b16 %v377, %v373
  %v406 = vpack.c.b16 %v378, %v374
  %v407 = vpack.c.b16 %v379, %v375
  %v408 = vpack.c.b16 %v380, %v376
  %v409 = vpack.c.b16 %v385, %v381
  %v410 = vpack.c.b16 %v386, %v382
  %v411 = vpack.c.b16 %v387, %v383
  %v412 = vpack.c.b16 %v388, %v384
  %v413 = vpack.c.b16 %v393, %v389
  %v414 = vpack.c.b16 %v394, %v390
  %v415 = vpack.c.b16 %v395, %v391
  %v416 = vpack.c.b16 %v396, %v392
  %v417 = vpack.c.b16 %v401, %v397
  %v418 = vpack.c.b16 %v402, %v398
  %v419 = vpack.c.b16 %v403, %v399
  %v420 = vpack.c.b16 %v404, %v400
  %v438 = vsel %vm166, %v20, 0
  %440 = vmatpush.bf16.msra.mxu0 0
  %441 = vmatpush.bf16.msra.mxu0 0
  %442 = vmatpush.bf16.msra.mxu0 0
  %443 = vmatpush.bf16.msra.mxu0 0
  %444 = vmatpush.bf16.msra.mxu0 %v417
  %445 = vmatpush.bf16.msra.mxu0 %v413
  %446 = vmatpush.bf16.msra.mxu0 %v409
  %447 = vmatpush.bf16.msra.mxu0 %v405
  %448 = vmatmul.bf16.gmra.mxu0 %v438
  %v449 = vpop.f32.mrf.mxu0
  %v450 = vadd.f32 0.0, %v449
  %v451 = vpop.f32.mrf.mxu0
  %452 = vdwg.mxu0
  %453 = vmatpush.bf16.msra.mxu0 0
  %454 = vmatpush.bf16.msra.mxu0 0
  %455 = vmatpush.bf16.msra.mxu0 0
  %456 = vmatpush.bf16.msra.mxu0 0
  %457 = vmatpush.bf16.msra.mxu0 %v418
  %458 = vmatpush.bf16.msra.mxu0 %v414
  %459 = vmatpush.bf16.msra.mxu0 %v410
  %460 = vmatpush.bf16.msra.mxu0 %v406
  %461 = vmatmul.bf16.gmra.mxu0 %v438
  %v462 = vpop.f32.mrf.mxu0
  %v463 = vadd.f32 0.0, %v462
  %v464 = vpop.f32.mrf.mxu0
  %465 = vdwg.mxu0
  %466 = vmatpush.bf16.msra.mxu0 0
  %467 = vmatpush.bf16.msra.mxu0 0
  %468 = vmatpush.bf16.msra.mxu0 0
  %469 = vmatpush.bf16.msra.mxu0 0
  %470 = vmatpush.bf16.msra.mxu0 %v419
  %471 = vmatpush.bf16.msra.mxu0 %v415
  %472 = vmatpush.bf16.msra.mxu0 %v411
  %473 = vmatpush.bf16.msra.mxu0 %v407
  %474 = vmatmul.bf16.gmra.mxu0 %v438
  %v475 = vpop.f32.mrf.mxu0
  %v476 = vadd.f32 0.0, %v475
  %v477 = vpop.f32.mrf.mxu0
  %478 = vdwg.mxu0
  %479 = vmatpush.bf16.msra.mxu0 0
  %480 = vmatpush.bf16.msra.mxu0 0
  %481 = vmatpush.bf16.msra.mxu0 0
  %482 = vmatpush.bf16.msra.mxu0 0
  %483 = vmatpush.bf16.msra.mxu0 %v420
  %484 = vmatpush.bf16.msra.mxu0 %v416
  %485 = vmatpush.bf16.msra.mxu0 %v412
  %486 = vmatpush.bf16.msra.mxu0 %v408
  %487 = vmatmul.bf16.gmra.mxu0 %v438
  %v488 = vpop.f32.mrf.mxu0
  %v489 = vadd.f32 0.0, %v488
  %v490 = vpop.f32.mrf.mxu0
  %491 = vdwg.mxu0
  %v508 = vunpack.c.l.b16 %v70
  %v509 = vunpack.c.h.b16 %v70
  %v510 = vunpack.c.l.b16 %v71
  %v511 = vunpack.c.h.b16 %v71
  %v512 = vunpack.c.l.b16 %v72
  %v513 = vunpack.c.h.b16 %v72
  %v514 = vunpack.c.l.b16 %v73
  %v515 = vunpack.c.h.b16 %v73
  %v516 = vunpack.c.l.b16 %v74
  %v517 = vunpack.c.h.b16 %v74
  %v518 = vunpack.c.l.b16 %v75
  %v519 = vunpack.c.h.b16 %v75
  %v520 = vunpack.c.l.b16 %v76
  %v521 = vunpack.c.h.b16 %v76
  %v522 = vunpack.c.l.b16 %v77
  %v523 = vunpack.c.h.b16 %v77
  %v524 = vunpack.c.l.b16 %v78
  %v525 = vunpack.c.h.b16 %v78
  %v526 = vunpack.c.l.b16 %v79
  %v527 = vunpack.c.h.b16 %v79
  %v528 = vunpack.c.l.b16 %v80
  %v529 = vunpack.c.h.b16 %v80
  %v530 = vunpack.c.l.b16 %v81
  %v531 = vunpack.c.h.b16 %v81
  %v532 = vunpack.c.l.b16 %v82
  %v533 = vunpack.c.h.b16 %v82
  %v534 = vunpack.c.l.b16 %v83
  %v535 = vunpack.c.h.b16 %v83
  %v536 = vunpack.c.l.b16 %v84
  %v537 = vunpack.c.h.b16 %v84
  %v538 = vunpack.c.l.b16 %v85
  %v539 = vunpack.c.h.b16 %v85
  %v540 = vpack.c.b16 %v512, %v508
  %v541 = vpack.c.b16 %v513, %v509
  %v542 = vpack.c.b16 %v514, %v510
  %v543 = vpack.c.b16 %v515, %v511
  %v544 = vpack.c.b16 %v520, %v516
  %v545 = vpack.c.b16 %v521, %v517
  %v546 = vpack.c.b16 %v522, %v518
  %v547 = vpack.c.b16 %v523, %v519
  %v548 = vpack.c.b16 %v528, %v524
  %v549 = vpack.c.b16 %v529, %v525
  %v550 = vpack.c.b16 %v530, %v526
  %v551 = vpack.c.b16 %v531, %v527
  %v552 = vpack.c.b16 %v536, %v532
  %v553 = vpack.c.b16 %v537, %v533
  %v554 = vpack.c.b16 %v538, %v534
  %v555 = vpack.c.b16 %v539, %v535
  %v573 = vsel %vm166, %v21, 0
  %575 = vmatpush.bf16.msra.mxu0 0
  %576 = vmatpush.bf16.msra.mxu0 0
  %577 = vmatpush.bf16.msra.mxu0 0
  %578 = vmatpush.bf16.msra.mxu0 0
  %579 = vmatpush.bf16.msra.mxu0 %v552
  %580 = vmatpush.bf16.msra.mxu0 %v548
  %581 = vmatpush.bf16.msra.mxu0 %v544
  %582 = vmatpush.bf16.msra.mxu0 %v540
  %583 = vmatmul.bf16.gmra.mxu0 %v573
  %v584 = vpop.f32.mrf.mxu0
  %v585 = vadd.f32 0.0, %v584
  %v586 = vpop.f32.mrf.mxu0
  %587 = vdwg.mxu0
  %588 = vmatpush.bf16.msra.mxu0 0
  %589 = vmatpush.bf16.msra.mxu0 0
  %590 = vmatpush.bf16.msra.mxu0 0
  %591 = vmatpush.bf16.msra.mxu0 0
  %592 = vmatpush.bf16.msra.mxu0 %v553
  %593 = vmatpush.bf16.msra.mxu0 %v549
  %594 = vmatpush.bf16.msra.mxu0 %v545
  %595 = vmatpush.bf16.msra.mxu0 %v541
  %596 = vmatmul.bf16.gmra.mxu0 %v573
  %v597 = vpop.f32.mrf.mxu0
  %v598 = vadd.f32 0.0, %v597
  %v599 = vpop.f32.mrf.mxu0
  %600 = vdwg.mxu0
  %601 = vmatpush.bf16.msra.mxu0 0
  %602 = vmatpush.bf16.msra.mxu0 0
  %603 = vmatpush.bf16.msra.mxu0 0
  %604 = vmatpush.bf16.msra.mxu0 0
  %605 = vmatpush.bf16.msra.mxu0 %v554
  %606 = vmatpush.bf16.msra.mxu0 %v550
  %607 = vmatpush.bf16.msra.mxu0 %v546
  %608 = vmatpush.bf16.msra.mxu0 %v542
  %609 = vmatmul.bf16.gmra.mxu0 %v573
  %v610 = vpop.f32.mrf.mxu0
  %v611 = vadd.f32 0.0, %v610
  %v612 = vpop.f32.mrf.mxu0
  %613 = vdwg.mxu0
  %614 = vmatpush.bf16.msra.mxu0 0
  %615 = vmatpush.bf16.msra.mxu0 0
  %616 = vmatpush.bf16.msra.mxu0 0
  %617 = vmatpush.bf16.msra.mxu0 0
  %618 = vmatpush.bf16.msra.mxu0 %v555
  %619 = vmatpush.bf16.msra.mxu0 %v551
  %620 = vmatpush.bf16.msra.mxu0 %v547
  %621 = vmatpush.bf16.msra.mxu0 %v543
  %622 = vmatmul.bf16.gmra.mxu0 %v573
  %v623 = vpop.f32.mrf.mxu0
  %v624 = vadd.f32 0.0, %v623
  %v625 = vpop.f32.mrf.mxu0
  %626 = vdwg.mxu0
  %v627 = vadd.f32 %v180, %v193
  %v628 = vadd.f32 %v627, %v206
  %v629 = vadd.f32 %v628, %v219
  %630 = vadd.xlane.f32.xlu0 %v629
  %v631 = vpop.xlane.xlu0 %630
  %v632 = vadd.f32 %v315, %v328
  %v633 = vadd.f32 %v632, %v341
  %v634 = vadd.f32 %v633, %v354
  %635 = vadd.xlane.f32.xlu0 %v634
  %v636 = vpop.xlane.xlu0 %635
  %v637 = vadd.f32 %v450, %v463
  %v638 = vadd.f32 %v637, %v476
  %v639 = vadd.f32 %v638, %v489
  %640 = vadd.xlane.f32.xlu0 %v639
  %v641 = vpop.xlane.xlu0 %640
  %v642 = vadd.f32 %v585, %v598
  %v643 = vadd.f32 %v642, %v611
  %v644 = vadd.f32 %v643, %v624
  %645 = vadd.xlane.f32.xlu0 %v644
  %v646 = vpop.xlane.xlu0 %645
  %v647 = vadd.f32 %v631, %v636
  %v648 = vadd.f32 %v647, %v641
  %v649 = vadd.f32 %v648, %v646
  %v650 = vmul.f32 %v649, 0.00048828125
  %v651 = vsub.f32 %v180, %v650
  %v652 = vsub.f32 %v193, %v650
  %v653 = vsub.f32 %v206, %v650
  %v654 = vsub.f32 %v219, %v650
  %v655 = vsub.f32 %v315, %v650
  %v656 = vsub.f32 %v328, %v650
  %v657 = vsub.f32 %v341, %v650
  %v658 = vsub.f32 %v354, %v650
  %v659 = vsub.f32 %v450, %v650
  %v660 = vsub.f32 %v463, %v650
  %v661 = vsub.f32 %v476, %v650
  %v662 = vsub.f32 %v489, %v650
  %v663 = vsub.f32 %v585, %v650
  %v664 = vsub.f32 %v598, %v650
  %v665 = vsub.f32 %v611, %v650
  %v666 = vsub.f32 %v624, %v650
  %v667 = vmul.f32 %v651, %v651
  %v668 = vmul.f32 %v652, %v652
  %v669 = vmul.f32 %v653, %v653
  %v670 = vmul.f32 %v654, %v654
  %v671 = vmul.f32 %v655, %v655
  %v672 = vmul.f32 %v656, %v656
  %v673 = vmul.f32 %v657, %v657
  %v674 = vmul.f32 %v658, %v658
  %v675 = vmul.f32 %v659, %v659
  %v676 = vmul.f32 %v660, %v660
  %v677 = vmul.f32 %v661, %v661
  %v678 = vmul.f32 %v662, %v662
  %v679 = vmul.f32 %v663, %v663
  %v680 = vmul.f32 %v664, %v664
  %v681 = vmul.f32 %v665, %v665
  %v682 = vmul.f32 %v666, %v666
  %v683 = vadd.f32 %v667, %v668
  %v684 = vadd.f32 %v683, %v669
  %v685 = vadd.f32 %v684, %v670
  %686 = vadd.xlane.f32.xlu0 %v685
  %v687 = vpop.xlane.xlu0 %686
  %v688 = vadd.f32 %v671, %v672
  %v689 = vadd.f32 %v688, %v673
  %v690 = vadd.f32 %v689, %v674
  %691 = vadd.xlane.f32.xlu0 %v690
  %v692 = vpop.xlane.xlu0 %691
  %v693 = vadd.f32 %v675, %v676
  %v694 = vadd.f32 %v693, %v677
  %v695 = vadd.f32 %v694, %v678
  %696 = vadd.xlane.f32.xlu0 %v695
  %v697 = vpop.xlane.xlu0 %696
  %v698 = vadd.f32 %v679, %v680
  %v699 = vadd.f32 %v698, %v681
  %v700 = vadd.f32 %v699, %v682
  %701 = vadd.xlane.f32.xlu0 %v700
  %v702 = vpop.xlane.xlu0 %701
  %v703 = vadd.f32 %v687, %v692
  %v704 = vadd.f32 %v703, %v697
  %v705 = vadd.f32 %v704, %v702
  %v706 = vmul.f32 %v705, 0.00048828125
  %v707 = vadd.f32 %v706, 1e-05
  %v708 = vrsqrt.pop %v707
  %v709 = vmul.f32 %v708, %v707
  %v710 = vmul.f32 %v709, %v708
  %v711 = vmul.f32 0.5, %v710
  %v712 = vsub.f32 1.5, %v711
  %v713 = vmul.f32 %v708, %v712
  %vm714 = vweird.f32 %v707
  %vm715 = vweird.f32 %v708
  %vm716 = vmor %vm714, %vm715
  %v717 = vsel %vm716, %v708, %v713
  %v718 = vld [vmem:[%s2] sm:$0xff]
  %v719 = vmul.f32 %v717, %v718
  %721 = vset.pattern.permute.xlu0 0
  %722 = vperm.xlu0 %721, %v719
  %v723 = vpop.permute.xlu0 %722
  %v725 = vmul.f32 %v651, %v723
  %v726 = vmul.f32 %v652, %v723
  %v727 = vmul.f32 %v653, %v723
  %v728 = vmul.f32 %v654, %v723
  %v729 = vmul.f32 %v655, %v723
  %v730 = vmul.f32 %v656, %v723
  %v731 = vmul.f32 %v657, %v723
  %v732 = vmul.f32 %v658, %v723
  %v733 = vmul.f32 %v659, %v723
  %v734 = vmul.f32 %v660, %v723
  %v735 = vmul.f32 %v661, %v723
  %v736 = vmul.f32 %v662, %v723
  %v737 = vmul.f32 %v663, %v723
  %v738 = vmul.f32 %v664, %v723
  %v739 = vmul.f32 %v665, %v723
  %v740 = vmul.f32 %v666, %v723
  %v741 = vld [vmem:[%s3] sm:$0xff]
  %743 = vset.pattern.permute.xlu0 0
  %744 = vperm.xlu0 %743, %v741
  %v745 = vpop.permute.xlu0 %744
  %v747 = vadd.f32 %v725, %v745
  %v748 = vadd.f32 %v726, %v745
  %v749 = vadd.f32 %v727, %v745
  %v750 = vadd.f32 %v728, %v745
  %v751 = vadd.f32 %v729, %v745
  %v752 = vadd.f32 %v730, %v745
  %v753 = vadd.f32 %v731, %v745
  %v754 = vadd.f32 %v732, %v745
  %v755 = vadd.f32 %v733, %v745
  %v756 = vadd.f32 %v734, %v745
  %v757 = vadd.f32 %v735, %v745
  %v758 = vadd.f32 %v736, %v745
  %v759 = vadd.f32 %v737, %v745
  %v760 = vadd.f32 %v738, %v745
  %v761 = vadd.f32 %v739, %v745
  %v762 = vadd.f32 %v740, %v745
  %v763 = vmax.f32 %v747, 0.0
  %v764 = vmax.f32 %v748, 0.0
  %v765 = vmax.f32 %v749, 0.0
  %v766 = vmax.f32 %v750, 0.0
  %v767 = vmax.f32 %v751, 0.0
  %v768 = vmax.f32 %v752, 0.0
  %v769 = vmax.f32 %v753, 0.0
  %v770 = vmax.f32 %v754, 0.0
  %v771 = vmax.f32 %v755, 0.0
  %v772 = vmax.f32 %v756, 0.0
  %v773 = vmax.f32 %v757, 0.0
  %v774 = vmax.f32 %v758, 0.0
  %v775 = vmax.f32 %v759, 0.0
  %v776 = vmax.f32 %v760, 0.0
  %v777 = vmax.f32 %v761, 0.0
  %v778 = vmax.f32 %v762, 0.0
  %v779 = vpack.c.bf16 %v764, %v763
  %v780 = vpack.c.bf16 %v766, %v765
  %v781 = vpack.c.bf16 %v768, %v767
  %v782 = vpack.c.bf16 %v770, %v769
  %v783 = vpack.c.bf16 %v772, %v771
  %v784 = vpack.c.bf16 %v774, %v773
  %v785 = vpack.c.bf16 %v776, %v775
  %v786 = vpack.c.bf16 %v778, %v777
  %787 = vst [vmem:[%s4] sm:$0xff] %v779
  %788 = vst [vmem:[%s4 + $0x8] sm:$0xff] %v780
  %789 = vst [vmem:[%s4 + $0x10] sm:$0xff] %v781
  %790 = vst [vmem:[%s4 + $0x18] sm:$0xff] %v782
  %791 = vst [vmem:[%s4 + $0x20] sm:$0xff] %v783
  %792 = vst [vmem:[%s4 + $0x28] sm:$0xff] %v784
  %793 = vst [vmem:[%s4 + $0x30] sm:$0xff] %v785
  %794 = vst [vmem:[%s4 + $0x38] sm:$0xff] %v786
  // Predicated region
  $region18: #{generator_forward.8} parent=0 // pred_check
    _
  $region19: #{generator_forward.8} parent=0 // pred_check_branch
    %796 = sbr.rel (0) target = $region21
  $region20: #{generator_forward.8} parent=0 // pred_region
    _
  $region21: #{generator_forward.8} parent=0 // pred_fallthru
    _
  // Predicated region
  $region22: #{generator_forward.8} parent=0 // pred_check
    _
  $region23: #{generator_forward.8} parent=0 // pred_check_branch
    %798 = sbr.rel (0) target = $region25
  $region24: #{generator_forward.8} parent=0 // pred_region
    _
  $region25: #{generator_forward.8} parent=0 // pred_fallthru
    _

// kernel: generator_forward.9
$region0: #{generator_forward.9}
  #allocation0 [shape = 'u32[]', space=smem, size = 0x4, offset = 0x4, fixed_abs, tag = 'smem constant byte address 0x4 - core index']
  #allocation1 [shape = 'u32[72,128]{1,0:T(1,128)}', space=vmem, size = 0x9000, scoped, tag = 'internal scratch']
  %s0 = inlined_call_operand.vmem [shape: bf16[4,32,2048], index: 0, kind: input, shape index: {}]
  %s1 = inlined_call_operand.vmem [shape: bf16[4,3,32], index: 1, kind: input, shape index: {}]
  %s2 = inlined_call_operand.vmem [shape: f32[4,3,2048], index: 2, kind: output, shape index: {}]
  %s3 = sld [smem:[#allocation0]]
  $region18: #{generator_forward.9} parent=0
    _
  %s5 = ssub.s32 1, %s3
  %s6 = scalar_select 0, %s5, %s3
  // Predicated region
  $region2: #{generator_forward.9} parent=0 // pred_check
    _
  $region3: #{generator_forward.9} parent=0 // pred_check_branch
    %8 = sbr.rel (0) target = $region5
  $region4: #{generator_forward.9} parent=0 // pred_region
    _
  $region5: #{generator_forward.9} parent=0 // pred_fallthru
    _
  // Predicated region
  $region6: #{generator_forward.9} parent=0 // pred_check
    _
  $region7: #{generator_forward.9} parent=0 // pred_check_branch
    %10 = sbr.rel (0) target = $region9
  $region8: #{generator_forward.9} parent=0 // pred_region
    _
  $region9: #{generator_forward.9} parent=0 // pred_fallthru
    _
  %v12 = vld [vmem:[%s1] sm:$0x3]
  %v13 = vld [vmem:[%s1 + $0x2] sm:$0x3]
  %v14 = vld [vmem:[%s1 + $0x4] sm:$0x3]
  %v15 = vld [vmem:[%s1 + $0x6] sm:$0x3]
  %v16 = vld [vmem:[%s0] sm:$0xff]
  %v17 = vld [vmem:[%s0 + $0x8] sm:$0xff]
  %v18 = vld [vmem:[%s0 + $0x10] sm:$0xff]
  %v19 = vld [vmem:[%s0 + $0x18] sm:$0xff]
  %v20 = vld [vmem:[%s0 + $0x20] sm:$0xff]
  %v21 = vld [vmem:[%s0 + $0x28] sm:$0xff]
  %v22 = vld [vmem:[%s0 + $0x30] sm:$0xff]
  %v23 = vld [vmem:[%s0 + $0x38] sm:$0xff]
  %v24 = vld [vmem:[%s0 + $0x40] sm:$0xff]
  %v25 = vld [vmem:[%s0 + $0x48] sm:$0xff]
  %v26 = vld [vmem:[%s0 + $0x50] sm:$0xff]
  %v27 = vld [vmem:[%s0 + $0x58] sm:$0xff]
  %v28 = vld [vmem:[%s0 + $0x60] sm:$0xff]
  %v29 = vld [vmem:[%s0 + $0x68] sm:$0xff]
  %v30 = vld [vmem:[%s0 + $0x70] sm:$0xff]
  %v31 = vld [vmem:[%s0 + $0x78] sm:$0xff]
  %v32 = vld [vmem:[%s0 + $0x80] sm:$0xff]
  %v33 = vld [vmem:[%s0 + $0x88] sm:$0xff]
  %v34 = vld [vmem:[%s0 + $0x90] sm:$0xff]
  %v35 = vld [vmem:[%s0 + $0x98] sm:$0xff]
  %v36 = vld [vmem:[%s0 + $0xa0] sm:$0xff]
  %v37 = vld [vmem:[%s0 + $0xa8] sm:$0xff]
  %v38 = vld [vmem:[%s0 + $0xb0] sm:$0xff]
  %v39 = vld [vmem:[%s0 + $0xb8] sm:$0xff]
  %v40 = vld [vmem:[%s0 + $0xc0] sm:$0xff]
  %v41 = vld [vmem:[%s0 + $0xc8] sm:$0xff]
  %v42 = vld [vmem:[%s0 + $0xd0] sm:$0xff]
  %v43 = vld [vmem:[%s0 + $0xd8] sm:$0xff]
  %v44 = vld [vmem:[%s0 + $0xe0] sm:$0xff]
  %v45 = vld [vmem:[%s0 + $0xe8] sm:$0xff]
  %v46 = vld [vmem:[%s0 + $0xf0] sm:$0xff]
  %v47 = vld [vmem:[%s0 + $0xf8] sm:$0xff]
  %v48 = vld [vmem:[%s0 + $0x100] sm:$0xff]
  %v49 = vld [vmem:[%s0 + $0x108] sm:$0xff]
  %v50 = vld [vmem:[%s0 + $0x110] sm:$0xff]
  %v51 = vld [vmem:[%s0 + $0x118] sm:$0xff]
  %v52 = vld [vmem:[%s0 + $0x120] sm:$0xff]
  %v53 = vld [vmem:[%s0 + $0x128] sm:$0xff]
  %v54 = vld [vmem:[%s0 + $0x130] sm:$0xff]
  %v55 = vld [vmem:[%s0 + $0x138] sm:$0xff]
  %v56 = vld [vmem:[%s0 + $0x140] sm:$0xff]
  %v57 = vld [vmem:[%s0 + $0x148] sm:$0xff]
  %v58 = vld [vmem:[%s0 + $0x150] sm:$0xff]
  %v59 = vld [vmem:[%s0 + $0x158] sm:$0xff]
  %v60 = vld [vmem:[%s0 + $0x160] sm:$0xff]
  %v61 = vld [vmem:[%s0 + $0x168] sm:$0xff]
  %v62 = vld [vmem:[%s0 + $0x170] sm:$0xff]
  %v63 = vld [vmem:[%s0 + $0x178] sm:$0xff]
  %v64 = vld [vmem:[%s0 + $0x180] sm:$0xff]
  %v65 = vld [vmem:[%s0 + $0x188] sm:$0xff]
  %v66 = vld [vmem:[%s0 + $0x190] sm:$0xff]
  %v67 = vld [vmem:[%s0 + $0x198] sm:$0xff]
  %v68 = vld [vmem:[%s0 + $0x1a0] sm:$0xff]
  %v69 = vld [vmem:[%s0 + $0x1a8] sm:$0xff]
  %v70 = vld [vmem:[%s0 + $0x1b0] sm:$0xff]
  %v71 = vld [vmem:[%s0 + $0x1b8] sm:$0xff]
  %v72 = vld [vmem:[%s0 + $0x1c0] sm:$0xff]
  %v73 = vld [vmem:[%s0 + $0x1c8] sm:$0xff]
  %v74 = vld [vmem:[%s0 + $0x1d0] sm:$0xff]
  %v75 = vld [vmem:[%s0 + $0x1d8] sm:$0xff]
  %v76 = vld [vmem:[%s0 + $0x1e0] sm:$0xff]
  %v77 = vld [vmem:[%s0 + $0x1e8] sm:$0xff]
  %v78 = vld [vmem:[%s0 + $0x1f0] sm:$0xff]
  %v79 = vld [vmem:[%s0 + $0x1f8] sm:$0xff]
  %v80 = vld [vmem:[%s0 + $0x200] sm:$0xff]
  %v81 = vld [vmem:[%s0 + $0x208] sm:$0xff]
  %v82 = vld [vmem:[%s0 + $0x210] sm:$0xff]
  %v83 = vld [vmem:[%s0 + $0x218] sm:$0xff]
  %v84 = vld [vmem:[%s0 + $0x220] sm:$0xff]
  %v85 = vld [vmem:[%s0 + $0x228] sm:$0xff]
  %v86 = vld [vmem:[%s0 + $0x230] sm:$0xff]
  %v87 = vld [vmem:[%s0 + $0x238] sm:$0xff]
  %v88 = vld [vmem:[%s0 + $0x240] sm:$0xff]
  %v89 = vld [vmem:[%s0 + $0x248] sm:$0xff]
  %v90 = vld [vmem:[%s0 + $0x250] sm:$0xff]
  %v91 = vld [vmem:[%s0 + $0x258] sm:$0xff]
  %v92 = vld [vmem:[%s0 + $0x260] sm:$0xff]
  %v93 = vld [vmem:[%s0 + $0x268] sm:$0xff]
  %v94 = vld [vmem:[%s0 + $0x270] sm:$0xff]
  %v95 = vld [vmem:[%s0 + $0x278] sm:$0xff]
  %v96 = vld [vmem:[%s0 + $0x280] sm:$0xff]
  %v97 = vld [vmem:[%s0 + $0x288] sm:$0xff]
  %v98 = vld [vmem:[%s0 + $0x290] sm:$0xff]
  %v99 = vld [vmem:[%s0 + $0x298] sm:$0xff]
  %v100 = vld [vmem:[%s0 + $0x2a0] sm:$0xff]
  %v101 = vld [vmem:[%s0 + $0x2a8] sm:$0xff]
  %v102 = vld [vmem:[%s0 + $0x2b0] sm:$0xff]
  %v103 = vld [vmem:[%s0 + $0x2b8] sm:$0xff]
  %v104 = vld [vmem:[%s0 + $0x2c0] sm:$0xff]
  %v105 = vld [vmem:[%s0 + $0x2c8] sm:$0xff]
  %v106 = vld [vmem:[%s0 + $0x2d0] sm:$0xff]
  %v107 = vld [vmem:[%s0 + $0x2d8] sm:$0xff]
  %v108 = vld [vmem:[%s0 + $0x2e0] sm:$0xff]
  %v109 = vld [vmem:[%s0 + $0x2e8] sm:$0xff]
  %v110 = vld [vmem:[%s0 + $0x2f0] sm:$0xff]
  %v111 = vld [vmem:[%s0 + $0x2f8] sm:$0xff]
  %v112 = vld [vmem:[%s0 + $0x300] sm:$0xff]
  %v113 = vld [vmem:[%s0 + $0x308] sm:$0xff]
  %v114 = vld [vmem:[%s0 + $0x310] sm:$0xff]
  %v115 = vld [vmem:[%s0 + $0x318] sm:$0xff]
  %v116 = vld [vmem:[%s0 + $0x320] sm:$0xff]
  %v117 = vld [vmem:[%s0 + $0x328] sm:$0xff]
  %v118 = vld [vmem:[%s0 + $0x330] sm:$0xff]
  %v119 = vld [vmem:[%s0 + $0x338] sm:$0xff]
  %v120 = vld [vmem:[%s0 + $0x340] sm:$0xff]
  %v121 = vld [vmem:[%s0 + $0x348] sm:$0xff]
  %v122 = vld [vmem:[%s0 + $0x350] sm:$0xff]
  %v123 = vld [vmem:[%s0 + $0x358] sm:$0xff]
  %v124 = vld [vmem:[%s0 + $0x360] sm:$0xff]
  %v125 = vld [vmem:[%s0 + $0x368] sm:$0xff]
  %v126 = vld [vmem:[%s0 + $0x370] sm:$0xff]
  %v127 = vld [vmem:[%s0 + $0x378] sm:$0xff]
  %v128 = vld [vmem:[%s0 + $0x380] sm:$0xff]
  %v129 = vld [vmem:[%s0 + $0x388] sm:$0xff]
  %v130 = vld [vmem:[%s0 + $0x390] sm:$0xff]
  %v131 = vld [vmem:[%s0 + $0x398] sm:$0xff]
  %v132 = vld [vmem:[%s0 + $0x3a0] sm:$0xff]
  %v133 = vld [vmem:[%s0 + $0x3a8] sm:$0xff]
  %v134 = vld [vmem:[%s0 + $0x3b0] sm:$0xff]
  %v135 = vld [vmem:[%s0 + $0x3b8] sm:$0xff]
  %v136 = vld [vmem:[%s0 + $0x3c0] sm:$0xff]
  %v137 = vld [vmem:[%s0 + $0x3c8] sm:$0xff]
  %v138 = vld [vmem:[%s0 + $0x3d0] sm:$0xff]
  %v139 = vld [vmem:[%s0 + $0x3d8] sm:$0xff]
  %v140 = vld [vmem:[%s0 + $0x3e0] sm:$0xff]
  %v141 = vld [vmem:[%s0 + $0x3e8] sm:$0xff]
  %v142 = vld [vmem:[%s0 + $0x3f0] sm:$0xff]
  %v143 = vld [vmem:[%s0 + $0x3f8] sm:$0xff]
  %v176 = vunpack.c.l.b16 %v16
  %v177 = vunpack.c.h.b16 %v16
  %v178 = vunpack.c.l.b16 %v17
  %v179 = vunpack.c.h.b16 %v17
  %v180 = vunpack.c.l.b16 %v18
  %v181 = vunpack.c.h.b16 %v18
  %v182 = vunpack.c.l.b16 %v19
  %v183 = vunpack.c.h.b16 %v19
  %v184 = vunpack.c.l.b16 %v20
  %v185 = vunpack.c.h.b16 %v20
  %v186 = vunpack.c.l.b16 %v21
  %v187 = vunpack.c.h.b16 %v21
  %v188 = vunpack.c.l.b16 %v22
  %v189 = vunpack.c.h.b16 %v22
  %v190 = vunpack.c.l.b16 %v23
  %v191 = vunpack.c.h.b16 %v23
  %v192 = vunpack.c.l.b16 %v24
  %v193 = vunpack.c.h.b16 %v24
  %v194 = vunpack.c.l.b16 %v25
  %v195 = vunpack.c.h.b16 %v25
  %v196 = vunpack.c.l.b16 %v26
  %v197 = vunpack.c.h.b16 %v26
  %v198 = vunpack.c.l.b16 %v27
  %v199 = vunpack.c.h.b16 %v27
  %v200 = vunpack.c.l.b16 %v28
  %v201 = vunpack.c.h.b16 %v28
  %v202 = vunpack.c.l.b16 %v29
  %v203 = vunpack.c.h.b16 %v29
  %v204 = vunpack.c.l.b16 %v30
  %v205 = vunpack.c.h.b16 %v30
  %v206 = vunpack.c.l.b16 %v31
  %v207 = vunpack.c.h.b16 %v31
  %v208 = vunpack.c.l.b16 %v32
  %v209 = vunpack.c.h.b16 %v32
  %v210 = vunpack.c.l.b16 %v33
  %v211 = vunpack.c.h.b16 %v33
  %v212 = vunpack.c.l.b16 %v34
  %v213 = vunpack.c.h.b16 %v34
  %v214 = vunpack.c.l.b16 %v35
  %v215 = vunpack.c.h.b16 %v35
  %v216 = vunpack.c.l.b16 %v36
  %v217 = vunpack.c.h.b16 %v36
  %v218 = vunpack.c.l.b16 %v37
  %v219 = vunpack.c.h.b16 %v37
  %v220 = vunpack.c.l.b16 %v38
  %v221 = vunpack.c.h.b16 %v38
  %v222 = vunpack.c.l.b16 %v39
  %v223 = vunpack.c.h.b16 %v39
  %v224 = vunpack.c.l.b16 %v40
  %v225 = vunpack.c.h.b16 %v40
  %v226 = vunpack.c.l.b16 %v41
  %v227 = vunpack.c.h.b16 %v41
  %v228 = vunpack.c.l.b16 %v42
  %v229 = vunpack.c.h.b16 %v42
  %v230 = vunpack.c.l.b16 %v43
  %v231 = vunpack.c.h.b16 %v43
  %v232 = vunpack.c.l.b16 %v44
  %v233 = vunpack.c.h.b16 %v44
  %v234 = vunpack.c.l.b16 %v45
  %v235 = vunpack.c.h.b16 %v45
  %v236 = vunpack.c.l.b16 %v46
  %v237 = vunpack.c.h.b16 %v46
  %v238 = vunpack.c.l.b16 %v47
  %v239 = vunpack.c.h.b16 %v47
  %v240 = vpack.c.b16 %v192, %v176
  %v241 = vpack.c.b16 %v193, %v177
  %v242 = vpack.c.b16 %v194, %v178
  %v243 = vpack.c.b16 %v195, %v179
  %v244 = vpack.c.b16 %v196, %v180
  %v245 = vpack.c.b16 %v197, %v181
  %v246 = vpack.c.b16 %v198, %v182
  %v247 = vpack.c.b16 %v199, %v183
  %v248 = vpack.c.b16 %v200, %v184
  %v249 = vpack.c.b16 %v201, %v185
  %v250 = vpack.c.b16 %v202, %v186
  %v251 = vpack.c.b16 %v203, %v187
  %v252 = vpack.c.b16 %v204, %v188
  %v253 = vpack.c.b16 %v205, %v189
  %v254 = vpack.c.b16 %v206, %v190
  %v255 = vpack.c.b16 %v207, %v191
  %v256 = vpack.c.b16 %v224, %v208
  %v257 = vpack.c.b16 %v225, %v209
  %v258 = vpack.c.b16 %v226, %v210
  %v259 = vpack.c.b16 %v227, %v211
  %v260 = vpack.c.b16 %v228, %v212
  %v261 = vpack.c.b16 %v229, %v213
  %v262 = vpack.c.b16 %v230, %v214
  %v263 = vpack.c.b16 %v231, %v215
  %v264 = vpack.c.b16 %v232, %v216
  %v265 = vpack.c.b16 %v233, %v217
  %v266 = vpack.c.b16 %v234, %v218
  %v267 = vpack.c.b16 %v235, %v219
  %v268 = vpack.c.b16 %v236, %v220
  %v269 = vpack.c.b16 %v237, %v221
  %v270 = vpack.c.b16 %v238, %v222
  %v271 = vpack.c.b16 %v239, %v223
  %vm304 = vcmask 261120
  %v306 = vsel %vm304, %v12, 0
  %308 = vmatpush.bf16.msra.mxu0 0
  %309 = vmatpush.bf16.msra.mxu0 0
  %310 = vmatpush.bf16.msra.mxu0 0
  %311 = vmatpush.bf16.msra.mxu0 0
  %312 = vmatpush.bf16.msra.mxu0 0
  %313 = vmatpush.bf16.msra.mxu0 0
  %314 = vmatpush.bf16.msra.mxu0 %v256
  %315 = vmatpush.bf16.msra.mxu0 %v240
  %316 = vmatmul.bf16.gmra.mxu0 %v306
  %v317 = vpop.f32.mrf.mxu0
  %v318 = vadd.f32 0.0, %v317
  %v319 = vpop.f32.mrf.mxu0
  %320 = vdwg.mxu0
  %321 = vmatpush.bf16.msra.mxu0 0
  %322 = vmatpush.bf16.msra.mxu0 0
  %323 = vmatpush.bf16.msra.mxu0 0
  %324 = vmatpush.bf16.msra.mxu0 0
  %325 = vmatpush.bf16.msra.mxu0 0
  %326 = vmatpush.bf16.msra.mxu0 0
  %327 = vmatpush.bf16.msra.mxu0 %v257
  %328 = vmatpush.bf16.msra.mxu0 %v241
  %329 = vmatmul.bf16.gmra.mxu0 %v306
  %v330 = vpop.f32.mrf.mxu0
  %v331 = vadd.f32 0.0, %v330
  %v332 = vpop.f32.mrf.mxu0
  %333 = vdwg.mxu0
  %334 = vmatpush.bf16.msra.mxu0 0
  %335 = vmatpush.bf16.msra.mxu0 0
  %336 = vmatpush.bf16.msra.mxu0 0
  %337 = vmatpush.bf16.msra.mxu0 0
  %338 = vmatpush.bf16.msra.mxu0 0
  %339 = vmatpush.bf16.msra.mxu0 0
  %340 = vmatpush.bf16.msra.mxu0 %v258
  %341 = vmatpush.bf16.msra.mxu0 %v242
  %342 = vmatmul.bf16.gmra.mxu0 %v306
  %v343 = vpop.f32.mrf.mxu0
  %v344 = vadd.f32 0.0, %v343
  %v345 = vpop.f32.mrf.mxu0
  %346 = vdwg.mxu0
  %347 = vmatpush.bf16.msra.mxu0 0
  %348 = vmatpush.bf16.msra.mxu0 0
  %349 = vmatpush.bf16.msra.mxu0 0
  %350 = vmatpush.bf16.msra.mxu0 0
  %351 = vmatpush.bf16.msra.mxu0 0
  %352 = vmatpush.bf16.msra.mxu0 0
  %353 = vmatpush.bf16.msra.mxu0 %v259
  %354 = vmatpush.bf16.msra.mxu0 %v243
  %355 = vmatmul.bf16.gmra.mxu0 %v306
  %v356 = vpop.f32.mrf.mxu0
  %v357 = vadd.f32 0.0, %v356
  %v358 = vpop.f32.mrf.mxu0
  %359 = vdwg.mxu0
  %360 = vmatpush.bf16.msra.mxu0 0
  %361 = vmatpush.bf16.msra.mxu0 0
  %362 = vmatpush.bf16.msra.mxu0 0
  %363 = vmatpush.bf16.msra.mxu0 0
  %364 = vmatpush.bf16.msra.mxu0 0
  %365 = vmatpush.bf16.msra.mxu0 0
  %366 = vmatpush.bf16.msra.mxu0 %v260
  %367 = vmatpush.bf16.msra.mxu0 %v244
  %368 = vmatmul.bf16.gmra.mxu0 %v306
  %v369 = vpop.f32.mrf.mxu0
  %v370 = vadd.f32 0.0, %v369
  %v371 = vpop.f32.mrf.mxu0
  %372 = vdwg.mxu0
  %373 = vmatpush.bf16.msra.mxu0 0
  %374 = vmatpush.bf16.msra.mxu0 0
  %375 = vmatpush.bf16.msra.mxu0 0
  %376 = vmatpush.bf16.msra.mxu0 0
  %377 = vmatpush.bf16.msra.mxu0 0
  %378 = vmatpush.bf16.msra.mxu0 0
  %379 = vmatpush.bf16.msra.mxu0 %v261
  %380 = vmatpush.bf16.msra.mxu0 %v245
  %381 = vmatmul.bf16.gmra.mxu0 %v306
  %v382 = vpop.f32.mrf.mxu0
  %v383 = vadd.f32 0.0, %v382
  %v384 = vpop.f32.mrf.mxu0
  %385 = vdwg.mxu0
  %386 = vmatpush.bf16.msra.mxu0 0
  %387 = vmatpush.bf16.msra.mxu0 0
  %388 = vmatpush.bf16.msra.mxu0 0
  %389 = vmatpush.bf16.msra.mxu0 0
  %390 = vmatpush.bf16.msra.mxu0 0
  %391 = vmatpush.bf16.msra.mxu0 0
  %392 = vmatpush.bf16.msra.mxu0 %v262
  %393 = vmatpush.bf16.msra.mxu0 %v246
  %394 = vmatmul.bf16.gmra.mxu0 %v306
  %v395 = vpop.f32.mrf.mxu0
  %v396 = vadd.f32 0.0, %v395
  %v397 = vpop.f32.mrf.mxu0
  %398 = vdwg.mxu0
  %399 = vmatpush.bf16.msra.mxu0 0
  %400 = vmatpush.bf16.msra.mxu0 0
  %401 = vmatpush.bf16.msra.mxu0 0
  %402 = vmatpush.bf16.msra.mxu0 0
  %403 = vmatpush.bf16.msra.mxu0 0
  %404 = vmatpush.bf16.msra.mxu0 0
  %405 = vmatpush.bf16.msra.mxu0 %v263
  %406 = vmatpush.bf16.msra.mxu0 %v247
  %407 = vmatmul.bf16.gmra.mxu0 %v306
  %v408 = vpop.f32.mrf.mxu0
  %v409 = vadd.f32 0.0, %v408
  %v410 = vpop.f32.mrf.mxu0
  %411 = vdwg.mxu0
  %412 = vmatpush.bf16.msra.mxu0 0
  %413 = vmatpush.bf16.msra.mxu0 0
  %414 = vmatpush.bf16.msra.mxu0 0
  %415 = vmatpush.bf16.msra.mxu0 0
  %416 = vmatpush.bf16.msra.mxu0 0
  %417 = vmatpush.bf16.msra.mxu0 0
  %418 = vmatpush.bf16.msra.mxu0 %v264
  %419 = vmatpush.bf16.msra.mxu0 %v248
  %420 = vmatmul.bf16.gmra.mxu0 %v306
  %v421 = vpop.f32.mrf.mxu0
  %v422 = vadd.f32 0.0, %v421
  %v423 = vpop.f32.mrf.mxu0
  %424 = vdwg.mxu0
  %425 = vmatpush.bf16.msra.mxu0 0
  %426 = vmatpush.bf16.msra.mxu0 0
  %427 = vmatpush.bf16.msra.mxu0 0
  %428 = vmatpush.bf16.msra.mxu0 0
  %429 = vmatpush.bf16.msra.mxu0 0
  %430 = vmatpush.bf16.msra.mxu0 0
  %431 = vmatpush.bf16.msra.mxu0 %v265
  %432 = vmatpush.bf16.msra.mxu0 %v249
  %433 = vmatmul.bf16.gmra.mxu0 %v306
  %v434 = vpop.f32.mrf.mxu0
  %v435 = vadd.f32 0.0, %v434
  %v436 = vpop.f32.mrf.mxu0
  %437 = vdwg.mxu0
  %438 = vmatpush.bf16.msra.mxu0 0
  %439 = vmatpush.bf16.msra.mxu0 0
  %440 = vmatpush.bf16.msra.mxu0 0
  %441 = vmatpush.bf16.msra.mxu0 0
  %442 = vmatpush.bf16.msra.mxu0 0
  %443 = vmatpush.bf16.msra.mxu0 0
  %444 = vmatpush.bf16.msra.mxu0 %v266
  %445 = vmatpush.bf16.msra.mxu0 %v250
  %446 = vmatmul.bf16.gmra.mxu0 %v306
  %v447 = vpop.f32.mrf.mxu0
  %v448 = vadd.f32 0.0, %v447
  %v449 = vpop.f32.mrf.mxu0
  %450 = vdwg.mxu0
  %451 = vmatpush.bf16.msra.mxu0 0
  %452 = vmatpush.bf16.msra.mxu0 0
  %453 = vmatpush.bf16.msra.mxu0 0
  %454 = vmatpush.bf16.msra.mxu0 0
  %455 = vmatpush.bf16.msra.mxu0 0
  %456 = vmatpush.bf16.msra.mxu0 0
  %457 = vmatpush.bf16.msra.mxu0 %v267
  %458 = vmatpush.bf16.msra.mxu0 %v251
  %459 = vmatmul.bf16.gmra.mxu0 %v306
  %v460 = vpop.f32.mrf.mxu0
  %v461 = vadd.f32 0.0, %v460
  %v462 = vpop.f32.mrf.mxu0
  %463 = vdwg.mxu0
  %464 = vmatpush.bf16.msra.mxu0 0
  %465 = vmatpush.bf16.msra.mxu0 0
  %466 = vmatpush.bf16.msra.mxu0 0
  %467 = vmatpush.bf16.msra.mxu0 0
  %468 = vmatpush.bf16.msra.mxu0 0
  %469 = vmatpush.bf16.msra.mxu0 0
  %470 = vmatpush.bf16.msra.mxu0 %v268
  %471 = vmatpush.bf16.msra.mxu0 %v252
  %472 = vmatmul.bf16.gmra.mxu0 %v306
  %v473 = vpop.f32.mrf.mxu0
  %v474 = vadd.f32 0.0, %v473
  %v475 = vpop.f32.mrf.mxu0
  %476 = vdwg.mxu0
  %477 = vmatpush.bf16.msra.mxu0 0
  %478 = vmatpush.bf16.msra.mxu0 0
  %479 = vmatpush.bf16.msra.mxu0 0
  %480 = vmatpush.bf16.msra.mxu0 0
  %481 = vmatpush.bf16.msra.mxu0 0
  %482 = vmatpush.bf16.msra.mxu0 0
  %483 = vmatpush.bf16.msra.mxu0 %v269
  %484 = vmatpush.bf16.msra.mxu0 %v253
  %485 = vmatmul.bf16.gmra.mxu0 %v306
  %v486 = vpop.f32.mrf.mxu0
  %v487 = vadd.f32 0.0, %v486
  %v488 = vpop.f32.mrf.mxu0
  %489 = vdwg.mxu0
  %490 = vmatpush.bf16.msra.mxu0 0
  %491 = vmatpush.bf16.msra.mxu0 0
  %492 = vmatpush.bf16.msra.mxu0 0
  %493 = vmatpush.bf16.msra.mxu0 0
  %494 = vmatpush.bf16.msra.mxu0 0
  %495 = vmatpush.bf16.msra.mxu0 0
  %496 = vmatpush.bf16.msra.mxu0 %v270
  %497 = vmatpush.bf16.msra.mxu0 %v254
  %498 = vmatmul.bf16.gmra.mxu0 %v306
  %v499 = vpop.f32.mrf.mxu0
  %v500 = vadd.f32 0.0, %v499
  %v501 = vpop.f32.mrf.mxu0
  %502 = vdwg.mxu0
  %503 = vmatpush.bf16.msra.mxu0 0
  %504 = vmatpush.bf16.msra.mxu0 0
  %505 = vmatpush.bf16.msra.mxu0 0
  %506 = vmatpush.bf16.msra.mxu0 0
  %507 = vmatpush.bf16.msra.mxu0 0
  %508 = vmatpush.bf16.msra.mxu0 0
  %509 = vmatpush.bf16.msra.mxu0 %v271
  %510 = vmatpush.bf16.msra.mxu0 %v255
  %511 = vmatmul.bf16.gmra.mxu0 %v306
  %v512 = vpop.f32.mrf.mxu0
  %v513 = vadd.f32 0.0, %v512
  %v514 = vpop.f32.mrf.mxu0
  %515 = vdwg.mxu0
  %v548 = vunpack.c.l.b16 %v48
  %v549 = vunpack.c.h.b16 %v48
  %v550 = vunpack.c.l.b16 %v49
  %v551 = vunpack.c.h.b16 %v49
  %v552 = vunpack.c.l.b16 %v50
  %v553 = vunpack.c.h.b16 %v50
  %v554 = vunpack.c.l.b16 %v51
  %v555 = vunpack.c.h.b16 %v51
  %v556 = vunpack.c.l.b16 %v52
  %v557 = vunpack.c.h.b16 %v52
  %v558 = vunpack.c.l.b16 %v53
  %v559 = vunpack.c.h.b16 %v53
  %v560 = vunpack.c.l.b16 %v54
  %v561 = vunpack.c.h.b16 %v54
  %v562 = vunpack.c.l.b16 %v55
  %v563 = vunpack.c.h.b16 %v55
  %v564 = vunpack.c.l.b16 %v56
  %v565 = vunpack.c.h.b16 %v56
  %v566 = vunpack.c.l.b16 %v57
  %v567 = vunpack.c.h.b16 %v57
  %v568 = vunpack.c.l.b16 %v58
  %v569 = vunpack.c.h.b16 %v58
  %v570 = vunpack.c.l.b16 %v59
  %v571 = vunpack.c.h.b16 %v59
  %v572 = vunpack.c.l.b16 %v60
  %v573 = vunpack.c.h.b16 %v60
  %v574 = vunpack.c.l.b16 %v61
  %v575 = vunpack.c.h.b16 %v61
  %v576 = vunpack.c.l.b16 %v62
  %v577 = vunpack.c.h.b16 %v62
  %v578 = vunpack.c.l.b16 %v63
  %v579 = vunpack.c.h.b16 %v63
  %v580 = vunpack.c.l.b16 %v64
  %v581 = vunpack.c.h.b16 %v64
  %v582 = vunpack.c.l.b16 %v65
  %v583 = vunpack.c.h.b16 %v65
  %v584 = vunpack.c.l.b16 %v66
  %v585 = vunpack.c.h.b16 %v66
  %v586 = vunpack.c.l.b16 %v67
  %v587 = vunpack.c.h.b16 %v67
  %v588 = vunpack.c.l.b16 %v68
  %v589 = vunpack.c.h.b16 %v68
  %v590 = vunpack.c.l.b16 %v69
  %v591 = vunpack.c.h.b16 %v69
  %v592 = vunpack.c.l.b16 %v70
  %v593 = vunpack.c.h.b16 %v70
  %v594 = vunpack.c.l.b16 %v71
  %v595 = vunpack.c.h.b16 %v71
  %v596 = vunpack.c.l.b16 %v72
  %v597 = vunpack.c.h.b16 %v72
  %v598 = vunpack.c.l.b16 %v73
  %v599 = vunpack.c.h.b16 %v73
  %v600 = vunpack.c.l.b16 %v74
  %v601 = vunpack.c.h.b16 %v74
  %v602 = vunpack.c.l.b16 %v75
  %v603 = vunpack.c.h.b16 %v75
  %v604 = vunpack.c.l.b16 %v76
  %v605 = vunpack.c.h.b16 %v76
  %v606 = vunpack.c.l.b16 %v77
  %v607 = vunpack.c.h.b16 %v77
  %v608 = vunpack.c.l.b16 %v78
  %v609 = vunpack.c.h.b16 %v78
  %v610 = vunpack.c.l.b16 %v79
  %v611 = vunpack.c.h.b16 %v79
  %v612 = vpack.c.b16 %v564, %v548
  %v613 = vpack.c.b16 %v565, %v549
  %v614 = vpack.c.b16 %v566, %v550
  %v615 = vpack.c.b16 %v567, %v551
  %v616 = vpack.c.b16 %v568, %v552
  %v617 = vpack.c.b16 %v569, %v553
  %v618 = vpack.c.b16 %v570, %v554
  %v619 = vpack.c.b16 %v571, %v555
  %v620 = vpack.c.b16 %v572, %v556
  %v621 = vpack.c.b16 %v573, %v557
  %v622 = vpack.c.b16 %v574, %v558
  %v623 = vpack.c.b16 %v575, %v559
  %v624 = vpack.c.b16 %v576, %v560
  %v625 = vpack.c.b16 %v577, %v561
  %v626 = vpack.c.b16 %v578, %v562
  %v627 = vpack.c.b16 %v579, %v563
  %v628 = vpack.c.b16 %v596, %v580
  %v629 = vpack.c.b16 %v597, %v581
  %v630 = vpack.c.b16 %v598, %v582
  %v631 = vpack.c.b16 %v599, %v583
  %v632 = vpack.c.b16 %v600, %v584
  %v633 = vpack.c.b16 %v601, %v585
  %v634 = vpack.c.b16 %v602, %v586
  %v635 = vpack.c.b16 %v603, %v587
  %v636 = vpack.c.b16 %v604, %v588
  %v637 = vpack.c.b16 %v605, %v589
  %v638 = vpack.c.b16 %v606, %v590
  %v639 = vpack.c.b16 %v607, %v591
  %v640 = vpack.c.b16 %v608, %v592
  %v641 = vpack.c.b16 %v609, %v593
  %v642 = vpack.c.b16 %v610, %v594
  %v643 = vpack.c.b16 %v611, %v595
  %v677 = vsel %vm304, %v13, 0
  %679 = vmatpush.bf16.msra.mxu0 0
  %680 = vmatpush.bf16.msra.mxu0 0
  %681 = vmatpush.bf16.msra.mxu0 0
  %682 = vmatpush.bf16.msra.mxu0 0
  %683 = vmatpush.bf16.msra.mxu0 0
  %684 = vmatpush.bf16.msra.mxu0 0
  %685 = vmatpush.bf16.msra.mxu0 %v628
  %686 = vmatpush.bf16.msra.mxu0 %v612
  %687 = vmatmul.bf16.gmra.mxu0 %v677
  %v688 = vpop.f32.mrf.mxu0
  %v689 = vadd.f32 0.0, %v688
  %v690 = vpop.f32.mrf.mxu0
  %691 = vdwg.mxu0
  %692 = vmatpush.bf16.msra.mxu0 0
  %693 = vmatpush.bf16.msra.mxu0 0
  %694 = vmatpush.bf16.msra.mxu0 0
  %695 = vmatpush.bf16.msra.mxu0 0
  %696 = vmatpush.bf16.msra.mxu0 0
  %697 = vmatpush.bf16.msra.mxu0 0
  %698 = vmatpush.bf16.msra.mxu0 %v629
  %699 = vmatpush.bf16.msra.mxu0 %v613
  %700 = vmatmul.bf16.gmra.mxu0 %v677
  %v701 = vpop.f32.mrf.mxu0
  %v702 = vadd.f32 0.0, %v701
  %v703 = vpop.f32.mrf.mxu0
  %704 = vdwg.mxu0
  %705 = vmatpush.bf16.msra.mxu0 0
  %706 = vmatpush.bf16.msra.mxu0 0
  %707 = vmatpush.bf16.msra.mxu0 0
  %708 = vmatpush.bf16.msra.mxu0 0
  %709 = vmatpush.bf16.msra.mxu0 0
  %710 = vmatpush.bf16.msra.mxu0 0
  %711 = vmatpush.bf16.msra.mxu0 %v630
  %712 = vmatpush.bf16.msra.mxu0 %v614
  %713 = vmatmul.bf16.gmra.mxu0 %v677
  %v714 = vpop.f32.mrf.mxu0
  %v715 = vadd.f32 0.0, %v714
  %v716 = vpop.f32.mrf.mxu0
  %717 = vdwg.mxu0
  %718 = vmatpush.bf16.msra.mxu0 0
  %719 = vmatpush.bf16.msra.mxu0 0
  %720 = vmatpush.bf16.msra.mxu0 0
  %721 = vmatpush.bf16.msra.mxu0 0
  %722 = vmatpush.bf16.msra.mxu0 0
  %723 = vmatpush.bf16.msra.mxu0 0
  %724 = vmatpush.bf16.msra.mxu0 %v631
  %725 = vmatpush.bf16.msra.mxu0 %v615
  %726 = vmatmul.bf16.gmra.mxu0 %v677
  %v727 = vpop.f32.mrf.mxu0
  %v728 = vadd.f32 0.0, %v727
  %v729 = vpop.f32.mrf.mxu0
  %730 = vdwg.mxu0
  %731 = vmatpush.bf16.msra.mxu0 0
  %732 = vmatpush.bf16.msra.mxu0 0
  %733 = vmatpush.bf16.msra.mxu0 0
  %734 = vmatpush.bf16.msra.mxu0 0
  %735 = vmatpush.bf16.msra.mxu0 0
  %736 = vmatpush.bf16.msra.mxu0 0
  %737 = vmatpush.bf16.msra.mxu0 %v632
  %738 = vmatpush.bf16.msra.mxu0 %v616
  %739 = vmatmul.bf16.gmra.mxu0 %v677
  %v740 = vpop.f32.mrf.mxu0
  %v741 = vadd.f32 0.0, %v740
  %v742 = vpop.f32.mrf.mxu0
  %743 = vdwg.mxu0
  %744 = vmatpush.bf16.msra.mxu0 0
  %745 = vmatpush.bf16.msra.mxu0 0
  %746 = vmatpush.bf16.msra.mxu0 0
  %747 = vmatpush.bf16.msra.mxu0 0
  %748 = vmatpush.bf16.msra.mxu0 0
  %749 = vmatpush.bf16.msra.mxu0 0
  %750 = vmatpush.bf16.msra.mxu0 %v633
  %751 = vmatpush.bf16.msra.mxu0 %v617
  %752 = vmatmul.bf16.gmra.mxu0 %v677
  %v753 = vpop.f32.mrf.mxu0
  %v754 = vadd.f32 0.0, %v753
  %v755 = vpop.f32.mrf.mxu0
  %756 = vdwg.mxu0
  %757 = vmatpush.bf16.msra.mxu0 0
  %758 = vmatpush.bf16.msra.mxu0 0
  %759 = vmatpush.bf16.msra.mxu0 0
  %760 = vmatpush.bf16.msra.mxu0 0
  %761 = vmatpush.bf16.msra.mxu0 0
  %762 = vmatpush.bf16.msra.mxu0 0
  %763 = vmatpush.bf16.msra.mxu0 %v634
  %764 = vmatpush.bf16.msra.mxu0 %v618
  %765 = vmatmul.bf16.gmra.mxu0 %v677
  %v766 = vpop.f32.mrf.mxu0
  %v767 = vadd.f32 0.0, %v766
  %v768 = vpop.f32.mrf.mxu0
  %769 = vdwg.mxu0
  %770 = vmatpush.bf16.msra.mxu0 0
  %771 = vmatpush.bf16.msra.mxu0 0
  %772 = vmatpush.bf16.msra.mxu0 0
  %773 = vmatpush.bf16.msra.mxu0 0
  %774 = vmatpush.bf16.msra.mxu0 0
  %775 = vmatpush.bf16.msra.mxu0 0
  %776 = vmatpush.bf16.msra.mxu0 %v635
  %777 = vmatpush.bf16.msra.mxu0 %v619
  %778 = vmatmul.bf16.gmra.mxu0 %v677
  %v779 = vpop.f32.mrf.mxu0
  %v780 = vadd.f32 0.0, %v779
  %v781 = vpop.f32.mrf.mxu0
  %782 = vdwg.mxu0
  %783 = vmatpush.bf16.msra.mxu0 0
  %784 = vmatpush.bf16.msra.mxu0 0
  %785 = vmatpush.bf16.msra.mxu0 0
  %786 = vmatpush.bf16.msra.mxu0 0
  %787 = vmatpush.bf16.msra.mxu0 0
  %788 = vmatpush.bf16.msra.mxu0 0
  %789 = vmatpush.bf16.msra.mxu0 %v636
  %790 = vmatpush.bf16.msra.mxu0 %v620
  %791 = vmatmul.bf16.gmra.mxu0 %v677
  %v792 = vpop.f32.mrf.mxu0
  %v793 = vadd.f32 0.0, %v792
  %v794 = vpop.f32.mrf.mxu0
  %795 = vdwg.mxu0
  %796 = vmatpush.bf16.msra.mxu0 0
  %797 = vmatpush.bf16.msra.mxu0 0
  %798 = vmatpush.bf16.msra.mxu0 0
  %799 = vmatpush.bf16.msra.mxu0 0
  %800 = vmatpush.bf16.msra.mxu0 0
  %801 = vmatpush.bf16.msra.mxu0 0
  %802 = vmatpush.bf16.msra.mxu0 %v637
  %803 = vmatpush.bf16.msra.mxu0 %v621
  %804 = vmatmul.bf16.gmra.mxu0 %v677
  %v805 = vpop.f32.mrf.mxu0
  %v806 = vadd.f32 0.0, %v805
  %v807 = vpop.f32.mrf.mxu0
  %808 = vdwg.mxu0
  %809 = vmatpush.bf16.msra.mxu0 0
  %810 = vmatpush.bf16.msra.mxu0 0
  %811 = vmatpush.bf16.msra.mxu0 0
  %812 = vmatpush.bf16.msra.mxu0 0
  %813 = vmatpush.bf16.msra.mxu0 0
  %814 = vmatpush.bf16.msra.mxu0 0
  %815 = vmatpush.bf16.msra.mxu0 %v638
  %816 = vmatpush.bf16.msra.mxu0 %v622
  %817 = vmatmul.bf16.gmra.mxu0 %v677
  %v818 = vpop.f32.mrf.mxu0
  %v819 = vadd.f32 0.0, %v818
  %v820 = vpop.f32.mrf.mxu0
  %821 = vdwg.mxu0
  %822 = vmatpush.bf16.msra.mxu0 0
  %823 = vmatpush.bf16.msra.mxu0 0
  %824 = vmatpush.bf16.msra.mxu0 0
  %825 = vmatpush.bf16.msra.mxu0 0
  %826 = vmatpush.bf16.msra.mxu0 0
  %827 = vmatpush.bf16.msra.mxu0 0
  %828 = vmatpush.bf16.msra.mxu0 %v639
  %829 = vmatpush.bf16.msra.mxu0 %v623
  %830 = vmatmul.bf16.gmra.mxu0 %v677
  %v831 = vpop.f32.mrf.mxu0
  %v832 = vadd.f32 0.0, %v831
  %v833 = vpop.f32.mrf.mxu0
  %834 = vdwg.mxu0
  %835 = vmatpush.bf16.msra.mxu0 0
  %836 = vmatpush.bf16.msra.mxu0 0
  %837 = vmatpush.bf16.msra.mxu0 0
  %838 = vmatpush.bf16.msra.mxu0 0
  %839 = vmatpush.bf16.msra.mxu0 0
  %840 = vmatpush.bf16.msra.mxu0 0
  %841 = vmatpush.bf16.msra.mxu0 %v640
  %842 = vmatpush.bf16.msra.mxu0 %v624
  %843 = vmatmul.bf16.gmra.mxu0 %v677
  %v844 = vpop.f32.mrf.mxu0
  %v845 = vadd.f32 0.0, %v844
  %v846 = vpop.f32.mrf.mxu0
  %847 = vdwg.mxu0
  %848 = vmatpush.bf16.msra.mxu0 0
  %849 = vmatpush.bf16.msra.mxu0 0
  %850 = vmatpush.bf16.msra.mxu0 0
  %851 = vmatpush.bf16.msra.mxu0 0
  %852 = vmatpush.bf16.msra.mxu0 0
  %853 = vmatpush.bf16.msra.mxu0 0
  %854 = vmatpush.bf16.msra.mxu0 %v641
  %855 = vmatpush.bf16.msra.mxu0 %v625
  %856 = vmatmul.bf16.gmra.mxu0 %v677
  %v857 = vpop.f32.mrf.mxu0
  %v858 = vadd.f32 0.0, %v857
  %v859 = vpop.f32.mrf.mxu0
  %860 = vdwg.mxu0
  %861 = vmatpush.bf16.msra.mxu0 0
  %862 = vmatpush.bf16.msra.mxu0 0
  %863 = vmatpush.bf16.msra.mxu0 0
  %864 = vmatpush.bf16.msra.mxu0 0
  %865 = vmatpush.bf16.msra.mxu0 0
  %866 = vmatpush.bf16.msra.mxu0 0
  %867 = vmatpush.bf16.msra.mxu0 %v642
  %868 = vmatpush.bf16.msra.mxu0 %v626
  %869 = vmatmul.bf16.gmra.mxu0 %v677
  %v870 = vpop.f32.mrf.mxu0
  %v871 = vadd.f32 0.0, %v870
  %v872 = vpop.f32.mrf.mxu0
  %873 = vdwg.mxu0
  %874 = vmatpush.bf16.msra.mxu0 0
  %875 = vmatpush.bf16.msra.mxu0 0
  %876 = vmatpush.bf16.msra.mxu0 0
  %877 = vmatpush.bf16.msra.mxu0 0
  %878 = vmatpush.bf16.msra.mxu0 0
  %879 = vmatpush.bf16.msra.mxu0 0
  %880 = vmatpush.bf16.msra.mxu0 %v643
  %881 = vmatpush.bf16.msra.mxu0 %v627
  %882 = vmatmul.bf16.gmra.mxu0 %v677
  %v883 = vpop.f32.mrf.mxu0
  %v884 = vadd.f32 0.0, %v883
  %v885 = vpop.f32.mrf.mxu0
  %886 = vdwg.mxu0
  %v919 = vunpack.c.l.b16 %v80
  %v920 = vunpack.c.h.b16 %v80
  %v921 = vunpack.c.l.b16 %v81
  %v922 = vunpack.c.h.b16 %v81
  %v923 = vunpack.c.l.b16 %v82
  %v924 = vunpack.c.h.b16 %v82
  %v925 = vunpack.c.l.b16 %v83
  %v926 = vunpack.c.h.b16 %v83
  %v927 = vunpack.c.l.b16 %v84
  %v928 = vunpack.c.h.b16 %v84
  %v929 = vunpack.c.l.b16 %v85
  %v930 = vunpack.c.h.b16 %v85
  %v931 = vunpack.c.l.b16 %v86
  %v932 = vunpack.c.h.b16 %v86
  %v933 = vunpack.c.l.b16 %v87
  %v934 = vunpack.c.h.b16 %v87
  %v935 = vunpack.c.l.b16 %v88
  %v936 = vunpack.c.h.b16 %v88
  %v937 = vunpack.c.l.b16 %v89
  %v938 = vunpack.c.h.b16 %v89
  %v939 = vunpack.c.l.b16 %v90
  %v940 = vunpack.c.h.b16 %v90
  %v941 = vunpack.c.l.b16 %v91
  %v942 = vunpack.c.h.b16 %v91
  %v943 = vunpack.c.l.b16 %v92
  %v944 = vunpack.c.h.b16 %v92
  %v945 = vunpack.c.l.b16 %v93
  %v946 = vunpack.c.h.b16 %v93
  %v947 = vunpack.c.l.b16 %v94
  %v948 = vunpack.c.h.b16 %v94
  %v949 = vunpack.c.l.b16 %v95
  %v950 = vunpack.c.h.b16 %v95
  %v951 = vunpack.c.l.b16 %v96
  %v952 = vunpack.c.h.b16 %v96
  %v953 = vunpack.c.l.b16 %v97
  %v954 = vunpack.c.h.b16 %v97
  %v955 = vunpack.c.l.b16 %v98
  %v956 = vunpack.c.h.b16 %v98
  %v957 = vunpack.c.l.b16 %v99
  %v958 = vunpack.c.h.b16 %v99
  %v959 = vunpack.c.l.b16 %v100
  %v960 = vunpack.c.h.b16 %v100
  %v961 = vunpack.c.l.b16 %v101
  %v962 = vunpack.c.h.b16 %v101
  %v963 = vunpack.c.l.b16 %v102
  %v964 = vunpack.c.h.b16 %v102
  %v965 = vunpack.c.l.b16 %v103
  %v966 = vunpack.c.h.b16 %v103
  %v967 = vunpack.c.l.b16 %v104
  %v968 = vunpack.c.h.b16 %v104
  %v969 = vunpack.c.l.b16 %v105
  %v970 = vunpack.c.h.b16 %v105
  %v971 = vunpack.c.l.b16 %v106
  %v972 = vunpack.c.h.b16 %v106
  %v973 = vunpack.c.l.b16 %v107
  %v974 = vunpack.c.h.b16 %v107
  %v975 = vunpack.c.l.b16 %v108
  %v976 = vunpack.c.h.b16 %v108
  %v977 = vunpack.c.l.b16 %v109
  %v978 = vunpack.c.h.b16 %v109
  %v979 = vunpack.c.l.b16 %v110
  %v980 = vunpack.c.h.b16 %v110
  %v981 = vunpack.c.l.b16 %v111
  %v982 = vunpack.c.h.b16 %v111
  %v983 = vpack.c.b16 %v935, %v919
  %v984 = vpack.c.b16 %v936, %v920
  %v985 = vpack.c.b16 %v937, %v921
  %v986 = vpack.c.b16 %v938, %v922
  %v987 = vpack.c.b16 %v939, %v923
  %v988 = vpack.c.b16 %v940, %v924
  %v989 = vpack.c.b16 %v941, %v925
  %v990 = vpack.c.b16 %v942, %v926
  %v991 = vpack.c.b16 %v943, %v927
  %v992 = vpack.c.b16 %v944, %v928
  %v993 = vpack.c.b16 %v945, %v929
  %v994 = vpack.c.b16 %v946, %v930
  %v995 = vpack.c.b16 %v947, %v931
  %v996 = vpack.c.b16 %v948, %v932
  %v997 = vpack.c.b16 %v949, %v933
  %v998 = vpack.c.b16 %v950, %v934
  %v999 = vpack.c.b16 %v967, %v951
  %v1000 = vpack.c.b16 %v968, %v952
  %v1001 = vpack.c.b16 %v969, %v953
  %v1002 = vpack.c.b16 %v970, %v954
  %v1003 = vpack.c.b16 %v971, %v955
  %v1004 = vpack.c.b16 %v972, %v956
  %v1005 = vpack.c.b16 %v973, %v957
  %v1006 = vpack.c.b16 %v974, %v958
  %v1007 = vpack.c.b16 %v975, %v959
  %v1008 = vpack.c.b16 %v976, %v960
  %v1009 = vpack.c.b16 %v977, %v961
  %v1010 = vpack.c.b16 %v978, %v962
  %v1011 = vpack.c.b16 %v979, %v963
  %v1012 = vpack.c.b16 %v980, %v964
  %v1013 = vpack.c.b16 %v981, %v965
  %v1014 = vpack.c.b16 %v982, %v966
  %v1048 = vsel %vm304, %v14, 0
  %1050 = vmatpush.bf16.msra.mxu0 0
  %1051 = vmatpush.bf16.msra.mxu0 0
  %1052 = vmatpush.bf16.msra.mxu0 0
  %1053 = vmatpush.bf16.msra.mxu0 0
  %1054 = vmatpush.bf16.msra.mxu0 0
  %1055 = vmatpush.bf16.msra.mxu0 0
  %1056 = vmatpush.bf16.msra.mxu0 %v999
  %1057 = vmatpush.bf16.msra.mxu0 %v983
  %1058 = vmatmul.bf16.gmra.mxu0 %v1048
  %v1059 = vpop.f32.mrf.mxu0
  %v1060 = vadd.f32 0.0, %v1059
  %v1061 = vpop.f32.mrf.mxu0
  %1062 = vdwg.mxu0
  %1063 = vmatpush.bf16.msra.mxu0 0
  %1064 = vmatpush.bf16.msra.mxu0 0
  %1065 = vmatpush.bf16.msra.mxu0 0
  %1066 = vmatpush.bf16.msra.mxu0 0
  %1067 = vmatpush.bf16.msra.mxu0 0
  %1068 = vmatpush.bf16.msra.mxu0 0
  %1069 = vmatpush.bf16.msra.mxu0 %v1000
  %1070 = vmatpush.bf16.msra.mxu0 %v984
  %1071 = vmatmul.bf16.gmra.mxu0 %v1048
  %v1072 = vpop.f32.mrf.mxu0
  %v1073 = vadd.f32 0.0, %v1072
  %v1074 = vpop.f32.mrf.mxu0
  %1075 = vdwg.mxu0
  %1076 = vmatpush.bf16.msra.mxu0 0
  %1077 = vmatpush.bf16.msra.mxu0 0
  %1078 = vmatpush.bf16.msra.mxu0 0
  %1079 = vmatpush.bf16.msra.mxu0 0
  %1080 = vmatpush.bf16.msra.mxu0 0
  %1081 = vmatpush.bf16.msra.mxu0 0
  %1082 = vmatpush.bf16.msra.mxu0 %v1001
  %1083 = vmatpush.bf16.msra.mxu0 %v985
  %1084 = vmatmul.bf16.gmra.mxu0 %v1048
  %v1085 = vpop.f32.mrf.mxu0
  %v1086 = vadd.f32 0.0, %v1085
  %v1087 = vpop.f32.mrf.mxu0
  %1088 = vdwg.mxu0
  %1089 = vmatpush.bf16.msra.mxu0 0
  %1090 = vmatpush.bf16.msra.mxu0 0
  %1091 = vmatpush.bf16.msra.mxu0 0
  %1092 = vmatpush.bf16.msra.mxu0 0
  %1093 = vmatpush.bf16.msra.mxu0 0
  %1094 = vmatpush.bf16.msra.mxu0 0
  %1095 = vmatpush.bf16.msra.mxu0 %v1002
  %1096 = vmatpush.bf16.msra.mxu0 %v986
  %1097 = vmatmul.bf16.gmra.mxu0 %v1048
  %v1098 = vpop.f32.mrf.mxu0
  %v1099 = vadd.f32 0.0, %v1098
  %v1100 = vpop.f32.mrf.mxu0
  %1101 = vdwg.mxu0
  %1102 = vmatpush.bf16.msra.mxu0 0
  %1103 = vmatpush.bf16.msra.mxu0 0
  %1104 = vmatpush.bf16.msra.mxu0 0
  %1105 = vmatpush.bf16.msra.mxu0 0
  %1106 = vmatpush.bf16.msra.mxu0 0
  %1107 = vmatpush.bf16.msra.mxu0 0
  %1108 = vmatpush.bf16.msra.mxu0 %v1003
  %1109 = vmatpush.bf16.msra.mxu0 %v987
  %1110 = vmatmul.bf16.gmra.mxu0 %v1048
  %v1111 = vpop.f32.mrf.mxu0
  %v1112 = vadd.f32 0.0, %v1111
  %v1113 = vpop.f32.mrf.mxu0
  %1114 = vdwg.mxu0
  %1115 = vmatpush.bf16.msra.mxu0 0
  %1116 = vmatpush.bf16.msra.mxu0 0
  %1117 = vmatpush.bf16.msra.mxu0 0
  %1118 = vmatpush.bf16.msra.mxu0 0
  %1119 = vmatpush.bf16.msra.mxu0 0
  %1120 = vmatpush.bf16.msra.mxu0 0
  %1121 = vmatpush.bf16.msra.mxu0 %v1004
  %1122 = vmatpush.bf16.msra.mxu0 %v988
  %1123 = vmatmul.bf16.gmra.mxu0 %v1048
  %v1124 = vpop.f32.mrf.mxu0
  %v1125 = vadd.f32 0.0, %v1124
  %v1126 = vpop.f32.mrf.mxu0
  %1127 = vdwg.mxu0
  %1128 = vmatpush.bf16.msra.mxu0 0
  %1129 = vmatpush.bf16.msra.mxu0 0
  %1130 = vmatpush.bf16.msra.mxu0 0
  %1131 = vmatpush.bf16.msra.mxu0 0
  %1132 = vmatpush.bf16.msra.mxu0 0
  %1133 = vmatpush.bf16.msra.mxu0 0
  %1134 = vmatpush.bf16.msra.mxu0 %v1005
  %1135 = vmatpush.bf16.msra.mxu0 %v989
  %1136 = vmatmul.bf16.gmra.mxu0 %v1048
  %v1137 = vpop.f32.mrf.mxu0
  %v1138 = vadd.f32 0.0, %v1137
  %v1139 = vpop.f32.mrf.mxu0
  %1140 = vdwg.mxu0
  %1141 = vmatpush.bf16.msra.mxu0 0
  %1142 = vmatpush.bf16.msra.mxu0 0
  %1143 = vmatpush.bf16.msra.mxu0 0
  %1144 = vmatpush.bf16.msra.mxu0 0
  %1145 = vmatpush.bf16.msra.mxu0 0
  %1146 = vmatpush.bf16.msra.mxu0 0
  %1147 = vmatpush.bf16.msra.mxu0 %v1006
  %1148 = vmatpush.bf16.msra.mxu0 %v990
  %1149 = vmatmul.bf16.gmra.mxu0 %v1048
  %v1150 = vpop.f32.mrf.mxu0
  %v1151 = vadd.f32 0.0, %v1150
  %v1152 = vpop.f32.mrf.mxu0
  %1153 = vdwg.mxu0
  %1154 = vmatpush.bf16.msra.mxu0 0
  %1155 = vmatpush.bf16.msra.mxu0 0
  %1156 = vmatpush.bf16.msra.mxu0 0
  %1157 = vmatpush.bf16.msra.mxu0 0
  %1158 = vmatpush.bf16.msra.mxu0 0
  %1159 = vmatpush.bf16.msra.mxu0 0
  %1160 = vmatpush.bf16.msra.mxu0 %v1007
  %1161 = vmatpush.bf16.msra.mxu0 %v991
  %1162 = vmatmul.bf16.gmra.mxu0 %v1048
  %v1163 = vpop.f32.mrf.mxu0
  %v1164 = vadd.f32 0.0, %v1163
  %v1165 = vpop.f32.mrf.mxu0
  %1166 = vdwg.mxu0
  %1167 = vmatpush.bf16.msra.mxu0 0
  %1168 = vmatpush.bf16.msra.mxu0 0
  %1169 = vmatpush.bf16.msra.mxu0 0
  %1170 = vmatpush.bf16.msra.mxu0 0
  %1171 = vmatpush.bf16.msra.mxu0 0
  %1172 = vmatpush.bf16.msra.mxu0 0
  %1173 = vmatpush.bf16.msra.mxu0 %v1008
  %1174 = vmatpush.bf16.msra.mxu0 %v992
  %1175 = vmatmul.bf16.gmra.mxu0 %v1048
  %v1176 = vpop.f32.mrf.mxu0
  %v1177 = vadd.f32 0.0, %v1176
  %v1178 = vpop.f32.mrf.mxu0
  %1179 = vdwg.mxu0
  %1180 = vmatpush.bf16.msra.mxu0 0
  %1181 = vmatpush.bf16.msra.mxu0 0
  %1182 = vmatpush.bf16.msra.mxu0 0
  %1183 = vmatpush.bf16.msra.mxu0 0
  %1184 = vmatpush.bf16.msra.mxu0 0
  %1185 = vmatpush.bf16.msra.mxu0 0
  %1186 = vmatpush.bf16.msra.mxu0 %v1009
  %1187 = vmatpush.bf16.msra.mxu0 %v993
  %1188 = vmatmul.bf16.gmra.mxu0 %v1048
  %v1189 = vpop.f32.mrf.mxu0
  %v1190 = vadd.f32 0.0, %v1189
  %v1191 = vpop.f32.mrf.mxu0
  %1192 = vdwg.mxu0
  %1193 = vmatpush.bf16.msra.mxu0 0
  %1194 = vmatpush.bf16.msra.mxu0 0
  %1195 = vmatpush.bf16.msra.mxu0 0
  %1196 = vmatpush.bf16.msra.mxu0 0
  %1197 = vmatpush.bf16.msra.mxu0 0
  %1198 = vmatpush.bf16.msra.mxu0 0
  %1199 = vmatpush.bf16.msra.mxu0 %v1010
  %1200 = vmatpush.bf16.msra.mxu0 %v994
  %1201 = vmatmul.bf16.gmra.mxu0 %v1048
  %v1202 = vpop.f32.mrf.mxu0
  %v1203 = vadd.f32 0.0, %v1202
  %v1204 = vpop.f32.mrf.mxu0
  %1205 = vdwg.mxu0
  %1206 = vmatpush.bf16.msra.mxu0 0
  %1207 = vmatpush.bf16.msra.mxu0 0
  %1208 = vmatpush.bf16.msra.mxu0 0
  %1209 = vmatpush.bf16.msra.mxu0 0
  %1210 = vmatpush.bf16.msra.mxu0 0
  %1211 = vmatpush.bf16.msra.mxu0 0
  %1212 = vmatpush.bf16.msra.mxu0 %v1011
  %1213 = vmatpush.bf16.msra.mxu0 %v995
  %1214 = vmatmul.bf16.gmra.mxu0 %v1048
  %v1215 = vpop.f32.mrf.mxu0
  %v1216 = vadd.f32 0.0, %v1215
  %v1217 = vpop.f32.mrf.mxu0
  %1218 = vdwg.mxu0
  %1219 = vmatpush.bf16.msra.mxu0 0
  %1220 = vmatpush.bf16.msra.mxu0 0
  %1221 = vmatpush.bf16.msra.mxu0 0
  %1222 = vmatpush.bf16.msra.mxu0 0
  %1223 = vmatpush.bf16.msra.mxu0 0
  %1224 = vmatpush.bf16.msra.mxu0 0
  %1225 = vmatpush.bf16.msra.mxu0 %v1012
  %1226 = vmatpush.bf16.msra.mxu0 %v996
  %1227 = vmatmul.bf16.gmra.mxu0 %v1048
  %v1228 = vpop.f32.mrf.mxu0
  %v1229 = vadd.f32 0.0, %v1228
  %v1230 = vpop.f32.mrf.mxu0
  %1231 = vdwg.mxu0
  %1232 = vmatpush.bf16.msra.mxu0 0
  %1233 = vmatpush.bf16.msra.mxu0 0
  %1234 = vmatpush.bf16.msra.mxu0 0
  %1235 = vmatpush.bf16.msra.mxu0 0
  %1236 = vmatpush.bf16.msra.mxu0 0
  %1237 = vmatpush.bf16.msra.mxu0 0
  %1238 = vmatpush.bf16.msra.mxu0 %v1013
  %1239 = vmatpush.bf16.msra.mxu0 %v997
  %1240 = vmatmul.bf16.gmra.mxu0 %v1048
  %v1241 = vpop.f32.mrf.mxu0
  %v1242 = vadd.f32 0.0, %v1241
  %v1243 = vpop.f32.mrf.mxu0
  %1244 = vdwg.mxu0
  %1245 = vmatpush.bf16.msra.mxu0 0
  %1246 = vmatpush.bf16.msra.mxu0 0
  %1247 = vmatpush.bf16.msra.mxu0 0
  %1248 = vmatpush.bf16.msra.mxu0 0
  %1249 = vmatpush.bf16.msra.mxu0 0
  %1250 = vmatpush.bf16.msra.mxu0 0
  %1251 = vmatpush.bf16.msra.mxu0 %v1014
  %1252 = vmatpush.bf16.msra.mxu0 %v998
  %1253 = vmatmul.bf16.gmra.mxu0 %v1048
  %v1254 = vpop.f32.mrf.mxu0
  %v1255 = vadd.f32 0.0, %v1254
  %v1256 = vpop.f32.mrf.mxu0
  %1257 = vdwg.mxu0
  %v1290 = vunpack.c.l.b16 %v112
  %v1291 = vunpack.c.h.b16 %v112
  %v1292 = vunpack.c.l.b16 %v113
  %v1293 = vunpack.c.h.b16 %v113
  %v1294 = vunpack.c.l.b16 %v114
  %v1295 = vunpack.c.h.b16 %v114
  %v1296 = vunpack.c.l.b16 %v115
  %v1297 = vunpack.c.h.b16 %v115
  %v1298 = vunpack.c.l.b16 %v116
  %v1299 = vunpack.c.h.b16 %v116
  %v1300 = vunpack.c.l.b16 %v117
  %v1301 = vunpack.c.h.b16 %v117
  %v1302 = vunpack.c.l.b16 %v118
  %v1303 = vunpack.c.h.b16 %v118
  %v1304 = vunpack.c.l.b16 %v119
  %v1305 = vunpack.c.h.b16 %v119
  %v1306 = vunpack.c.l.b16 %v120
  %v1307 = vunpack.c.h.b16 %v120
  %v1308 = vunpack.c.l.b16 %v121
  %v1309 = vunpack.c.h.b16 %v121
  %v1310 = vunpack.c.l.b16 %v122
  %v1311 = vunpack.c.h.b16 %v122
  %v1312 = vunpack.c.l.b16 %v123
  %v1313 = vunpack.c.h.b16 %v123
  %v1314 = vunpack.c.l.b16 %v124
  %v1315 = vunpack.c.h.b16 %v124
  %v1316 = vunpack.c.l.b16 %v125
  %v1317 = vunpack.c.h.b16 %v125
  %v1318 = vunpack.c.l.b16 %v126
  %v1319 = vunpack.c.h.b16 %v126
  %v1320 = vunpack.c.l.b16 %v127
  %v1321 = vunpack.c.h.b16 %v127
  %v1322 = vunpack.c.l.b16 %v128
  %v1323 = vunpack.c.h.b16 %v128
  %v1324 = vunpack.c.l.b16 %v129
  %v1325 = vunpack.c.h.b16 %v129
  %v1326 = vunpack.c.l.b16 %v130
  %v1327 = vunpack.c.h.b16 %v130
  %v1328 = vunpack.c.l.b16 %v131
  %v1329 = vunpack.c.h.b16 %v131
  %v1330 = vunpack.c.l.b16 %v132
  %v1331 = vunpack.c.h.b16 %v132
  %v1332 = vunpack.c.l.b16 %v133
  %v1333 = vunpack.c.h.b16 %v133
  %v1334 = vunpack.c.l.b16 %v134
  %v1335 = vunpack.c.h.b16 %v134
  %v1336 = vunpack.c.l.b16 %v135
  %v1337 = vunpack.c.h.b16 %v135
  %v1338 = vunpack.c.l.b16 %v136
  %v1339 = vunpack.c.h.b16 %v136
  %v1340 = vunpack.c.l.b16 %v137
  %v1341 = vunpack.c.h.b16 %v137
  %v1342 = vunpack.c.l.b16 %v138
  %v1343 = vunpack.c.h.b16 %v138
  %v1344 = vunpack.c.l.b16 %v139
  %v1345 = vunpack.c.h.b16 %v139
  %v1346 = vunpack.c.l.b16 %v140
  %v1347 = vunpack.c.h.b16 %v140
  %v1348 = vunpack.c.l.b16 %v141
  %v1349 = vunpack.c.h.b16 %v141
  %v1350 = vunpack.c.l.b16 %v142
  %v1351 = vunpack.c.h.b16 %v142
  %v1352 = vunpack.c.l.b16 %v143
  %v1353 = vunpack.c.h.b16 %v143
  %v1354 = vpack.c.b16 %v1306, %v1290
  %v1355 = vpack.c.b16 %v1307, %v1291
  %v1356 = vpack.c.b16 %v1308, %v1292
  %v1357 = vpack.c.b16 %v1309, %v1293
  %v1358 = vpack.c.b16 %v1310, %v1294
  %v1359 = vpack.c.b16 %v1311, %v1295
  %v1360 = vpack.c.b16 %v1312, %v1296
  %v1361 = vpack.c.b16 %v1313, %v1297
  %v1362 = vpack.c.b16 %v1314, %v1298
  %v1363 = vpack.c.b16 %v1315, %v1299
  %v1364 = vpack.c.b16 %v1316, %v1300
  %v1365 = vpack.c.b16 %v1317, %v1301
  %v1366 = vpack.c.b16 %v1318, %v1302
  %v1367 = vpack.c.b16 %v1319, %v1303
  %v1368 = vpack.c.b16 %v1320, %v1304
  %v1369 = vpack.c.b16 %v1321, %v1305
  %v1370 = vpack.c.b16 %v1338, %v1322
  %v1371 = vpack.c.b16 %v1339, %v1323
  %v1372 = vpack.c.b16 %v1340, %v1324
  %v1373 = vpack.c.b16 %v1341, %v1325
  %v1374 = vpack.c.b16 %v1342, %v1326
  %v1375 = vpack.c.b16 %v1343, %v1327
  %v1376 = vpack.c.b16 %v1344, %v1328
  %v1377 = vpack.c.b16 %v1345, %v1329
  %v1378 = vpack.c.b16 %v1346, %v1330
  %v1379 = vpack.c.b16 %v1347, %v1331
  %v1380 = vpack.c.b16 %v1348, %v1332
  %v1381 = vpack.c.b16 %v1349, %v1333
  %v1382 = vpack.c.b16 %v1350, %v1334
  %v1383 = vpack.c.b16 %v1351, %v1335
  %v1384 = vpack.c.b16 %v1352, %v1336
  %v1385 = vpack.c.b16 %v1353, %v1337
  %v1419 = vsel %vm304, %v15, 0
  %1421 = vmatpush.bf16.msra.mxu0 0
  %1422 = vmatpush.bf16.msra.mxu0 0
  %1423 = vmatpush.bf16.msra.mxu0 0
  %1424 = vmatpush.bf16.msra.mxu0 0
  %1425 = vmatpush.bf16.msra.mxu0 0
  %1426 = vmatpush.bf16.msra.mxu0 0
  %1427 = vmatpush.bf16.msra.mxu0 %v1370
  %1428 = vmatpush.bf16.msra.mxu0 %v1354
  %1429 = vmatmul.bf16.gmra.mxu0 %v1419
  %v1430 = vpop.f32.mrf.mxu0
  %v1431 = vadd.f32 0.0, %v1430
  %v1432 = vpop.f32.mrf.mxu0
  %1433 = vdwg.mxu0
  %1434 = vmatpush.bf16.msra.mxu0 0
  %1435 = vmatpush.bf16.msra.mxu0 0
  %1436 = vmatpush.bf16.msra.mxu0 0
  %1437 = vmatpush.bf16.msra.mxu0 0
  %1438 = vmatpush.bf16.msra.mxu0 0
  %1439 = vmatpush.bf16.msra.mxu0 0
  %1440 = vmatpush.bf16.msra.mxu0 %v1371
  %1441 = vmatpush.bf16.msra.mxu0 %v1355
  %1442 = vmatmul.bf16.gmra.mxu0 %v1419
  %v1443 = vpop.f32.mrf.mxu0
  %v1444 = vadd.f32 0.0, %v1443
  %v1445 = vpop.f32.mrf.mxu0
  %1446 = vdwg.mxu0
  %1447 = vmatpush.bf16.msra.mxu0 0
  %1448 = vmatpush.bf16.msra.mxu0 0
  %1449 = vmatpush.bf16.msra.mxu0 0
  %1450 = vmatpush.bf16.msra.mxu0 0
  %1451 = vmatpush.bf16.msra.mxu0 0
  %1452 = vmatpush.bf16.msra.mxu0 0
  %1453 = vmatpush.bf16.msra.mxu0 %v1372
  %1454 = vmatpush.bf16.msra.mxu0 %v1356
  %1455 = vmatmul.bf16.gmra.mxu0 %v1419
  %v1456 = vpop.f32.mrf.mxu0
  %v1457 = vadd.f32 0.0, %v1456
  %v1458 = vpop.f32.mrf.mxu0
  %1459 = vdwg.mxu0
  %1460 = vmatpush.bf16.msra.mxu0 0
  %1461 = vmatpush.bf16.msra.mxu0 0
  %1462 = vmatpush.bf16.msra.mxu0 0
  %1463 = vmatpush.bf16.msra.mxu0 0
  %1464 = vmatpush.bf16.msra.mxu0 0
  %1465 = vmatpush.bf16.msra.mxu0 0
  %1466 = vmatpush.bf16.msra.mxu0 %v1373
  %1467 = vmatpush.bf16.msra.mxu0 %v1357
  %1468 = vmatmul.bf16.gmra.mxu0 %v1419
  %v1469 = vpop.f32.mrf.mxu0
  %v1470 = vadd.f32 0.0, %v1469
  %v1471 = vpop.f32.mrf.mxu0
  %1472 = vdwg.mxu0
  %1473 = vmatpush.bf16.msra.mxu0 0
  %1474 = vmatpush.bf16.msra.mxu0 0
  %1475 = vmatpush.bf16.msra.mxu0 0
  %1476 = vmatpush.bf16.msra.mxu0 0
  %1477 = vmatpush.bf16.msra.mxu0 0
  %1478 = vmatpush.bf16.msra.mxu0 0
  %1479 = vmatpush.bf16.msra.mxu0 %v1374
  %1480 = vmatpush.bf16.msra.mxu0 %v1358
  %1481 = vmatmul.bf16.gmra.mxu0 %v1419
  %v1482 = vpop.f32.mrf.mxu0
  %v1483 = vadd.f32 0.0, %v1482
  %v1484 = vpop.f32.mrf.mxu0
  %1485 = vdwg.mxu0
  %1486 = vmatpush.bf16.msra.mxu0 0
  %1487 = vmatpush.bf16.msra.mxu0 0
  %1488 = vmatpush.bf16.msra.mxu0 0
  %1489 = vmatpush.bf16.msra.mxu0 0
  %1490 = vmatpush.bf16.msra.mxu0 0
  %1491 = vmatpush.bf16.msra.mxu0 0
  %1492 = vmatpush.bf16.msra.mxu0 %v1375
  %1493 = vmatpush.bf16.msra.mxu0 %v1359
  %1494 = vmatmul.bf16.gmra.mxu0 %v1419
  %v1495 = vpop.f32.mrf.mxu0
  %v1496 = vadd.f32 0.0, %v1495
  %v1497 = vpop.f32.mrf.mxu0
  %1498 = vdwg.mxu0
  %1499 = vmatpush.bf16.msra.mxu0 0
  %1500 = vmatpush.bf16.msra.mxu0 0
  %1501 = vmatpush.bf16.msra.mxu0 0
  %1502 = vmatpush.bf16.msra.mxu0 0
  %1503 = vmatpush.bf16.msra.mxu0 0
  %1504 = vmatpush.bf16.msra.mxu0 0
  %1505 = vmatpush.bf16.msra.mxu0 %v1376
  %1506 = vmatpush.bf16.msra.mxu0 %v1360
  %1507 = vmatmul.bf16.gmra.mxu0 %v1419
  %v1508 = vpop.f32.mrf.mxu0
  %v1509 = vadd.f32 0.0, %v1508
  %v1510 = vpop.f32.mrf.mxu0
  %1511 = vdwg.mxu0
  %1512 = vmatpush.bf16.msra.mxu0 0
  %1513 = vmatpush.bf16.msra.mxu0 0
  %1514 = vmatpush.bf16.msra.mxu0 0
  %1515 = vmatpush.bf16.msra.mxu0 0
  %1516 = vmatpush.bf16.msra.mxu0 0
  %1517 = vmatpush.bf16.msra.mxu0 0
  %1518 = vmatpush.bf16.msra.mxu0 %v1377
  %1519 = vmatpush.bf16.msra.mxu0 %v1361
  %1520 = vmatmul.bf16.gmra.mxu0 %v1419
  %v1521 = vpop.f32.mrf.mxu0
  %v1522 = vadd.f32 0.0, %v1521
  %v1523 = vpop.f32.mrf.mxu0
  %1524 = vdwg.mxu0
  %1525 = vmatpush.bf16.msra.mxu0 0
  %1526 = vmatpush.bf16.msra.mxu0 0
  %1527 = vmatpush.bf16.msra.mxu0 0
  %1528 = vmatpush.bf16.msra.mxu0 0
  %1529 = vmatpush.bf16.msra.mxu0 0
  %1530 = vmatpush.bf16.msra.mxu0 0
  %1531 = vmatpush.bf16.msra.mxu0 %v1378
  %1532 = vmatpush.bf16.msra.mxu0 %v1362
  %1533 = vmatmul.bf16.gmra.mxu0 %v1419
  %v1534 = vpop.f32.mrf.mxu0
  %v1535 = vadd.f32 0.0, %v1534
  %v1536 = vpop.f32.mrf.mxu0
  %1537 = vdwg.mxu0
  %1538 = vmatpush.bf16.msra.mxu0 0
  %1539 = vmatpush.bf16.msra.mxu0 0
  %1540 = vmatpush.bf16.msra.mxu0 0
  %1541 = vmatpush.bf16.msra.mxu0 0
  %1542 = vmatpush.bf16.msra.mxu0 0
  %1543 = vmatpush.bf16.msra.mxu0 0
  %1544 = vmatpush.bf16.msra.mxu0 %v1379
  %1545 = vmatpush.bf16.msra.mxu0 %v1363
  %1546 = vmatmul.bf16.gmra.mxu0 %v1419
  %v1547 = vpop.f32.mrf.mxu0
  %v1548 = vadd.f32 0.0, %v1547
  %v1549 = vpop.f32.mrf.mxu0
  %1550 = vdwg.mxu0
  %1551 = vmatpush.bf16.msra.mxu0 0
  %1552 = vmatpush.bf16.msra.mxu0 0
  %1553 = vmatpush.bf16.msra.mxu0 0
  %1554 = vmatpush.bf16.msra.mxu0 0
  %1555 = vmatpush.bf16.msra.mxu0 0
  %1556 = vmatpush.bf16.msra.mxu0 0
  %1557 = vmatpush.bf16.msra.mxu0 %v1380
  %1558 = vmatpush.bf16.msra.mxu0 %v1364
  %1559 = vmatmul.bf16.gmra.mxu0 %v1419
  %v1560 = vpop.f32.mrf.mxu0
  %v1561 = vadd.f32 0.0, %v1560
  %v1562 = vpop.f32.mrf.mxu0
  %1563 = vdwg.mxu0
  %1564 = vmatpush.bf16.msra.mxu0 0
  %1565 = vmatpush.bf16.msra.mxu0 0
  %1566 = vmatpush.bf16.msra.mxu0 0
  %1567 = vmatpush.bf16.msra.mxu0 0
  %1568 = vmatpush.bf16.msra.mxu0 0
  %1569 = vmatpush.bf16.msra.mxu0 0
  %1570 = vmatpush.bf16.msra.mxu0 %v1381
  %1571 = vmatpush.bf16.msra.mxu0 %v1365
  %1572 = vmatmul.bf16.gmra.mxu0 %v1419
  %v1573 = vpop.f32.mrf.mxu0
  %v1574 = vadd.f32 0.0, %v1573
  %v1575 = vpop.f32.mrf.mxu0
  %1576 = vdwg.mxu0
  %1577 = vmatpush.bf16.msra.mxu0 0
  %1578 = vmatpush.bf16.msra.mxu0 0
  %1579 = vmatpush.bf16.msra.mxu0 0
  %1580 = vmatpush.bf16.msra.mxu0 0
  %1581 = vmatpush.bf16.msra.mxu0 0
  %1582 = vmatpush.bf16.msra.mxu0 0
  %1583 = vmatpush.bf16.msra.mxu0 %v1382
  %1584 = vmatpush.bf16.msra.mxu0 %v1366
  %1585 = vmatmul.bf16.gmra.mxu0 %v1419
  %v1586 = vpop.f32.mrf.mxu0
  %v1587 = vadd.f32 0.0, %v1586
  %v1588 = vpop.f32.mrf.mxu0
  %1589 = vdwg.mxu0
  %1590 = vmatpush.bf16.msra.mxu0 0
  %1591 = vmatpush.bf16.msra.mxu0 0
  %1592 = vmatpush.bf16.msra.mxu0 0
  %1593 = vmatpush.bf16.msra.mxu0 0
  %1594 = vmatpush.bf16.msra.mxu0 0
  %1595 = vmatpush.bf16.msra.mxu0 0
  %1596 = vmatpush.bf16.msra.mxu0 %v1383
  %1597 = vmatpush.bf16.msra.mxu0 %v1367
  %1598 = vmatmul.bf16.gmra.mxu0 %v1419
  %v1599 = vpop.f32.mrf.mxu0
  %v1600 = vadd.f32 0.0, %v1599
  %v1601 = vpop.f32.mrf.mxu0
  %1602 = vdwg.mxu0
  %1603 = vmatpush.bf16.msra.mxu0 0
  %1604 = vmatpush.bf16.msra.mxu0 0
  %1605 = vmatpush.bf16.msra.mxu0 0
  %1606 = vmatpush.bf16.msra.mxu0 0
  %1607 = vmatpush.bf16.msra.mxu0 0
  %1608 = vmatpush.bf16.msra.mxu0 0
  %1609 = vmatpush.bf16.msra.mxu0 %v1384
  %1610 = vmatpush.bf16.msra.mxu0 %v1368
  %1611 = vmatmul.bf16.gmra.mxu0 %v1419
  %v1612 = vpop.f32.mrf.mxu0
  %v1613 = vadd.f32 0.0, %v1612
  %v1614 = vpop.f32.mrf.mxu0
  %1615 = vdwg.mxu0
  %1616 = vmatpush.bf16.msra.mxu0 0
  %1617 = vmatpush.bf16.msra.mxu0 0
  %1618 = vmatpush.bf16.msra.mxu0 0
  %1619 = vmatpush.bf16.msra.mxu0 0
  %1620 = vmatpush.bf16.msra.mxu0 0
  %1621 = vmatpush.bf16.msra.mxu0 0
  %1622 = vmatpush.bf16.msra.mxu0 %v1385
  %1623 = vmatpush.bf16.msra.mxu0 %v1369
  %1624 = vmatmul.bf16.gmra.mxu0 %v1419
  %v1625 = vpop.f32.mrf.mxu0
  %v1626 = vadd.f32 0.0, %v1625
  %v1627 = vpop.f32.mrf.mxu0
  %1628 = vdwg.mxu0
  %v1629 = vtanh.pop %v318
  %v1630 = vtanh.pop %v331
  %v1631 = vtanh.pop %v344
  %v1632 = vtanh.pop %v357
  %v1633 = vtanh.pop %v370
  %v1634 = vtanh.pop %v383
  %v1635 = vtanh.pop %v396
  %v1636 = vtanh.pop %v409
  %v1637 = vtanh.pop %v422
  %v1638 = vtanh.pop %v435
  %v1639 = vtanh.pop %v448
  %v1640 = vtanh.pop %v461
  %v1641 = vtanh.pop %v474
  %v1642 = vtanh.pop %v487
  %v1643 = vtanh.pop %v500
  %v1644 = vtanh.pop %v513
  %v1645 = vtanh.pop %v689
  %v1646 = vtanh.pop %v702
  %v1647 = vtanh.pop %v715
  %v1648 = vtanh.pop %v728
  %v1649 = vtanh.pop %v741
  %v1650 = vtanh.pop %v754
  %v1651 = vtanh.pop %v767
  %v1652 = vtanh.pop %v780
  %v1653 = vtanh.pop %v793
  %v1654 = vtanh.pop %v806
  %v1655 = vtanh.pop %v819
  %v1656 = vtanh.pop %v832
  %v1657 = vtanh.pop %v845
  %v1658 = vtanh.pop %v858
  %v1659 = vtanh.pop %v871
  %v1660 = vtanh.pop %v884
  %v1661 = vtanh.pop %v1060
  %v1662 = vtanh.pop %v1073
  %v1663 = vtanh.pop %v1086
  %v1664 = vtanh.pop %v1099
  %v1665 = vtanh.pop %v1112
  %v1666 = vtanh.pop %v1125
  %v1667 = vtanh.pop %v1138
  %v1668 = vtanh.pop %v1151
  %v1669 = vtanh.pop %v1164
  %v1670 = vtanh.pop %v1177
  %v1671 = vtanh.pop %v1190
  %v1672 = vtanh.pop %v1203
  %v1673 = vtanh.pop %v1216
  %v1674 = vtanh.pop %v1229
  %v1675 = vtanh.pop %v1242
  %v1676 = vtanh.pop %v1255
  %v1677 = vtanh.pop %v1431
  %v1678 = vtanh.pop %v1444
  %v1679 = vtanh.pop %v1457
  %v1680 = vtanh.pop %v1470
  %v1681 = vtanh.pop %v1483
  %v1682 = vtanh.pop %v1496
  %v1683 = vtanh.pop %v1509
  %v1684 = vtanh.pop %v1522
  %v1685 = vtanh.pop %v1535
  %v1686 = vtanh.pop %v1548
  %v1687 = vtanh.pop %v1561
  %v1688 = vtanh.pop %v1574
  %v1689 = vtanh.pop %v1587
  %v1690 = vtanh.pop %v1600
  %v1691 = vtanh.pop %v1613
  %v1692 = vtanh.pop %v1626
  %v1757 = vrot.slane %v1630, 4
  %v1758 = vrot.slane %v1632, 4
  %v1759 = vrot.slane %v1634, 4
  %v1760 = vrot.slane %v1636, 4
  %v1761 = vrot.slane %v1638, 4
  %v1762 = vrot.slane %v1640, 4
  %v1763 = vrot.slane %v1642, 4
  %v1764 = vrot.slane %v1644, 4
  %v1765 = vrot.slane %v1646, 4
  %v1766 = vrot.slane %v1648, 4
  %v1767 = vrot.slane %v1650, 4
  %v1768 = vrot.slane %v1652, 4
  %v1769 = vrot.slane %v1654, 4
  %v1770 = vrot.slane %v1656, 4
  %v1771 = vrot.slane %v1658, 4
  %v1772 = vrot.slane %v1660, 4
  %v1773 = vrot.slane %v1662, 4
  %v1774 = vrot.slane %v1664, 4
  %v1775 = vrot.slane %v1666, 4
  %v1776 = vrot.slane %v1668, 4
  %v1777 = vrot.slane %v1670, 4
  %v1778 = vrot.slane %v1672, 4
  %v1779 = vrot.slane %v1674, 4
  %v1780 = vrot.slane %v1676, 4
  %v1781 = vrot.slane %v1678, 4
  %v1782 = vrot.slane %v1680, 4
  %v1783 = vrot.slane %v1682, 4
  %v1784 = vrot.slane %v1684, 4
  %v1785 = vrot.slane %v1686, 4
  %v1786 = vrot.slane %v1688, 4
  %v1787 = vrot.slane %v1690, 4
  %v1788 = vrot.slane %v1692, 4
  %vm1789 = vcmask 1043456
  %v1790 = vsel %vm1789, %v1629, %v1757
  %v1791 = vsel %vm1789, %v1631, %v1758
  %v1792 = vsel %vm1789, %v1633, %v1759
  %v1793 = vsel %vm1789, %v1635, %v1760
  %v1794 = vsel %vm1789, %v1637, %v1761
  %v1795 = vsel %vm1789, %v1639, %v1762
  %v1796 = vsel %vm1789, %v1641, %v1763
  %v1797 = vsel %vm1789, %v1643, %v1764
  %v1798 = vsel %vm1789, %v1645, %v1765
  %v1799 = vsel %vm1789, %v1647, %v1766
  %v1800 = vsel %vm1789, %v1649, %v1767
  %v1801 = vsel %vm1789, %v1651, %v1768
  %v1802 = vsel %vm1789, %v1653, %v1769
  %v1803 = vsel %vm1789, %v1655, %v1770
  %v1804 = vsel %vm1789, %v1657, %v1771
  %v1805 = vsel %vm1789, %v1659, %v1772
  %v1806 = vsel %vm1789, %v1661, %v1773
  %v1807 = vsel %vm1789, %v1663, %v1774
  %v1808 = vsel %vm1789, %v1665, %v1775
  %v1809 = vsel %vm1789, %v1667, %v1776
  %v1810 = vsel %vm1789, %v1669, %v1777
  %v1811 = vsel %vm1789, %v1671, %v1778
  %v1812 = vsel %vm1789, %v1673, %v1779
  %v1813 = vsel %vm1789, %v1675, %v1780
  %v1814 = vsel %vm1789, %v1677, %v1781
  %v1815 = vsel %vm1789, %v1679, %v1782
  %v1816 = vsel %vm1789, %v1681, %v1783
  %v1817 = vsel %vm1789, %v1683, %v1784
  %v1818 = vsel %vm1789, %v1685, %v1785
  %v1819 = vsel %vm1789, %v1687, %v1786
  %v1820 = vsel %vm1789, %v1689, %v1787
  %v1821 = vsel %vm1789, %v1691, %v1788
  %1854 = vst [vmem:[%s2] sm:$0x77] %v1790
  %1855 = vst [vmem:[%s2 + $0x8] sm:$0x77] %v1791
  %1856 = vst [vmem:[%s2 + $0x10] sm:$0x77] %v1792
  %1857 = vst [vmem:[%s2 + $0x18] sm:$0x77] %v1793
  %1858 = vst [vmem:[%s2 + $0x20] sm:$0x77] %v1794
  %1859 = vst [vmem:[%s2 + $0x28] sm:$0x77] %v1795
  %1860 = vst [vmem:[%s2 + $0x30] sm:$0x77] %v1796
  %1861 = vst [vmem:[%s2 + $0x38] sm:$0x77] %v1797
  %1862 = vst [vmem:[%s2 + $0x40] sm:$0x77] %v1798
  %1863 = vst [vmem:[%s2 + $0x48] sm:$0x77] %v1799
  %1864 = vst [vmem:[%s2 + $0x50] sm:$0x77] %v1800
  %1865 = vst [vmem:[%s2 + $0x58] sm:$0x77] %v1801
  %1866 = vst [vmem:[%s2 + $0x60] sm:$0x77] %v1802
  %1867 = vst [vmem:[%s2 + $0x68] sm:$0x77] %v1803
  %1868 = vst [vmem:[%s2 + $0x70] sm:$0x77] %v1804
  %1869 = vst [vmem:[%s2 + $0x78] sm:$0x77] %v1805
  %1870 = vst [vmem:[%s2 + $0x80] sm:$0x77] %v1806
  %1871 = vst [vmem:[%s2 + $0x88] sm:$0x77] %v1807
  %1872 = vst [vmem:[%s2 + $0x90] sm:$0x77] %v1808
  %1873 = vst [vmem:[%s2 + $0x98] sm:$0x77] %v1809
  %1874 = vst [vmem:[%s2 + $0xa0] sm:$0x77] %v1810
  %1875 = vst [vmem:[%s2 + $0xa8] sm:$0x77] %v1811
  %1876 = vst [vmem:[%s2 + $0xb0] sm:$0x77] %v1812
  %1877 = vst [vmem:[%s2 + $0xb8] sm:$0x77] %v1813
  %1878 = vst [vmem:[%s2 + $0xc0] sm:$0x77] %v1814
  %1879 = vst [vmem:[%s2 + $0xc8] sm:$0x77] %v1815
  %1880 = vst [vmem:[%s2 + $0xd0] sm:$0x77] %v1816
  %1881 = vst [vmem:[%s2 + $0xd8] sm:$0x77] %v1817
  %1882 = vst [vmem:[%s2 + $0xe0] sm:$0x77] %v1818
  %1883 = vst [vmem:[%s2 + $0xe8] sm:$0x77] %v1819
  %1884 = vst [vmem:[%s2 + $0xf0] sm:$0x77] %v1820
  %1885 = vst [vmem:[%s2 + $0xf8] sm:$0x77] %v1821
  // Predicated region
  $region10: #{generator_forward.9} parent=0 // pred_check
    _
  $region11: #{generator_forward.9} parent=0 // pred_check_branch
    %1887 = sbr.rel (0) target = $region13
  $region12: #{generator_forward.9} parent=0 // pred_region
    _
  $region13: #{generator_forward.9} parent=0 // pred_fallthru
    _
  // Predicated region
  $region14: #{generator_forward.9} parent=0 // pred_check
    _
  $region15: #{generator_forward.9} parent=0 // pred_check_branch
    %1889 = sbr.rel (0) target = $region17
  $region16: #{generator_forward.9} parent=0 // pred_region
    _
  $region17: #{generator_forward.9} parent=0 // pred_fallthru
    _

</llo_original>
